<compile_context>
chip_gen: v6e
topology: v6e:2x2x1
jax: 0.10.0
libtpu: 0.0.40
codegen_flags: <defaults>
</compile_context>

<pallas_src>
import functools
import math

import jax
import jax.numpy as jnp
from jax.experimental import pallas as pl
from jax.experimental.pallas import tpu as pltpu


# ----------------------------- config (small, deterministic) -----------------------------
CONFIG = dict(
    num_hidden_layers=2,
    hidden_size=32,
    num_attention_heads=4,
    intermediate_size=64,
    hidden_act="gelu",
    layer_norm_eps=1e-12,
    initializer_range=0.02,
    hidden_dropout_prob=0.0,
    attention_probs_dropout_prob=0.0,
    is_decoder=False,
)

B, S = 2, 8  # batch, sequence length


# ----------------------------- in-kernel math helpers -----------------------------
def _erf(z):
    # Abramowitz & Stegun 7.1.26, |error| < 1.5e-7: exact-erf GELU to ~f32 precision
    # without relying on a lax.erf lowering inside Mosaic.
    p = 0.3275911
    a1, a2, a3, a4, a5 = 0.254829592, -0.284496736, 1.421413741, -1.453152027, 1.061405429
    s = jnp.where(z >= 0.0, 1.0, -1.0)
    za = jnp.abs(z)
    t = 1.0 / (1.0 + p * za)
    poly = ((((a5 * t + a4) * t + a3) * t + a2) * t + a1) * t
    return s * (1.0 - poly * jnp.exp(-za * za))


def _gelu_exact(x):
    return 0.5 * x * (1.0 + _erf(x * (1.0 / math.sqrt(2.0))))


def _layer_norm(x, w, b, eps):
    mu = jnp.mean(x, axis=-1, keepdims=True)
    var = jnp.mean(jnp.square(x - mu), axis=-1, keepdims=True)
    return (x - mu) * jax.lax.rsqrt(var + eps) * w + b


# ----------------------------- kernel -----------------------------
def encoder_kernel(
    x_ref, kbias_ref,
    wqkv_ref, bqkv_ref, wo_ref, bo_ref,
    wi_ref, bi_ref, wo2_ref, bo2_ref, ln_ref,
    out_ref,
    *, num_layers, num_heads, head_dim, eps,
):
    hidden = num_heads * head_dim
    scale = 1.0 / math.sqrt(head_dim)

    x = x_ref[0]            # (S, H) f32 activation, carried across layers in vregs
    kbias = kbias_ref[0]    # (1, S) f32 additive key bias ((1-mask) * -10000; zeros for None)

    for l in range(num_layers):          # static unroll; all stacked weights are VMEM-resident
        # ---- fused QKV projection: one matmul pass over the (S, H) slab ----
        qkv = jnp.dot(x, wqkv_ref[l], preferred_element_type=jnp.float32) + bqkv_ref[l]
        q = qkv[:, 0 * hidden:1 * hidden] * scale      # fold 1/sqrt(d) into q once per layer
        k = qkv[:, 1 * hidden:2 * hidden]
        v = qkv[:, 2 * hidden:3 * hidden]

        # ---- per-head attention; head contexts assembled in vregs (lane concat) ----
        ctx_heads = []
        for h in range(num_heads):       # static unroll, tiny head count
            lo = h * head_dim
            qh = q[:, lo:lo + head_dim]
            kh = k[:, lo:lo + head_dim]
            vh = v[:, lo:lo + head_dim]
            # q @ k.T without an explicit transpose (contract last dims of both).
            scores = jax.lax.dot_general(
                qh, kh, (((1,), (1,)), ((), ())),
                preferred_element_type=jnp.float32) + kbias
            scores = scores - jnp.max(scores, axis=-1, keepdims=True)
            e = jnp.exp(scores)
            probs = e / jnp.sum(e, axis=-1, keepdims=True)   # exact softmax (f32)
            ctx_heads.append(jnp.dot(probs, vh, preferred_element_type=jnp.float32))
        ctx = jnp.concatenate(ctx_heads, axis=-1)            # (S, H), stays in vregs

        ln = ln_ref[l]                                       # (4, H): ln1w, ln1b, ln2w, ln2b

        # ---- attention output projection + residual + LayerNorm ----
        attn_out = jnp.dot(ctx, wo_ref[l], preferred_element_type=jnp.float32) + bo_ref[l]
        h1 = _layer_norm(attn_out + x, ln[0:1], ln[1:2], eps)

        # ---- feed-forward (exact-erf GELU) + residual + LayerNorm ----
        inter = jnp.dot(h1, wi_ref[l], preferred_element_type=jnp.float32) + bi_ref[l]
        inter = _gelu_exact(inter)
        ffn_out = jnp.dot(inter, wo2_ref[l], preferred_element_type=jnp.float32) + bo2_ref[l]
        x = _layer_norm(ffn_out + h1, ln[2:3], ln[3:4], eps)

    out_ref[0] = x


# ----------------------------- wrapper -----------------------------
def transformer_encoder(hidden_states, attention_mask, params, config):
    """Mirrors TransformerEncoder.forward (default kwargs: encoder-only, no head_mask).

    Returns a 1-tuple (hidden_states,) like the PyTorch module."""
    Bc, Sc, H = hidden_states.shape
    nh = config["num_attention_heads"]
    eps = config["layer_norm_eps"]
    L = params["wqkv"].shape[0]

    # Per-key additive bias reproducing get_extended_attention_mask for 2-D masks
    # (attention_mask=None == all-ones mask == zero bias).
    if attention_mask is None:
        key_bias = jnp.zeros((Bc, 1, Sc), jnp.float32)
    elif attention_mask.ndim == 2:
        key_bias = ((1.0 - attention_mask.astype(jnp.float32)) * -10000.0).reshape(Bc, 1, Sc)
    else:
        # TODO(synk): 3-D (bsz, seq, seq) attention masks / is_decoder causal masks not implemented.
        raise NotImplementedError("only 2-D (bsz, seq) attention masks supported")

    weight_names = ("wqkv", "bqkv", "wo", "bo", "wi", "bi", "wo2", "bo2", "ln")
    weight_inputs = [params[name] for name in weight_names]
    # Whole stacked (L, ...) weight arrays resident in VMEM (constant block index):
    # fetched once for the whole call instead of streamed per layer.
    weight_specs = [pl.BlockSpec(w.shape, lambda b: (0, 0, 0)) for w in weight_inputs]

    kernel = functools.partial(
        encoder_kernel, num_layers=L, num_heads=nh, head_dim=H // nh, eps=eps)

    out = pl.pallas_call(
        kernel,
        out_shape=jax.ShapeDtypeStruct((Bc, Sc, H), jnp.float32),
        grid=(Bc,),  # one batch element per step; "parallel" -> one per TensorCore on v7x
        in_specs=[
            pl.BlockSpec((1, Sc, H), lambda b: (b, 0, 0)),   # hidden states, per batch element
            pl.BlockSpec((1, 1, Sc), lambda b: (b, 0, 0)),   # per-key additive mask bias
            *weight_specs,
        ],
        out_specs=pl.BlockSpec((1, Sc, H), lambda b: (b, 0, 0)),
        compiler_params=pltpu.CompilerParams(dimension_semantics=("parallel",)),
    )(hidden_states.astype(jnp.float32), key_bias, *weight_inputs)

    # TODO(synk): head_mask, cross-attention, output_attentions / output_hidden_states extras,
    #             and training-mode dropout are not implemented (default eval forward path only).
    return (out,)


# ----------------------------- parameter init (deterministic, module-style) -----------------------------
def init_encoder_params(key, *, num_layers, hidden_size, intermediate_size, initializer_range):
    L, H, I = num_layers, hidden_size, intermediate_size
    std = initializer_range
    ks = jax.random.split(key, 6)

    def normal(k, shape):
        return jax.random.normal(k, shape, jnp.float32) * std

    # Linear weights stored as (in, out); all f32 (matches the all-f32 torch module).
    wq = normal(ks[0], (L, H, H))
    wk = normal(ks[1], (L, H, H))
    wv = normal(ks[2], (L, H, H))
    ln_rows = jnp.stack(
        [jnp.ones((L, H)), jnp.zeros((L, H)), jnp.ones((L, H)), jnp.zeros((L, H))], axis=1
    ).astype(jnp.float32)                                           # (L, 4, H)
    return dict(
        wqkv=jnp.concatenate([wq, wk, wv], axis=-1),                # (L, H, 3H)
        bqkv=jnp.zeros((L, 1, 3 * H), jnp.float32),
        wo=normal(ks[3], (L, H, H)),
        bo=jnp.zeros((L, 1, H), jnp.float32),
        wi=normal(ks[4], (L, H, I)),
        bi=jnp.zeros((L, 1, I), jnp.float32),
        wo2=normal(ks[5], (L, I, H)),
        bo2=jnp.zeros((L, 1, H), jnp.float32),
        ln=ln_rows,
    )


# ----------------------------- main -----------------------------
if __name__ == "__main__":
    key = jax.random.PRNGKey(0)
    k_x, k_p = jax.random.split(key)

    H = CONFIG["hidden_size"]
    hidden_states = jax.random.normal(k_x, (B, S, H), jnp.float32)

    params = init_encoder_params(
        k_p,
        num_layers=CONFIG["num_hidden_layers"],
        hidden_size=H,
        intermediate_size=CONFIG["intermediate_size"],
        initializer_range=CONFIG["initializer_range"],
    )

    (out,) = transformer_encoder(hidden_states, None, params, CONFIG)
    out = jax.block_until_ready(out)
    assert out.shape == (B, S, H) and out.dtype == jnp.float32
    assert bool(jnp.all(jnp.isfinite(out)))
    print("KERNEL_OK")
</pallas_src>

<mosaic_0001>
module attributes {stable_mosaic.version = 11 : i64} {
  func.func @encoder_kernel(%arg0: i32, %arg1: memref<1x8x32xf32, #tpu.memory_space<vmem>>, %arg2: memref<1x1x8xf32, #tpu.memory_space<vmem>>, %arg3: memref<2x32x96xf32, #tpu.memory_space<vmem>>, %arg4: memref<2x1x96xf32, #tpu.memory_space<vmem>>, %arg5: memref<2x32x32xf32, #tpu.memory_space<vmem>>, %arg6: memref<2x1x32xf32, #tpu.memory_space<vmem>>, %arg7: memref<2x32x64xf32, #tpu.memory_space<vmem>>, %arg8: memref<2x1x64xf32, #tpu.memory_space<vmem>>, %arg9: memref<2x64x32xf32, #tpu.memory_space<vmem>>, %arg10: memref<2x1x32xf32, #tpu.memory_space<vmem>>, %arg11: memref<2x4x32xf32, #tpu.memory_space<vmem>>, %arg12: memref<1x8x32xf32, #tpu.memory_space<vmem>>) attributes {dimension_semantics = [#tpu.dimension_semantics<parallel>], iteration_bounds = array<i64: 2>, scalar_prefetch = 0 : i64, scratch_operands = 0 : i64, tpu.core_type = #tpu.core_type<tc>, window_params = [{transform_indices = @transform_0, window_bounds = array<i64: 1, 8, 32>}, {transform_indices = @transform_1, window_bounds = array<i64: 1, 1, 8>}, {pipeline_mode = #tpu.pipeline_mode<synchronous>, transform_indices = @transform_2, window_bounds = array<i64: 2, 32, 96>}, {pipeline_mode = #tpu.pipeline_mode<synchronous>, transform_indices = @transform_3, window_bounds = array<i64: 2, 1, 96>}, {pipeline_mode = #tpu.pipeline_mode<synchronous>, transform_indices = @transform_4, window_bounds = array<i64: 2, 32, 32>}, {pipeline_mode = #tpu.pipeline_mode<synchronous>, transform_indices = @transform_5, window_bounds = array<i64: 2, 1, 32>}, {pipeline_mode = #tpu.pipeline_mode<synchronous>, transform_indices = @transform_6, window_bounds = array<i64: 2, 32, 64>}, {pipeline_mode = #tpu.pipeline_mode<synchronous>, transform_indices = @transform_7, window_bounds = array<i64: 2, 1, 64>}, {pipeline_mode = #tpu.pipeline_mode<synchronous>, transform_indices = @transform_8, window_bounds = array<i64: 2, 64, 32>}, {pipeline_mode = #tpu.pipeline_mode<synchronous>, transform_indices = @transform_9, window_bounds = array<i64: 2, 1, 32>}, {pipeline_mode = #tpu.pipeline_mode<synchronous>, transform_indices = @transform_10, window_bounds = array<i64: 2, 4, 32>}, {transform_indices = @transform_11, window_bounds = array<i64: 1, 8, 32>}]} {
    %c0 = arith.constant 0 : index
    %c0_0 = arith.constant 0 : index
    %c0_1 = arith.constant 0 : index
    %0 = vector.load %arg1[%c0, %c0_0, %c0_1] : memref<1x8x32xf32, #tpu.memory_space<vmem>>, vector<1x8x32xf32>
    %1 = vector.shape_cast %0 : vector<1x8x32xf32> to vector<8x32xf32>
    %c0_2 = arith.constant 0 : index
    %c0_3 = arith.constant 0 : index
    %c0_4 = arith.constant 0 : index
    %2 = vector.load %arg2[%c0_2, %c0_3, %c0_4] : memref<1x1x8xf32, #tpu.memory_space<vmem>>, vector<1x1x8xf32>
    %3 = vector.shape_cast %2 : vector<1x1x8xf32> to vector<1x8xf32>
    %c0_5 = arith.constant 0 : index
    %c0_6 = arith.constant 0 : index
    %c0_7 = arith.constant 0 : index
    %4 = vector.load %arg3[%c0_5, %c0_6, %c0_7] : memref<2x32x96xf32, #tpu.memory_space<vmem>>, vector<1x32x96xf32>
    %5 = vector.shape_cast %4 : vector<1x32x96xf32> to vector<32x96xf32>
    %cst = arith.constant dense<0.000000e+00> : vector<8x96xf32>
    %6 = tpu.matmul %1, %5, %cst {dimension_numbers = #tpu.dot_dimension_numbers<[1], [0], [0], [1], [0, 0, 1, 1], [], []>} : vector<8x32xf32>, vector<32x96xf32>, vector<8x96xf32> -> vector<8x96xf32>
    %c0_8 = arith.constant 0 : index
    %c0_9 = arith.constant 0 : index
    %c0_10 = arith.constant 0 : index
    %7 = vector.load %arg4[%c0_8, %c0_9, %c0_10] : memref<2x1x96xf32, #tpu.memory_space<vmem>>, vector<1x1x96xf32>
    %8 = vector.shape_cast %7 : vector<1x1x96xf32> to vector<1x96xf32>
    %9 = vector.broadcast %8 : vector<1x96xf32> to vector<8x96xf32>
    %10 = arith.addf %6, %9 : vector<8x96xf32>
    %11 = vector.extract_strided_slice %10 {offsets = [0, 0], sizes = [8, 32], strides = [1, 1]} : vector<8x96xf32> to vector<8x32xf32>
    %cst_11 = arith.constant 0.353553385 : f32
    %12 = vector.broadcast %cst_11 : f32 to vector<8x32xf32>
    %13 = arith.mulf %11, %12 : vector<8x32xf32>
    %14 = vector.extract_strided_slice %10 {offsets = [0, 32], sizes = [8, 32], strides = [1, 1]} : vector<8x96xf32> to vector<8x32xf32>
    %15 = vector.extract_strided_slice %10 {offsets = [0, 64], sizes = [8, 32], strides = [1, 1]} : vector<8x96xf32> to vector<8x32xf32>
    %16 = vector.extract_strided_slice %13 {offsets = [0, 0], sizes = [8, 8], strides = [1, 1]} : vector<8x32xf32> to vector<8x8xf32>
    %17 = vector.extract_strided_slice %14 {offsets = [0, 0], sizes = [8, 8], strides = [1, 1]} : vector<8x32xf32> to vector<8x8xf32>
    %18 = vector.extract_strided_slice %15 {offsets = [0, 0], sizes = [8, 8], strides = [1, 1]} : vector<8x32xf32> to vector<8x8xf32>
    %cst_12 = arith.constant dense<0.000000e+00> : vector<8x8xf32>
    %19 = tpu.matmul %16, %17, %cst_12 {dimension_numbers = #tpu.dot_dimension_numbers<[1], [1], [0], [0], [0, 0, 1, 0], [], []>} : vector<8x8xf32>, vector<8x8xf32>, vector<8x8xf32> -> vector<8x8xf32>
    %20 = vector.broadcast %3 : vector<1x8xf32> to vector<8x8xf32>
    %21 = arith.addf %19, %20 : vector<8x8xf32>
    %cst_13 = arith.constant dense<0xFF800000> : vector<8xf32>
    %22 = vector.multi_reduction <maximumf>, %21, %cst_13 [1] : vector<8x8xf32> to vector<8xf32>
    %23 = vector.shape_cast %22 : vector<8xf32> to vector<8x1xf32>
    %24 = vector.broadcast %23 : vector<8x1xf32> to vector<8x8xf32>
    %25 = arith.subf %21, %24 : vector<8x8xf32>
    %26 = math.exp %25 : vector<8x8xf32>
    %cst_14 = arith.constant dense<0.000000e+00> : vector<8xf32>
    %27 = vector.multi_reduction <add>, %26, %cst_14 [1] : vector<8x8xf32> to vector<8xf32>
    %28 = vector.shape_cast %27 : vector<8xf32> to vector<8x1xf32>
    %29 = vector.broadcast %28 : vector<8x1xf32> to vector<8x8xf32>
    %30 = arith.divf %26, %29 : vector<8x8xf32>
    %cst_15 = arith.constant dense<0.000000e+00> : vector<8x8xf32>
    %31 = tpu.matmul %30, %18, %cst_15 {dimension_numbers = #tpu.dot_dimension_numbers<[1], [0], [0], [1], [0, 0, 1, 1], [], []>} : vector<8x8xf32>, vector<8x8xf32>, vector<8x8xf32> -> vector<8x8xf32>
    %32 = vector.extract_strided_slice %13 {offsets = [0, 8], sizes = [8, 8], strides = [1, 1]} : vector<8x32xf32> to vector<8x8xf32>
    %33 = vector.extract_strided_slice %14 {offsets = [0, 8], sizes = [8, 8], strides = [1, 1]} : vector<8x32xf32> to vector<8x8xf32>
    %34 = vector.extract_strided_slice %15 {offsets = [0, 8], sizes = [8, 8], strides = [1, 1]} : vector<8x32xf32> to vector<8x8xf32>
    %cst_16 = arith.constant dense<0.000000e+00> : vector<8x8xf32>
    %35 = tpu.matmul %32, %33, %cst_16 {dimension_numbers = #tpu.dot_dimension_numbers<[1], [1], [0], [0], [0, 0, 1, 0], [], []>} : vector<8x8xf32>, vector<8x8xf32>, vector<8x8xf32> -> vector<8x8xf32>
    %36 = vector.broadcast %3 : vector<1x8xf32> to vector<8x8xf32>
    %37 = arith.addf %35, %36 : vector<8x8xf32>
    %cst_17 = arith.constant dense<0xFF800000> : vector<8xf32>
    %38 = vector.multi_reduction <maximumf>, %37, %cst_17 [1] : vector<8x8xf32> to vector<8xf32>
    %39 = vector.shape_cast %38 : vector<8xf32> to vector<8x1xf32>
    %40 = vector.broadcast %39 : vector<8x1xf32> to vector<8x8xf32>
    %41 = arith.subf %37, %40 : vector<8x8xf32>
    %42 = math.exp %41 : vector<8x8xf32>
    %cst_18 = arith.constant dense<0.000000e+00> : vector<8xf32>
    %43 = vector.multi_reduction <add>, %42, %cst_18 [1] : vector<8x8xf32> to vector<8xf32>
    %44 = vector.shape_cast %43 : vector<8xf32> to vector<8x1xf32>
    %45 = vector.broadcast %44 : vector<8x1xf32> to vector<8x8xf32>
    %46 = arith.divf %42, %45 : vector<8x8xf32>
    %cst_19 = arith.constant dense<0.000000e+00> : vector<8x8xf32>
    %47 = tpu.matmul %46, %34, %cst_19 {dimension_numbers = #tpu.dot_dimension_numbers<[1], [0], [0], [1], [0, 0, 1, 1], [], []>} : vector<8x8xf32>, vector<8x8xf32>, vector<8x8xf32> -> vector<8x8xf32>
    %48 = vector.extract_strided_slice %13 {offsets = [0, 16], sizes = [8, 8], strides = [1, 1]} : vector<8x32xf32> to vector<8x8xf32>
    %49 = vector.extract_strided_slice %14 {offsets = [0, 16], sizes = [8, 8], strides = [1, 1]} : vector<8x32xf32> to vector<8x8xf32>
    %50 = vector.extract_strided_slice %15 {offsets = [0, 16], sizes = [8, 8], strides = [1, 1]} : vector<8x32xf32> to vector<8x8xf32>
    %cst_20 = arith.constant dense<0.000000e+00> : vector<8x8xf32>
    %51 = tpu.matmul %48, %49, %cst_20 {dimension_numbers = #tpu.dot_dimension_numbers<[1], [1], [0], [0], [0, 0, 1, 0], [], []>} : vector<8x8xf32>, vector<8x8xf32>, vector<8x8xf32> -> vector<8x8xf32>
    %52 = vector.broadcast %3 : vector<1x8xf32> to vector<8x8xf32>
    %53 = arith.addf %51, %52 : vector<8x8xf32>
    %cst_21 = arith.constant dense<0xFF800000> : vector<8xf32>
    %54 = vector.multi_reduction <maximumf>, %53, %cst_21 [1] : vector<8x8xf32> to vector<8xf32>
    %55 = vector.shape_cast %54 : vector<8xf32> to vector<8x1xf32>
    %56 = vector.broadcast %55 : vector<8x1xf32> to vector<8x8xf32>
    %57 = arith.subf %53, %56 : vector<8x8xf32>
    %58 = math.exp %57 : vector<8x8xf32>
    %cst_22 = arith.constant dense<0.000000e+00> : vector<8xf32>
    %59 = vector.multi_reduction <add>, %58, %cst_22 [1] : vector<8x8xf32> to vector<8xf32>
    %60 = vector.shape_cast %59 : vector<8xf32> to vector<8x1xf32>
    %61 = vector.broadcast %60 : vector<8x1xf32> to vector<8x8xf32>
    %62 = arith.divf %58, %61 : vector<8x8xf32>
    %cst_23 = arith.constant dense<0.000000e+00> : vector<8x8xf32>
    %63 = tpu.matmul %62, %50, %cst_23 {dimension_numbers = #tpu.dot_dimension_numbers<[1], [0], [0], [1], [0, 0, 1, 1], [], []>} : vector<8x8xf32>, vector<8x8xf32>, vector<8x8xf32> -> vector<8x8xf32>
    %64 = vector.extract_strided_slice %13 {offsets = [0, 24], sizes = [8, 8], strides = [1, 1]} : vector<8x32xf32> to vector<8x8xf32>
    %65 = vector.extract_strided_slice %14 {offsets = [0, 24], sizes = [8, 8], strides = [1, 1]} : vector<8x32xf32> to vector<8x8xf32>
    %66 = vector.extract_strided_slice %15 {offsets = [0, 24], sizes = [8, 8], strides = [1, 1]} : vector<8x32xf32> to vector<8x8xf32>
    %cst_24 = arith.constant dense<0.000000e+00> : vector<8x8xf32>
    %67 = tpu.matmul %64, %65, %cst_24 {dimension_numbers = #tpu.dot_dimension_numbers<[1], [1], [0], [0], [0, 0, 1, 0], [], []>} : vector<8x8xf32>, vector<8x8xf32>, vector<8x8xf32> -> vector<8x8xf32>
    %68 = vector.broadcast %3 : vector<1x8xf32> to vector<8x8xf32>
    %69 = arith.addf %67, %68 : vector<8x8xf32>
    %cst_25 = arith.constant dense<0xFF800000> : vector<8xf32>
    %70 = vector.multi_reduction <maximumf>, %69, %cst_25 [1] : vector<8x8xf32> to vector<8xf32>
    %71 = vector.shape_cast %70 : vector<8xf32> to vector<8x1xf32>
    %72 = vector.broadcast %71 : vector<8x1xf32> to vector<8x8xf32>
    %73 = arith.subf %69, %72 : vector<8x8xf32>
    %74 = math.exp %73 : vector<8x8xf32>
    %cst_26 = arith.constant dense<0.000000e+00> : vector<8xf32>
    %75 = vector.multi_reduction <add>, %74, %cst_26 [1] : vector<8x8xf32> to vector<8xf32>
    %76 = vector.shape_cast %75 : vector<8xf32> to vector<8x1xf32>
    %77 = vector.broadcast %76 : vector<8x1xf32> to vector<8x8xf32>
    %78 = arith.divf %74, %77 : vector<8x8xf32>
    %cst_27 = arith.constant dense<0.000000e+00> : vector<8x8xf32>
    %79 = tpu.matmul %78, %66, %cst_27 {dimension_numbers = #tpu.dot_dimension_numbers<[1], [0], [0], [1], [0, 0, 1, 1], [], []>} : vector<8x8xf32>, vector<8x8xf32>, vector<8x8xf32> -> vector<8x8xf32>
    %80 = tpu.concatenate %31, %47, %63, %79 in 1 : vector<8x8xf32>, vector<8x8xf32>, vector<8x8xf32>, vector<8x8xf32> -> vector<8x32xf32>
    %c0_28 = arith.constant 0 : index
    %c0_29 = arith.constant 0 : index
    %c0_30 = arith.constant 0 : index
    %81 = vector.load %arg11[%c0_28, %c0_29, %c0_30] : memref<2x4x32xf32, #tpu.memory_space<vmem>>, vector<1x4x32xf32>
    %82 = vector.shape_cast %81 : vector<1x4x32xf32> to vector<4x32xf32>
    %c0_31 = arith.constant 0 : index
    %c0_32 = arith.constant 0 : index
    %c0_33 = arith.constant 0 : index
    %83 = vector.load %arg5[%c0_31, %c0_32, %c0_33] : memref<2x32x32xf32, #tpu.memory_space<vmem>>, vector<1x32x32xf32>
    %84 = vector.shape_cast %83 : vector<1x32x32xf32> to vector<32x32xf32>
    %cst_34 = arith.constant dense<0.000000e+00> : vector<8x32xf32>
    %85 = tpu.matmul %80, %84, %cst_34 {dimension_numbers = #tpu.dot_dimension_numbers<[1], [0], [0], [1], [0, 0, 1, 1], [], []>} : vector<8x32xf32>, vector<32x32xf32>, vector<8x32xf32> -> vector<8x32xf32>
    %c0_35 = arith.constant 0 : index
    %c0_36 = arith.constant 0 : index
    %c0_37 = arith.constant 0 : index
    %86 = vector.load %arg6[%c0_35, %c0_36, %c0_37] : memref<2x1x32xf32, #tpu.memory_space<vmem>>, vector<1x1x32xf32>
    %87 = vector.shape_cast %86 : vector<1x1x32xf32> to vector<1x32xf32>
    %88 = vector.broadcast %87 : vector<1x32xf32> to vector<8x32xf32>
    %89 = arith.addf %85, %88 : vector<8x32xf32>
    %90 = arith.addf %89, %1 : vector<8x32xf32>
    %91 = vector.extract_strided_slice %82 {offsets = [0, 0], sizes = [1, 32], strides = [1, 1]} : vector<4x32xf32> to vector<1x32xf32>
    %92 = vector.extract_strided_slice %82 {offsets = [1, 0], sizes = [1, 32], strides = [1, 1]} : vector<4x32xf32> to vector<1x32xf32>
    %cst_38 = arith.constant dense<0.000000e+00> : vector<8xf32>
    %93 = vector.multi_reduction <add>, %90, %cst_38 [1] : vector<8x32xf32> to vector<8xf32>
    %94 = vector.shape_cast %93 : vector<8xf32> to vector<8x1xf32>
    %cst_39 = arith.constant 3.200000e+01 : f32
    %95 = vector.broadcast %cst_39 : f32 to vector<8x1xf32>
    %96 = arith.divf %94, %95 : vector<8x1xf32>
    %97 = vector.broadcast %96 : vector<8x1xf32> to vector<8x32xf32>
    %98 = arith.subf %90, %97 : vector<8x32xf32>
    %99 = arith.mulf %98, %98 : vector<8x32xf32>
    %cst_40 = arith.constant dense<0.000000e+00> : vector<8xf32>
    %100 = vector.multi_reduction <add>, %99, %cst_40 [1] : vector<8x32xf32> to vector<8xf32>
    %101 = vector.shape_cast %100 : vector<8xf32> to vector<8x1xf32>
    %cst_41 = arith.constant 3.200000e+01 : f32
    %102 = vector.broadcast %cst_41 : f32 to vector<8x1xf32>
    %103 = arith.divf %101, %102 : vector<8x1xf32>
    %104 = vector.broadcast %96 : vector<8x1xf32> to vector<8x32xf32>
    %105 = arith.subf %90, %104 : vector<8x32xf32>
    %cst_42 = arith.constant 9.99999996E-13 : f32
    %106 = vector.broadcast %cst_42 : f32 to vector<8x1xf32>
    %107 = arith.addf %103, %106 : vector<8x1xf32>
    %108 = math.rsqrt %107 : vector<8x1xf32>
    %109 = vector.broadcast %108 : vector<8x1xf32> to vector<8x32xf32>
    %110 = arith.mulf %105, %109 : vector<8x32xf32>
    %111 = vector.broadcast %91 : vector<1x32xf32> to vector<8x32xf32>
    %112 = arith.mulf %110, %111 : vector<8x32xf32>
    %113 = vector.broadcast %92 : vector<1x32xf32> to vector<8x32xf32>
    %114 = arith.addf %112, %113 : vector<8x32xf32>
    %c0_43 = arith.constant 0 : index
    %c0_44 = arith.constant 0 : index
    %c0_45 = arith.constant 0 : index
    %115 = vector.load %arg7[%c0_43, %c0_44, %c0_45] : memref<2x32x64xf32, #tpu.memory_space<vmem>>, vector<1x32x64xf32>
    %116 = vector.shape_cast %115 : vector<1x32x64xf32> to vector<32x64xf32>
    %cst_46 = arith.constant dense<0.000000e+00> : vector<8x64xf32>
    %117 = tpu.matmul %114, %116, %cst_46 {dimension_numbers = #tpu.dot_dimension_numbers<[1], [0], [0], [1], [0, 0, 1, 1], [], []>} : vector<8x32xf32>, vector<32x64xf32>, vector<8x64xf32> -> vector<8x64xf32>
    %c0_47 = arith.constant 0 : index
    %c0_48 = arith.constant 0 : index
    %c0_49 = arith.constant 0 : index
    %118 = vector.load %arg8[%c0_47, %c0_48, %c0_49] : memref<2x1x64xf32, #tpu.memory_space<vmem>>, vector<1x1x64xf32>
    %119 = vector.shape_cast %118 : vector<1x1x64xf32> to vector<1x64xf32>
    %120 = vector.broadcast %119 : vector<1x64xf32> to vector<8x64xf32>
    %121 = arith.addf %117, %120 : vector<8x64xf32>
    %cst_50 = arith.constant 5.000000e-01 : f32
    %122 = vector.broadcast %cst_50 : f32 to vector<8x64xf32>
    %123 = arith.mulf %122, %121 : vector<8x64xf32>
    %cst_51 = arith.constant 0.707106769 : f32
    %124 = vector.broadcast %cst_51 : f32 to vector<8x64xf32>
    %125 = arith.mulf %121, %124 : vector<8x64xf32>
    %cst_52 = arith.constant 0.000000e+00 : f32
    %126 = vector.broadcast %cst_52 : f32 to vector<8x64xf32>
    %127 = arith.cmpf oge, %125, %126 : vector<8x64xf32>
    %cst_53 = arith.constant 1.000000e+00 : f32
    %cst_54 = arith.constant -1.000000e+00 : f32
    %128 = vector.broadcast %cst_53 : f32 to vector<8x64xf32>
    %129 = vector.broadcast %cst_54 : f32 to vector<8x64xf32>
    %130 = arith.select %127, %128, %129 : vector<8x64xi1>, vector<8x64xf32>
    %131 = math.absf %125 : vector<8x64xf32>
    %cst_55 = arith.constant 0.327591091 : f32
    %132 = vector.broadcast %cst_55 : f32 to vector<8x64xf32>
    %133 = arith.mulf %132, %131 : vector<8x64xf32>
    %cst_56 = arith.constant 1.000000e+00 : f32
    %134 = vector.broadcast %cst_56 : f32 to vector<8x64xf32>
    %135 = arith.addf %134, %133 : vector<8x64xf32>
    %cst_57 = arith.constant 1.000000e+00 : f32
    %136 = vector.broadcast %cst_57 : f32 to vector<8x64xf32>
    %137 = arith.divf %136, %135 : vector<8x64xf32>
    %cst_58 = arith.constant 1.06140542 : f32
    %138 = vector.broadcast %cst_58 : f32 to vector<8x64xf32>
    %139 = arith.mulf %138, %137 : vector<8x64xf32>
    %cst_59 = arith.constant -1.45315206 : f32
    %140 = vector.broadcast %cst_59 : f32 to vector<8x64xf32>
    %141 = arith.addf %139, %140 : vector<8x64xf32>
    %142 = arith.mulf %141, %137 : vector<8x64xf32>
    %cst_60 = arith.constant 1.42141378 : f32
    %143 = vector.broadcast %cst_60 : f32 to vector<8x64xf32>
    %144 = arith.addf %142, %143 : vector<8x64xf32>
    %145 = arith.mulf %144, %137 : vector<8x64xf32>
    %cst_61 = arith.constant -0.284496725 : f32
    %146 = vector.broadcast %cst_61 : f32 to vector<8x64xf32>
    %147 = arith.addf %145, %146 : vector<8x64xf32>
    %148 = arith.mulf %147, %137 : vector<8x64xf32>
    %cst_62 = arith.constant 0.254829586 : f32
    %149 = vector.broadcast %cst_62 : f32 to vector<8x64xf32>
    %150 = arith.addf %148, %149 : vector<8x64xf32>
    %151 = arith.mulf %150, %137 : vector<8x64xf32>
    %cst_63 = arith.constant 0.000000e+00 : f32
    %152 = vector.broadcast %cst_63 : f32 to vector<8x64xf32>
    %153 = arith.subf %152, %131 : vector<8x64xf32>
    %154 = arith.mulf %153, %131 : vector<8x64xf32>
    %155 = math.exp %154 : vector<8x64xf32>
    %156 = arith.mulf %151, %155 : vector<8x64xf32>
    %cst_64 = arith.constant 1.000000e+00 : f32
    %157 = vector.broadcast %cst_64 : f32 to vector<8x64xf32>
    %158 = arith.subf %157, %156 : vector<8x64xf32>
    %159 = arith.mulf %130, %158 : vector<8x64xf32>
    %cst_65 = arith.constant 1.000000e+00 : f32
    %160 = vector.broadcast %cst_65 : f32 to vector<8x64xf32>
    %161 = arith.addf %160, %159 : vector<8x64xf32>
    %162 = arith.mulf %123, %161 : vector<8x64xf32>
    %c0_66 = arith.constant 0 : index
    %c0_67 = arith.constant 0 : index
    %c0_68 = arith.constant 0 : index
    %163 = vector.load %arg9[%c0_66, %c0_67, %c0_68] : memref<2x64x32xf32, #tpu.memory_space<vmem>>, vector<1x64x32xf32>
    %164 = vector.shape_cast %163 : vector<1x64x32xf32> to vector<64x32xf32>
    %cst_69 = arith.constant dense<0.000000e+00> : vector<8x32xf32>
    %165 = tpu.matmul %162, %164, %cst_69 {dimension_numbers = #tpu.dot_dimension_numbers<[1], [0], [0], [1], [0, 0, 1, 1], [], []>} : vector<8x64xf32>, vector<64x32xf32>, vector<8x32xf32> -> vector<8x32xf32>
    %c0_70 = arith.constant 0 : index
    %c0_71 = arith.constant 0 : index
    %c0_72 = arith.constant 0 : index
    %166 = vector.load %arg10[%c0_70, %c0_71, %c0_72] : memref<2x1x32xf32, #tpu.memory_space<vmem>>, vector<1x1x32xf32>
    %167 = vector.shape_cast %166 : vector<1x1x32xf32> to vector<1x32xf32>
    %168 = vector.broadcast %167 : vector<1x32xf32> to vector<8x32xf32>
    %169 = arith.addf %165, %168 : vector<8x32xf32>
    %170 = arith.addf %169, %114 : vector<8x32xf32>
    %171 = vector.extract_strided_slice %82 {offsets = [2, 0], sizes = [1, 32], strides = [1, 1]} : vector<4x32xf32> to vector<1x32xf32>
    %172 = vector.extract_strided_slice %82 {offsets = [3, 0], sizes = [1, 32], strides = [1, 1]} : vector<4x32xf32> to vector<1x32xf32>
    %cst_73 = arith.constant dense<0.000000e+00> : vector<8xf32>
    %173 = vector.multi_reduction <add>, %170, %cst_73 [1] : vector<8x32xf32> to vector<8xf32>
    %174 = vector.shape_cast %173 : vector<8xf32> to vector<8x1xf32>
    %cst_74 = arith.constant 3.200000e+01 : f32
    %175 = vector.broadcast %cst_74 : f32 to vector<8x1xf32>
    %176 = arith.divf %174, %175 : vector<8x1xf32>
    %177 = vector.broadcast %176 : vector<8x1xf32> to vector<8x32xf32>
    %178 = arith.subf %170, %177 : vector<8x32xf32>
    %179 = arith.mulf %178, %178 : vector<8x32xf32>
    %cst_75 = arith.constant dense<0.000000e+00> : vector<8xf32>
    %180 = vector.multi_reduction <add>, %179, %cst_75 [1] : vector<8x32xf32> to vector<8xf32>
    %181 = vector.shape_cast %180 : vector<8xf32> to vector<8x1xf32>
    %cst_76 = arith.constant 3.200000e+01 : f32
    %182 = vector.broadcast %cst_76 : f32 to vector<8x1xf32>
    %183 = arith.divf %181, %182 : vector<8x1xf32>
    %184 = vector.broadcast %176 : vector<8x1xf32> to vector<8x32xf32>
    %185 = arith.subf %170, %184 : vector<8x32xf32>
    %cst_77 = arith.constant 9.99999996E-13 : f32
    %186 = vector.broadcast %cst_77 : f32 to vector<8x1xf32>
    %187 = arith.addf %183, %186 : vector<8x1xf32>
    %188 = math.rsqrt %187 : vector<8x1xf32>
    %189 = vector.broadcast %188 : vector<8x1xf32> to vector<8x32xf32>
    %190 = arith.mulf %185, %189 : vector<8x32xf32>
    %191 = vector.broadcast %171 : vector<1x32xf32> to vector<8x32xf32>
    %192 = arith.mulf %190, %191 : vector<8x32xf32>
    %193 = vector.broadcast %172 : vector<1x32xf32> to vector<8x32xf32>
    %194 = arith.addf %192, %193 : vector<8x32xf32>
    %c1 = arith.constant 1 : index
    %c0_78 = arith.constant 0 : index
    %c0_79 = arith.constant 0 : index
    %195 = vector.load %arg3[%c1, %c0_78, %c0_79] : memref<2x32x96xf32, #tpu.memory_space<vmem>>, vector<1x32x96xf32>
    %196 = vector.shape_cast %195 : vector<1x32x96xf32> to vector<32x96xf32>
    %cst_80 = arith.constant dense<0.000000e+00> : vector<8x96xf32>
    %197 = tpu.matmul %194, %196, %cst_80 {dimension_numbers = #tpu.dot_dimension_numbers<[1], [0], [0], [1], [0, 0, 1, 1], [], []>} : vector<8x32xf32>, vector<32x96xf32>, vector<8x96xf32> -> vector<8x96xf32>
    %c1_81 = arith.constant 1 : index
    %c0_82 = arith.constant 0 : index
    %c0_83 = arith.constant 0 : index
    %198 = vector.load %arg4[%c1_81, %c0_82, %c0_83] : memref<2x1x96xf32, #tpu.memory_space<vmem>>, vector<1x1x96xf32>
    %199 = vector.shape_cast %198 : vector<1x1x96xf32> to vector<1x96xf32>
    %200 = vector.broadcast %199 : vector<1x96xf32> to vector<8x96xf32>
    %201 = arith.addf %197, %200 : vector<8x96xf32>
    %202 = vector.extract_strided_slice %201 {offsets = [0, 0], sizes = [8, 32], strides = [1, 1]} : vector<8x96xf32> to vector<8x32xf32>
    %cst_84 = arith.constant 0.353553385 : f32
    %203 = vector.broadcast %cst_84 : f32 to vector<8x32xf32>
    %204 = arith.mulf %202, %203 : vector<8x32xf32>
    %205 = vector.extract_strided_slice %201 {offsets = [0, 32], sizes = [8, 32], strides = [1, 1]} : vector<8x96xf32> to vector<8x32xf32>
    %206 = vector.extract_strided_slice %201 {offsets = [0, 64], sizes = [8, 32], strides = [1, 1]} : vector<8x96xf32> to vector<8x32xf32>
    %207 = vector.extract_strided_slice %204 {offsets = [0, 0], sizes = [8, 8], strides = [1, 1]} : vector<8x32xf32> to vector<8x8xf32>
    %208 = vector.extract_strided_slice %205 {offsets = [0, 0], sizes = [8, 8], strides = [1, 1]} : vector<8x32xf32> to vector<8x8xf32>
    %209 = vector.extract_strided_slice %206 {offsets = [0, 0], sizes = [8, 8], strides = [1, 1]} : vector<8x32xf32> to vector<8x8xf32>
    %cst_85 = arith.constant dense<0.000000e+00> : vector<8x8xf32>
    %210 = tpu.matmul %207, %208, %cst_85 {dimension_numbers = #tpu.dot_dimension_numbers<[1], [1], [0], [0], [0, 0, 1, 0], [], []>} : vector<8x8xf32>, vector<8x8xf32>, vector<8x8xf32> -> vector<8x8xf32>
    %211 = vector.broadcast %3 : vector<1x8xf32> to vector<8x8xf32>
    %212 = arith.addf %210, %211 : vector<8x8xf32>
    %cst_86 = arith.constant dense<0xFF800000> : vector<8xf32>
    %213 = vector.multi_reduction <maximumf>, %212, %cst_86 [1] : vector<8x8xf32> to vector<8xf32>
    %214 = vector.shape_cast %213 : vector<8xf32> to vector<8x1xf32>
    %215 = vector.broadcast %214 : vector<8x1xf32> to vector<8x8xf32>
    %216 = arith.subf %212, %215 : vector<8x8xf32>
    %217 = math.exp %216 : vector<8x8xf32>
    %cst_87 = arith.constant dense<0.000000e+00> : vector<8xf32>
    %218 = vector.multi_reduction <add>, %217, %cst_87 [1] : vector<8x8xf32> to vector<8xf32>
    %219 = vector.shape_cast %218 : vector<8xf32> to vector<8x1xf32>
    %220 = vector.broadcast %219 : vector<8x1xf32> to vector<8x8xf32>
    %221 = arith.divf %217, %220 : vector<8x8xf32>
    %cst_88 = arith.constant dense<0.000000e+00> : vector<8x8xf32>
    %222 = tpu.matmul %221, %209, %cst_88 {dimension_numbers = #tpu.dot_dimension_numbers<[1], [0], [0], [1], [0, 0, 1, 1], [], []>} : vector<8x8xf32>, vector<8x8xf32>, vector<8x8xf32> -> vector<8x8xf32>
    %223 = vector.extract_strided_slice %204 {offsets = [0, 8], sizes = [8, 8], strides = [1, 1]} : vector<8x32xf32> to vector<8x8xf32>
    %224 = vector.extract_strided_slice %205 {offsets = [0, 8], sizes = [8, 8], strides = [1, 1]} : vector<8x32xf32> to vector<8x8xf32>
    %225 = vector.extract_strided_slice %206 {offsets = [0, 8], sizes = [8, 8], strides = [1, 1]} : vector<8x32xf32> to vector<8x8xf32>
    %cst_89 = arith.constant dense<0.000000e+00> : vector<8x8xf32>
    %226 = tpu.matmul %223, %224, %cst_89 {dimension_numbers = #tpu.dot_dimension_numbers<[1], [1], [0], [0], [0, 0, 1, 0], [], []>} : vector<8x8xf32>, vector<8x8xf32>, vector<8x8xf32> -> vector<8x8xf32>
    %227 = vector.broadcast %3 : vector<1x8xf32> to vector<8x8xf32>
    %228 = arith.addf %226, %227 : vector<8x8xf32>
    %cst_90 = arith.constant dense<0xFF800000> : vector<8xf32>
    %229 = vector.multi_reduction <maximumf>, %228, %cst_90 [1] : vector<8x8xf32> to vector<8xf32>
    %230 = vector.shape_cast %229 : vector<8xf32> to vector<8x1xf32>
    %231 = vector.broadcast %230 : vector<8x1xf32> to vector<8x8xf32>
    %232 = arith.subf %228, %231 : vector<8x8xf32>
    %233 = math.exp %232 : vector<8x8xf32>
    %cst_91 = arith.constant dense<0.000000e+00> : vector<8xf32>
    %234 = vector.multi_reduction <add>, %233, %cst_91 [1] : vector<8x8xf32> to vector<8xf32>
    %235 = vector.shape_cast %234 : vector<8xf32> to vector<8x1xf32>
    %236 = vector.broadcast %235 : vector<8x1xf32> to vector<8x8xf32>
    %237 = arith.divf %233, %236 : vector<8x8xf32>
    %cst_92 = arith.constant dense<0.000000e+00> : vector<8x8xf32>
    %238 = tpu.matmul %237, %225, %cst_92 {dimension_numbers = #tpu.dot_dimension_numbers<[1], [0], [0], [1], [0, 0, 1, 1], [], []>} : vector<8x8xf32>, vector<8x8xf32>, vector<8x8xf32> -> vector<8x8xf32>
    %239 = vector.extract_strided_slice %204 {offsets = [0, 16], sizes = [8, 8], strides = [1, 1]} : vector<8x32xf32> to vector<8x8xf32>
    %240 = vector.extract_strided_slice %205 {offsets = [0, 16], sizes = [8, 8], strides = [1, 1]} : vector<8x32xf32> to vector<8x8xf32>
    %241 = vector.extract_strided_slice %206 {offsets = [0, 16], sizes = [8, 8], strides = [1, 1]} : vector<8x32xf32> to vector<8x8xf32>
    %cst_93 = arith.constant dense<0.000000e+00> : vector<8x8xf32>
    %242 = tpu.matmul %239, %240, %cst_93 {dimension_numbers = #tpu.dot_dimension_numbers<[1], [1], [0], [0], [0, 0, 1, 0], [], []>} : vector<8x8xf32>, vector<8x8xf32>, vector<8x8xf32> -> vector<8x8xf32>
    %243 = vector.broadcast %3 : vector<1x8xf32> to vector<8x8xf32>
    %244 = arith.addf %242, %243 : vector<8x8xf32>
    %cst_94 = arith.constant dense<0xFF800000> : vector<8xf32>
    %245 = vector.multi_reduction <maximumf>, %244, %cst_94 [1] : vector<8x8xf32> to vector<8xf32>
    %246 = vector.shape_cast %245 : vector<8xf32> to vector<8x1xf32>
    %247 = vector.broadcast %246 : vector<8x1xf32> to vector<8x8xf32>
    %248 = arith.subf %244, %247 : vector<8x8xf32>
    %249 = math.exp %248 : vector<8x8xf32>
    %cst_95 = arith.constant dense<0.000000e+00> : vector<8xf32>
    %250 = vector.multi_reduction <add>, %249, %cst_95 [1] : vector<8x8xf32> to vector<8xf32>
    %251 = vector.shape_cast %250 : vector<8xf32> to vector<8x1xf32>
    %252 = vector.broadcast %251 : vector<8x1xf32> to vector<8x8xf32>
    %253 = arith.divf %249, %252 : vector<8x8xf32>
    %cst_96 = arith.constant dense<0.000000e+00> : vector<8x8xf32>
    %254 = tpu.matmul %253, %241, %cst_96 {dimension_numbers = #tpu.dot_dimension_numbers<[1], [0], [0], [1], [0, 0, 1, 1], [], []>} : vector<8x8xf32>, vector<8x8xf32>, vector<8x8xf32> -> vector<8x8xf32>
    %255 = vector.extract_strided_slice %204 {offsets = [0, 24], sizes = [8, 8], strides = [1, 1]} : vector<8x32xf32> to vector<8x8xf32>
    %256 = vector.extract_strided_slice %205 {offsets = [0, 24], sizes = [8, 8], strides = [1, 1]} : vector<8x32xf32> to vector<8x8xf32>
    %257 = vector.extract_strided_slice %206 {offsets = [0, 24], sizes = [8, 8], strides = [1, 1]} : vector<8x32xf32> to vector<8x8xf32>
    %cst_97 = arith.constant dense<0.000000e+00> : vector<8x8xf32>
    %258 = tpu.matmul %255, %256, %cst_97 {dimension_numbers = #tpu.dot_dimension_numbers<[1], [1], [0], [0], [0, 0, 1, 0], [], []>} : vector<8x8xf32>, vector<8x8xf32>, vector<8x8xf32> -> vector<8x8xf32>
    %259 = vector.broadcast %3 : vector<1x8xf32> to vector<8x8xf32>
    %260 = arith.addf %258, %259 : vector<8x8xf32>
    %cst_98 = arith.constant dense<0xFF800000> : vector<8xf32>
    %261 = vector.multi_reduction <maximumf>, %260, %cst_98 [1] : vector<8x8xf32> to vector<8xf32>
    %262 = vector.shape_cast %261 : vector<8xf32> to vector<8x1xf32>
    %263 = vector.broadcast %262 : vector<8x1xf32> to vector<8x8xf32>
    %264 = arith.subf %260, %263 : vector<8x8xf32>
    %265 = math.exp %264 : vector<8x8xf32>
    %cst_99 = arith.constant dense<0.000000e+00> : vector<8xf32>
    %266 = vector.multi_reduction <add>, %265, %cst_99 [1] : vector<8x8xf32> to vector<8xf32>
    %267 = vector.shape_cast %266 : vector<8xf32> to vector<8x1xf32>
    %268 = vector.broadcast %267 : vector<8x1xf32> to vector<8x8xf32>
    %269 = arith.divf %265, %268 : vector<8x8xf32>
    %cst_100 = arith.constant dense<0.000000e+00> : vector<8x8xf32>
    %270 = tpu.matmul %269, %257, %cst_100 {dimension_numbers = #tpu.dot_dimension_numbers<[1], [0], [0], [1], [0, 0, 1, 1], [], []>} : vector<8x8xf32>, vector<8x8xf32>, vector<8x8xf32> -> vector<8x8xf32>
    %271 = tpu.concatenate %222, %238, %254, %270 in 1 : vector<8x8xf32>, vector<8x8xf32>, vector<8x8xf32>, vector<8x8xf32> -> vector<8x32xf32>
    %c1_101 = arith.constant 1 : index
    %c0_102 = arith.constant 0 : index
    %c0_103 = arith.constant 0 : index
    %272 = vector.load %arg11[%c1_101, %c0_102, %c0_103] : memref<2x4x32xf32, #tpu.memory_space<vmem>>, vector<1x4x32xf32>
    %273 = vector.shape_cast %272 : vector<1x4x32xf32> to vector<4x32xf32>
    %c1_104 = arith.constant 1 : index
    %c0_105 = arith.constant 0 : index
    %c0_106 = arith.constant 0 : index
    %274 = vector.load %arg5[%c1_104, %c0_105, %c0_106] : memref<2x32x32xf32, #tpu.memory_space<vmem>>, vector<1x32x32xf32>
    %275 = vector.shape_cast %274 : vector<1x32x32xf32> to vector<32x32xf32>
    %cst_107 = arith.constant dense<0.000000e+00> : vector<8x32xf32>
    %276 = tpu.matmul %271, %275, %cst_107 {dimension_numbers = #tpu.dot_dimension_numbers<[1], [0], [0], [1], [0, 0, 1, 1], [], []>} : vector<8x32xf32>, vector<32x32xf32>, vector<8x32xf32> -> vector<8x32xf32>
    %c1_108 = arith.constant 1 : index
    %c0_109 = arith.constant 0 : index
    %c0_110 = arith.constant 0 : index
    %277 = vector.load %arg6[%c1_108, %c0_109, %c0_110] : memref<2x1x32xf32, #tpu.memory_space<vmem>>, vector<1x1x32xf32>
    %278 = vector.shape_cast %277 : vector<1x1x32xf32> to vector<1x32xf32>
    %279 = vector.broadcast %278 : vector<1x32xf32> to vector<8x32xf32>
    %280 = arith.addf %276, %279 : vector<8x32xf32>
    %281 = arith.addf %280, %194 : vector<8x32xf32>
    %282 = vector.extract_strided_slice %273 {offsets = [0, 0], sizes = [1, 32], strides = [1, 1]} : vector<4x32xf32> to vector<1x32xf32>
    %283 = vector.extract_strided_slice %273 {offsets = [1, 0], sizes = [1, 32], strides = [1, 1]} : vector<4x32xf32> to vector<1x32xf32>
    %cst_111 = arith.constant dense<0.000000e+00> : vector<8xf32>
    %284 = vector.multi_reduction <add>, %281, %cst_111 [1] : vector<8x32xf32> to vector<8xf32>
    %285 = vector.shape_cast %284 : vector<8xf32> to vector<8x1xf32>
    %cst_112 = arith.constant 3.200000e+01 : f32
    %286 = vector.broadcast %cst_112 : f32 to vector<8x1xf32>
    %287 = arith.divf %285, %286 : vector<8x1xf32>
    %288 = vector.broadcast %287 : vector<8x1xf32> to vector<8x32xf32>
    %289 = arith.subf %281, %288 : vector<8x32xf32>
    %290 = arith.mulf %289, %289 : vector<8x32xf32>
    %cst_113 = arith.constant dense<0.000000e+00> : vector<8xf32>
    %291 = vector.multi_reduction <add>, %290, %cst_113 [1] : vector<8x32xf32> to vector<8xf32>
    %292 = vector.shape_cast %291 : vector<8xf32> to vector<8x1xf32>
    %cst_114 = arith.constant 3.200000e+01 : f32
    %293 = vector.broadcast %cst_114 : f32 to vector<8x1xf32>
    %294 = arith.divf %292, %293 : vector<8x1xf32>
    %295 = vector.broadcast %287 : vector<8x1xf32> to vector<8x32xf32>
    %296 = arith.subf %281, %295 : vector<8x32xf32>
    %cst_115 = arith.constant 9.99999996E-13 : f32
    %297 = vector.broadcast %cst_115 : f32 to vector<8x1xf32>
    %298 = arith.addf %294, %297 : vector<8x1xf32>
    %299 = math.rsqrt %298 : vector<8x1xf32>
    %300 = vector.broadcast %299 : vector<8x1xf32> to vector<8x32xf32>
    %301 = arith.mulf %296, %300 : vector<8x32xf32>
    %302 = vector.broadcast %282 : vector<1x32xf32> to vector<8x32xf32>
    %303 = arith.mulf %301, %302 : vector<8x32xf32>
    %304 = vector.broadcast %283 : vector<1x32xf32> to vector<8x32xf32>
    %305 = arith.addf %303, %304 : vector<8x32xf32>
    %c1_116 = arith.constant 1 : index
    %c0_117 = arith.constant 0 : index
    %c0_118 = arith.constant 0 : index
    %306 = vector.load %arg7[%c1_116, %c0_117, %c0_118] : memref<2x32x64xf32, #tpu.memory_space<vmem>>, vector<1x32x64xf32>
    %307 = vector.shape_cast %306 : vector<1x32x64xf32> to vector<32x64xf32>
    %cst_119 = arith.constant dense<0.000000e+00> : vector<8x64xf32>
    %308 = tpu.matmul %305, %307, %cst_119 {dimension_numbers = #tpu.dot_dimension_numbers<[1], [0], [0], [1], [0, 0, 1, 1], [], []>} : vector<8x32xf32>, vector<32x64xf32>, vector<8x64xf32> -> vector<8x64xf32>
    %c1_120 = arith.constant 1 : index
    %c0_121 = arith.constant 0 : index
    %c0_122 = arith.constant 0 : index
    %309 = vector.load %arg8[%c1_120, %c0_121, %c0_122] : memref<2x1x64xf32, #tpu.memory_space<vmem>>, vector<1x1x64xf32>
    %310 = vector.shape_cast %309 : vector<1x1x64xf32> to vector<1x64xf32>
    %311 = vector.broadcast %310 : vector<1x64xf32> to vector<8x64xf32>
    %312 = arith.addf %308, %311 : vector<8x64xf32>
    %cst_123 = arith.constant 5.000000e-01 : f32
    %313 = vector.broadcast %cst_123 : f32 to vector<8x64xf32>
    %314 = arith.mulf %313, %312 : vector<8x64xf32>
    %cst_124 = arith.constant 0.707106769 : f32
    %315 = vector.broadcast %cst_124 : f32 to vector<8x64xf32>
    %316 = arith.mulf %312, %315 : vector<8x64xf32>
    %cst_125 = arith.constant 0.000000e+00 : f32
    %317 = vector.broadcast %cst_125 : f32 to vector<8x64xf32>
    %318 = arith.cmpf oge, %316, %317 : vector<8x64xf32>
    %cst_126 = arith.constant 1.000000e+00 : f32
    %cst_127 = arith.constant -1.000000e+00 : f32
    %319 = vector.broadcast %cst_126 : f32 to vector<8x64xf32>
    %320 = vector.broadcast %cst_127 : f32 to vector<8x64xf32>
    %321 = arith.select %318, %319, %320 : vector<8x64xi1>, vector<8x64xf32>
    %322 = math.absf %316 : vector<8x64xf32>
    %cst_128 = arith.constant 0.327591091 : f32
    %323 = vector.broadcast %cst_128 : f32 to vector<8x64xf32>
    %324 = arith.mulf %323, %322 : vector<8x64xf32>
    %cst_129 = arith.constant 1.000000e+00 : f32
    %325 = vector.broadcast %cst_129 : f32 to vector<8x64xf32>
    %326 = arith.addf %325, %324 : vector<8x64xf32>
    %cst_130 = arith.constant 1.000000e+00 : f32
    %327 = vector.broadcast %cst_130 : f32 to vector<8x64xf32>
    %328 = arith.divf %327, %326 : vector<8x64xf32>
    %cst_131 = arith.constant 1.06140542 : f32
    %329 = vector.broadcast %cst_131 : f32 to vector<8x64xf32>
    %330 = arith.mulf %329, %328 : vector<8x64xf32>
    %cst_132 = arith.constant -1.45315206 : f32
    %331 = vector.broadcast %cst_132 : f32 to vector<8x64xf32>
    %332 = arith.addf %330, %331 : vector<8x64xf32>
    %333 = arith.mulf %332, %328 : vector<8x64xf32>
    %cst_133 = arith.constant 1.42141378 : f32
    %334 = vector.broadcast %cst_133 : f32 to vector<8x64xf32>
    %335 = arith.addf %333, %334 : vector<8x64xf32>
    %336 = arith.mulf %335, %328 : vector<8x64xf32>
    %cst_134 = arith.constant -0.284496725 : f32
    %337 = vector.broadcast %cst_134 : f32 to vector<8x64xf32>
    %338 = arith.addf %336, %337 : vector<8x64xf32>
    %339 = arith.mulf %338, %328 : vector<8x64xf32>
    %cst_135 = arith.constant 0.254829586 : f32
    %340 = vector.broadcast %cst_135 : f32 to vector<8x64xf32>
    %341 = arith.addf %339, %340 : vector<8x64xf32>
    %342 = arith.mulf %341, %328 : vector<8x64xf32>
    %cst_136 = arith.constant 0.000000e+00 : f32
    %343 = vector.broadcast %cst_136 : f32 to vector<8x64xf32>
    %344 = arith.subf %343, %322 : vector<8x64xf32>
    %345 = arith.mulf %344, %322 : vector<8x64xf32>
    %346 = math.exp %345 : vector<8x64xf32>
    %347 = arith.mulf %342, %346 : vector<8x64xf32>
    %cst_137 = arith.constant 1.000000e+00 : f32
    %348 = vector.broadcast %cst_137 : f32 to vector<8x64xf32>
    %349 = arith.subf %348, %347 : vector<8x64xf32>
    %350 = arith.mulf %321, %349 : vector<8x64xf32>
    %cst_138 = arith.constant 1.000000e+00 : f32
    %351 = vector.broadcast %cst_138 : f32 to vector<8x64xf32>
    %352 = arith.addf %351, %350 : vector<8x64xf32>
    %353 = arith.mulf %314, %352 : vector<8x64xf32>
    %c1_139 = arith.constant 1 : index
    %c0_140 = arith.constant 0 : index
    %c0_141 = arith.constant 0 : index
    %354 = vector.load %arg9[%c1_139, %c0_140, %c0_141] : memref<2x64x32xf32, #tpu.memory_space<vmem>>, vector<1x64x32xf32>
    %355 = vector.shape_cast %354 : vector<1x64x32xf32> to vector<64x32xf32>
    %cst_142 = arith.constant dense<0.000000e+00> : vector<8x32xf32>
    %356 = tpu.matmul %353, %355, %cst_142 {dimension_numbers = #tpu.dot_dimension_numbers<[1], [0], [0], [1], [0, 0, 1, 1], [], []>} : vector<8x64xf32>, vector<64x32xf32>, vector<8x32xf32> -> vector<8x32xf32>
    %c1_143 = arith.constant 1 : index
    %c0_144 = arith.constant 0 : index
    %c0_145 = arith.constant 0 : index
    %357 = vector.load %arg10[%c1_143, %c0_144, %c0_145] : memref<2x1x32xf32, #tpu.memory_space<vmem>>, vector<1x1x32xf32>
    %358 = vector.shape_cast %357 : vector<1x1x32xf32> to vector<1x32xf32>
    %359 = vector.broadcast %358 : vector<1x32xf32> to vector<8x32xf32>
    %360 = arith.addf %356, %359 : vector<8x32xf32>
    %361 = arith.addf %360, %305 : vector<8x32xf32>
    %362 = vector.extract_strided_slice %273 {offsets = [2, 0], sizes = [1, 32], strides = [1, 1]} : vector<4x32xf32> to vector<1x32xf32>
    %363 = vector.extract_strided_slice %273 {offsets = [3, 0], sizes = [1, 32], strides = [1, 1]} : vector<4x32xf32> to vector<1x32xf32>
    %cst_146 = arith.constant dense<0.000000e+00> : vector<8xf32>
    %364 = vector.multi_reduction <add>, %361, %cst_146 [1] : vector<8x32xf32> to vector<8xf32>
    %365 = vector.shape_cast %364 : vector<8xf32> to vector<8x1xf32>
    %cst_147 = arith.constant 3.200000e+01 : f32
    %366 = vector.broadcast %cst_147 : f32 to vector<8x1xf32>
    %367 = arith.divf %365, %366 : vector<8x1xf32>
    %368 = vector.broadcast %367 : vector<8x1xf32> to vector<8x32xf32>
    %369 = arith.subf %361, %368 : vector<8x32xf32>
    %370 = arith.mulf %369, %369 : vector<8x32xf32>
    %cst_148 = arith.constant dense<0.000000e+00> : vector<8xf32>
    %371 = vector.multi_reduction <add>, %370, %cst_148 [1] : vector<8x32xf32> to vector<8xf32>
    %372 = vector.shape_cast %371 : vector<8xf32> to vector<8x1xf32>
    %cst_149 = arith.constant 3.200000e+01 : f32
    %373 = vector.broadcast %cst_149 : f32 to vector<8x1xf32>
    %374 = arith.divf %372, %373 : vector<8x1xf32>
    %375 = vector.broadcast %367 : vector<8x1xf32> to vector<8x32xf32>
    %376 = arith.subf %361, %375 : vector<8x32xf32>
    %cst_150 = arith.constant 9.99999996E-13 : f32
    %377 = vector.broadcast %cst_150 : f32 to vector<8x1xf32>
    %378 = arith.addf %374, %377 : vector<8x1xf32>
    %379 = math.rsqrt %378 : vector<8x1xf32>
    %380 = vector.broadcast %379 : vector<8x1xf32> to vector<8x32xf32>
    %381 = arith.mulf %376, %380 : vector<8x32xf32>
    %382 = vector.broadcast %362 : vector<1x32xf32> to vector<8x32xf32>
    %383 = arith.mulf %381, %382 : vector<8x32xf32>
    %384 = vector.broadcast %363 : vector<1x32xf32> to vector<8x32xf32>
    %385 = arith.addf %383, %384 : vector<8x32xf32>
    %c0_151 = arith.constant 0 : index
    %c0_152 = arith.constant 0 : index
    %c0_153 = arith.constant 0 : index
    %386 = vector.load %arg12[%c0_151, %c0_152, %c0_153] : memref<1x8x32xf32, #tpu.memory_space<vmem>>, vector<1x8x32xf32>
    %387 = vector.shape_cast %386 : vector<1x8x32xf32> to vector<8x32xf32>
    %388 = vector.shape_cast %385 : vector<8x32xf32> to vector<1x8x32xf32>
    tpu.vector_store %arg12[%c0_151, %c0_152, %c0_153], %388 {strides = array<i32>} : memref<1x8x32xf32, #tpu.memory_space<vmem>>, vector<1x8x32xf32>,
    return
  }
  func.func @transform_0(%arg0: i32) -> (i32, i32, i32) {
    %c0_i32 = arith.constant 0 : i32
    %c0_i32_0 = arith.constant 0 : i32
    %c0_i32_1 = arith.constant 0 : i32
    return %arg0, %c0_i32, %c0_i32_0 : i32, i32, i32
  }
  func.func @transform_1(%arg0: i32) -> (i32, i32, i32) {
    %c0_i32 = arith.constant 0 : i32
    %c0_i32_0 = arith.constant 0 : i32
    %c0_i32_1 = arith.constant 0 : i32
    return %arg0, %c0_i32, %c0_i32_0 : i32, i32, i32
  }
  func.func @transform_2(%arg0: i32) -> (i32, i32, i32) {
    %c0_i32 = arith.constant 0 : i32
    %c0_i32_0 = arith.constant 0 : i32
    %c0_i32_1 = arith.constant 0 : i32
    %c0_i32_2 = arith.constant 0 : i32
    return %c0_i32, %c0_i32_0, %c0_i32_1 : i32, i32, i32
  }
  func.func @transform_3(%arg0: i32) -> (i32, i32, i32) {
    %c0_i32 = arith.constant 0 : i32
    %c0_i32_0 = arith.constant 0 : i32
    %c0_i32_1 = arith.constant 0 : i32
    %c0_i32_2 = arith.constant 0 : i32
    return %c0_i32, %c0_i32_0, %c0_i32_1 : i32, i32, i32
  }
  func.func @transform_4(%arg0: i32) -> (i32, i32, i32) {
    %c0_i32 = arith.constant 0 : i32
    %c0_i32_0 = arith.constant 0 : i32
    %c0_i32_1 = arith.constant 0 : i32
    %c0_i32_2 = arith.constant 0 : i32
    return %c0_i32, %c0_i32_0, %c0_i32_1 : i32, i32, i32
  }
  func.func @transform_5(%arg0: i32) -> (i32, i32, i32) {
    %c0_i32 = arith.constant 0 : i32
    %c0_i32_0 = arith.constant 0 : i32
    %c0_i32_1 = arith.constant 0 : i32
    %c0_i32_2 = arith.constant 0 : i32
    return %c0_i32, %c0_i32_0, %c0_i32_1 : i32, i32, i32
  }
  func.func @transform_6(%arg0: i32) -> (i32, i32, i32) {
    %c0_i32 = arith.constant 0 : i32
    %c0_i32_0 = arith.constant 0 : i32
    %c0_i32_1 = arith.constant 0 : i32
    %c0_i32_2 = arith.constant 0 : i32
    return %c0_i32, %c0_i32_0, %c0_i32_1 : i32, i32, i32
  }
  func.func @transform_7(%arg0: i32) -> (i32, i32, i32) {
    %c0_i32 = arith.constant 0 : i32
    %c0_i32_0 = arith.constant 0 : i32
    %c0_i32_1 = arith.constant 0 : i32
    %c0_i32_2 = arith.constant 0 : i32
    return %c0_i32, %c0_i32_0, %c0_i32_1 : i32, i32, i32
  }
  func.func @transform_8(%arg0: i32) -> (i32, i32, i32) {
    %c0_i32 = arith.constant 0 : i32
    %c0_i32_0 = arith.constant 0 : i32
    %c0_i32_1 = arith.constant 0 : i32
    %c0_i32_2 = arith.constant 0 : i32
    return %c0_i32, %c0_i32_0, %c0_i32_1 : i32, i32, i32
  }
  func.func @transform_9(%arg0: i32) -> (i32, i32, i32) {
    %c0_i32 = arith.constant 0 : i32
    %c0_i32_0 = arith.constant 0 : i32
    %c0_i32_1 = arith.constant 0 : i32
    %c0_i32_2 = arith.constant 0 : i32
    return %c0_i32, %c0_i32_0, %c0_i32_1 : i32, i32, i32
  }
  func.func @transform_10(%arg0: i32) -> (i32, i32, i32) {
    %c0_i32 = arith.constant 0 : i32
    %c0_i32_0 = arith.constant 0 : i32
    %c0_i32_1 = arith.constant 0 : i32
    %c0_i32_2 = arith.constant 0 : i32
    return %c0_i32, %c0_i32_0, %c0_i32_1 : i32, i32, i32
  }
  func.func @transform_11(%arg0: i32) -> (i32, i32, i32) {
    %c0_i32 = arith.constant 0 : i32
    %c0_i32_0 = arith.constant 0 : i32
    %c0_i32_1 = arith.constant 0 : i32
    return %arg0, %c0_i32, %c0_i32_0 : i32, i32, i32
  }
}

</mosaic_0001>

<llo_original>
// kernel: tpu_custom_call.1
$region0: #{tpu_custom_call.1}
  #allocation0 [shape = 'u32[]', space=smem, size = 0x4, offset = 0x4, fixed_abs, tag = 'smem constant byte address 0x4 - core index']
  #allocation1 [shape = 'u32[144,128]{1,0:T(1,128)}', space=vmem, size = 0x12000, scoped, tag = 'internal scratch']
  %s0 = inlined_call_operand.hbm [shape: f32[2,8,32], index: 0, kind: input, shape index: {}]
  %s1 = inlined_call_operand.hbm [shape: f32[2,1,8], index: 1, kind: input, shape index: {}]
  %s2 = inlined_call_operand.vmem [shape: f32[2,32,96], index: 2, kind: input, shape index: {}]
  %s3 = inlined_call_operand.vmem [shape: f32[2,1,96], index: 3, kind: input, shape index: {}]
  %s4 = inlined_call_operand.vmem [shape: f32[2,32,32], index: 4, kind: input, shape index: {}]
  %s5 = inlined_call_operand.hbm [shape: f32[2,1,32], index: 5, kind: input, shape index: {}]
  %s6 = inlined_call_operand.vmem [shape: f32[2,32,64], index: 6, kind: input, shape index: {}]
  %s7 = inlined_call_operand.hbm [shape: f32[2,1,64], index: 7, kind: input, shape index: {}]
  %s8 = inlined_call_operand.vmem [shape: f32[2,64,32], index: 8, kind: input, shape index: {}]
  %s9 = inlined_call_operand.vmem [shape: f32[2,1,32], index: 9, kind: input, shape index: {}]
  %s10 = inlined_call_operand.vmem [shape: f32[2,4,32], index: 10, kind: input, shape index: {}]
  %s11 = inlined_call_operand.hbm [shape: f32[2,8,32], index: 11, kind: output, shape index: {}]
  %s12 = sld [smem:[#allocation0]]
  $region93: #{tpu_custom_call.1} parent=0
    _
  %s14 = ssub.s32 1, %s12
  %s15 = scalar_select 0, %s14, %s12
  $region1: #{tpu_custom_call.1} parent=0
    #allocation2 [shape = 'u8[8192]{0}', space=vmem, size = 0x2000, scoped, tag = 'input window, operand 0']
    #allocation3 [shape = 's32[2]{0}', space=sflag, size = 0x8, scoped, tag = 'scoped memory for tpu_custom_call.1']
    #allocation4 [shape = 's32[2]{0}', space=sflag, size = 0x8, scoped, tag = 'scoped memory for tpu_custom_call.1']
    #allocation5 [shape = 'u8[1024]{0}', space=vmem, size = 0x400, scoped, tag = 'input window, operand 1']
    #allocation6 [shape = 's32[2]{0}', space=sflag, size = 0x8, scoped, tag = 'scoped memory for tpu_custom_call.1']
    #allocation7 [shape = 'u8[1024]{0}', space=vmem, size = 0x400, scoped, tag = 'input window, operand 5, single buffered']
    #allocation8 [shape = 'u8[1024]{0}', space=vmem, size = 0x400, scoped, tag = 'input window, operand 7, single buffered']
    #allocation9 [shape = 's32[1]{0}', space=sflag, size = 0x4, scoped, tag = 'scoped memory for tpu_custom_call.1']
    #allocation10 [shape = 'u8[8192]{0}', space=vmem, size = 0x2000, scoped, tag = 'output window, operand 0']
    %16 = vsyncpa [#allocation3], 0
    %s17 = scalar_lea.sflag [#allocation3], 1
    %18 = vsyncpa %s17, 0
    %19 = vsyncpa [#allocation6], 0
    %s20 = scalar_lea.sflag [#allocation6], 1
    %21 = vsyncpa %s20, 0
    %22 = vsyncpa [#allocation9], 0
    %23 = vsyncpa [#allocation4], 0
    %s24 = scalar_lea.sflag [#allocation4], 1
    %25 = vsyncpa %s24, 0
    loop: start=0, step=1, limit=4
    $region2: #{tpu_custom_call.1} parent=1 // loop_pre_header
      _
    $region3: #{tpu_custom_call.1} parent=1 // loop_header
      %s27 = sphi 0, %s31
      %p28 = scmp.ge.s32.totalorder %s27, 4
      %s37 = sphi 0, %s39
      %s40 = sphi 0, %s37
      %s41 = sphi 0, %s40
      %s57 = sphi 0, %s41
      %s63 = sphi 0, %s65
      %s66 = sphi 0, %s63
      %s67 = sphi 0, %s66
      %s83 = sphi 0, %s67
      %s87 = sphi 0, %s87
      %s89 = sphi 0, %s87
      %s90 = sphi 0, %s89
      %s104 = sphi 0, %s90
      %s108 = sphi 0, %s108
      %s110 = sphi 0, %s108
      %s111 = sphi 0, %s110
      %s125 = sphi 0, %s111
      %s129 = sphi 0, %s129
      %s131 = sphi 0, %s129
      %s132 = sphi 0, %s131
      %s146 = sphi 0, %s132
      %s150 = sphi 0, %s150
      %s152 = sphi 0, %s150
      %s153 = sphi 0, %s152
      %s167 = sphi 0, %s153
      %s171 = sphi 0, %s171
      %s173 = sphi 0, %s171
      %s174 = sphi 0, %s173
      %s188 = sphi 0, %s174
      %s192 = sphi 0, %s192
      %s194 = sphi 0, %s192
      %s195 = sphi 0, %s194
      %s209 = sphi 0, %s195
      %s213 = sphi 0, %s213
      %s215 = sphi 0, %s213
      %s216 = sphi 0, %s215
      %s230 = sphi 0, %s216
      %s234 = sphi 0, %s234
      %s236 = sphi 0, %s234
      %s237 = sphi 0, %s236
      %s251 = sphi 0, %s237
      %s255 = sphi 0, %s255
      %s257 = sphi 0, %s255
      %s258 = sphi 0, %s257
      %s272 = sphi 0, %s258
      %s278 = sphi 0, %s280
      %s281 = sphi 0, %s278
      %s282 = sphi 0, %s281
      %s298 = sphi 0, %s282
    $region4: #{tpu_custom_call.1} parent=1 // loop_header_branch
      %30 = sbr.rel (%p28) target = $region8
    $region5: #{tpu_custom_call.1} parent=1 // loop_body
      %s32 = ssub.s32 %s27, 1
      %s33 = ssub.s32 %s27, 2
      %s34 = sadd.s32 %s27, 1
      %s35 = ssub.s32 %s27, %s34
      %p36 = scmp.eq.s32.totalorder %s35, 0
      %s38 = sadd.s32 %s37, 1
      %s39 = scalar_select %p36, %s37, %s38
      %p42 = pneg %p36
      %p43 = scmp.eq.s32.totalorder %s27, 1
      %p44 = por %p42, %p43
      %p45 = scmp.ne.s32.totalorder %s37, %s40
      %p46 = scmp.eq.s32.totalorder %s27, 0
      %p47 = por %p45, %p46
      %p48 = scmp.ne.s32.totalorder %s37, %s40
      %p49 = scmp.eq.s32.totalorder %s32, 1
      %p50 = por %p48, %p49
      %p51 = scmp.ne.s32.totalorder %s40, %s41
      %p52 = scmp.eq.s32.totalorder %s32, 0
      %p53 = por %p51, %p52
      %p54 = scmp.ne.s32.totalorder %s40, %s41
      %p55 = scmp.eq.s32.totalorder %s33, 1
      %p56 = por %p54, %p55
      %p58 = scmp.ne.s32.totalorder %s41, %s57
      %p59 = scmp.eq.s32.totalorder %s33, 0
      %p60 = por %p58, %p59
      %s61 = ssub.s32 %s27, %s34
      %p62 = scmp.eq.s32.totalorder %s61, 0
      %s64 = sadd.s32 %s63, 1
      %s65 = scalar_select %p62, %s63, %s64
      %p68 = pneg %p62
      %p69 = scmp.eq.s32.totalorder %s27, 1
      %p70 = por %p68, %p69
      %p71 = scmp.ne.s32.totalorder %s63, %s66
      %p72 = scmp.eq.s32.totalorder %s27, 0
      %p73 = por %p71, %p72
      %p74 = scmp.ne.s32.totalorder %s63, %s66
      %p75 = scmp.eq.s32.totalorder %s32, 1
      %p76 = por %p74, %p75
      %p77 = scmp.ne.s32.totalorder %s66, %s67
      %p78 = scmp.eq.s32.totalorder %s32, 0
      %p79 = por %p77, %p78
      %p80 = scmp.ne.s32.totalorder %s66, %s67
      %p81 = scmp.eq.s32.totalorder %s33, 1
      %p82 = por %p80, %p81
      %p84 = scmp.ne.s32.totalorder %s67, %s83
      %p85 = scmp.eq.s32.totalorder %s33, 0
      %p86 = por %p84, %p85
      %s88 = sadd.s32 %s87, 1
      %p91 = scmp.eq.s32.totalorder %s27, 1
      %p92 = scmp.ne.s32.totalorder %s87, %s89
      %p93 = scmp.eq.s32.totalorder %s27, 0
      %p94 = por %p92, %p93
      %p95 = scmp.ne.s32.totalorder %s87, %s89
      %p96 = scmp.eq.s32.totalorder %s32, 1
      %p97 = por %p95, %p96
      %p98 = scmp.ne.s32.totalorder %s89, %s90
      %p99 = scmp.eq.s32.totalorder %s32, 0
      %p100 = por %p98, %p99
      %p101 = scmp.ne.s32.totalorder %s89, %s90
      %p102 = scmp.eq.s32.totalorder %s33, 1
      %p103 = por %p101, %p102
      %p105 = scmp.ne.s32.totalorder %s90, %s104
      %p106 = scmp.eq.s32.totalorder %s33, 0
      %p107 = por %p105, %p106
      %s109 = sadd.s32 %s108, 1
      %p112 = scmp.eq.s32.totalorder %s27, 1
      %p113 = scmp.ne.s32.totalorder %s108, %s110
      %p114 = scmp.eq.s32.totalorder %s27, 0
      %p115 = por %p113, %p114
      %p116 = scmp.ne.s32.totalorder %s108, %s110
      %p117 = scmp.eq.s32.totalorder %s32, 1
      %p118 = por %p116, %p117
      %p119 = scmp.ne.s32.totalorder %s110, %s111
      %p120 = scmp.eq.s32.totalorder %s32, 0
      %p121 = por %p119, %p120
      %p122 = scmp.ne.s32.totalorder %s110, %s111
      %p123 = scmp.eq.s32.totalorder %s33, 1
      %p124 = por %p122, %p123
      %p126 = scmp.ne.s32.totalorder %s111, %s125
      %p127 = scmp.eq.s32.totalorder %s33, 0
      %p128 = por %p126, %p127
      %s130 = sadd.s32 %s129, 1
      %p133 = scmp.eq.s32.totalorder %s27, 1
      %p134 = scmp.ne.s32.totalorder %s129, %s131
      %p135 = scmp.eq.s32.totalorder %s27, 0
      %p136 = por %p134, %p135
      %p137 = scmp.ne.s32.totalorder %s129, %s131
      %p138 = scmp.eq.s32.totalorder %s32, 1
      %p139 = por %p137, %p138
      %p140 = scmp.ne.s32.totalorder %s131, %s132
      %p141 = scmp.eq.s32.totalorder %s32, 0
      %p142 = por %p140, %p141
      %p143 = scmp.ne.s32.totalorder %s131, %s132
      %p144 = scmp.eq.s32.totalorder %s33, 1
      %p145 = por %p143, %p144
      %p147 = scmp.ne.s32.totalorder %s132, %s146
      %p148 = scmp.eq.s32.totalorder %s33, 0
      %p149 = por %p147, %p148
      %s151 = sadd.s32 %s150, 1
      %p154 = scmp.eq.s32.totalorder %s27, 1
      %p155 = scmp.ne.s32.totalorder %s150, %s152
      %p156 = scmp.eq.s32.totalorder %s27, 0
      %p157 = por %p155, %p156
      %p158 = scmp.ne.s32.totalorder %s150, %s152
      %p159 = scmp.eq.s32.totalorder %s32, 1
      %p160 = por %p158, %p159
      %p161 = scmp.ne.s32.totalorder %s152, %s153
      %p162 = scmp.eq.s32.totalorder %s32, 0
      %p163 = por %p161, %p162
      %p164 = scmp.ne.s32.totalorder %s152, %s153
      %p165 = scmp.eq.s32.totalorder %s33, 1
      %p166 = por %p164, %p165
      %p168 = scmp.ne.s32.totalorder %s153, %s167
      %p169 = scmp.eq.s32.totalorder %s33, 0
      %p170 = por %p168, %p169
      %s172 = sadd.s32 %s171, 1
      %p175 = scmp.eq.s32.totalorder %s27, 1
      %p176 = scmp.ne.s32.totalorder %s171, %s173
      %p177 = scmp.eq.s32.totalorder %s27, 0
      %p178 = por %p176, %p177
      %p179 = scmp.ne.s32.totalorder %s171, %s173
      %p180 = scmp.eq.s32.totalorder %s32, 1
      %p181 = por %p179, %p180
      %p182 = scmp.ne.s32.totalorder %s173, %s174
      %p183 = scmp.eq.s32.totalorder %s32, 0
      %p184 = por %p182, %p183
      %p185 = scmp.ne.s32.totalorder %s173, %s174
      %p186 = scmp.eq.s32.totalorder %s33, 1
      %p187 = por %p185, %p186
      %p189 = scmp.ne.s32.totalorder %s174, %s188
      %p190 = scmp.eq.s32.totalorder %s33, 0
      %p191 = por %p189, %p190
      %s193 = sadd.s32 %s192, 1
      %p196 = scmp.eq.s32.totalorder %s27, 1
      %p197 = scmp.ne.s32.totalorder %s192, %s194
      %p198 = scmp.eq.s32.totalorder %s27, 0
      %p199 = por %p197, %p198
      %p200 = scmp.ne.s32.totalorder %s192, %s194
      %p201 = scmp.eq.s32.totalorder %s32, 1
      %p202 = por %p200, %p201
      %p203 = scmp.ne.s32.totalorder %s194, %s195
      %p204 = scmp.eq.s32.totalorder %s32, 0
      %p205 = por %p203, %p204
      %p206 = scmp.ne.s32.totalorder %s194, %s195
      %p207 = scmp.eq.s32.totalorder %s33, 1
      %p208 = por %p206, %p207
      %p210 = scmp.ne.s32.totalorder %s195, %s209
      %p211 = scmp.eq.s32.totalorder %s33, 0
      %p212 = por %p210, %p211
      %s214 = sadd.s32 %s213, 1
      %p217 = scmp.eq.s32.totalorder %s27, 1
      %p218 = scmp.ne.s32.totalorder %s213, %s215
      %p219 = scmp.eq.s32.totalorder %s27, 0
      %p220 = por %p218, %p219
      %p221 = scmp.ne.s32.totalorder %s213, %s215
      %p222 = scmp.eq.s32.totalorder %s32, 1
      %p223 = por %p221, %p222
      %p224 = scmp.ne.s32.totalorder %s215, %s216
      %p225 = scmp.eq.s32.totalorder %s32, 0
      %p226 = por %p224, %p225
      %p227 = scmp.ne.s32.totalorder %s215, %s216
      %p228 = scmp.eq.s32.totalorder %s33, 1
      %p229 = por %p227, %p228
      %p231 = scmp.ne.s32.totalorder %s216, %s230
      %p232 = scmp.eq.s32.totalorder %s33, 0
      %p233 = por %p231, %p232
      %s235 = sadd.s32 %s234, 1
      %p238 = scmp.eq.s32.totalorder %s27, 1
      %p239 = scmp.ne.s32.totalorder %s234, %s236
      %p240 = scmp.eq.s32.totalorder %s27, 0
      %p241 = por %p239, %p240
      %p242 = scmp.ne.s32.totalorder %s234, %s236
      %p243 = scmp.eq.s32.totalorder %s32, 1
      %p244 = por %p242, %p243
      %p245 = scmp.ne.s32.totalorder %s236, %s237
      %p246 = scmp.eq.s32.totalorder %s32, 0
      %p247 = por %p245, %p246
      %p248 = scmp.ne.s32.totalorder %s236, %s237
      %p249 = scmp.eq.s32.totalorder %s33, 1
      %p250 = por %p248, %p249
      %p252 = scmp.ne.s32.totalorder %s237, %s251
      %p253 = scmp.eq.s32.totalorder %s33, 0
      %p254 = por %p252, %p253
      %s256 = sadd.s32 %s255, 1
      %p259 = scmp.eq.s32.totalorder %s27, 1
      %p260 = scmp.ne.s32.totalorder %s255, %s257
      %p261 = scmp.eq.s32.totalorder %s27, 0
      %p262 = por %p260, %p261
      %p263 = scmp.ne.s32.totalorder %s255, %s257
      %p264 = scmp.eq.s32.totalorder %s32, 1
      %p265 = por %p263, %p264
      %p266 = scmp.ne.s32.totalorder %s257, %s258
      %p267 = scmp.eq.s32.totalorder %s32, 0
      %p268 = por %p266, %p267
      %p269 = scmp.ne.s32.totalorder %s257, %s258
      %p270 = scmp.eq.s32.totalorder %s33, 1
      %p271 = por %p269, %p270
      %p273 = scmp.ne.s32.totalorder %s258, %s272
      %p274 = scmp.eq.s32.totalorder %s33, 0
      %p275 = por %p273, %p274
      %s276 = ssub.s32 %s27, %s34
      %p277 = scmp.eq.s32.totalorder %s276, 0
      %s279 = sadd.s32 %s278, 1
      %s280 = scalar_select %p277, %s278, %s279
      %p283 = pneg %p277
      %p284 = scmp.eq.s32.totalorder %s27, 1
      %p285 = por %p283, %p284
      %p286 = scmp.ne.s32.totalorder %s278, %s281
      %p287 = scmp.eq.s32.totalorder %s27, 0
      %p288 = por %p286, %p287
      %p289 = scmp.ne.s32.totalorder %s278, %s281
      %p290 = scmp.eq.s32.totalorder %s32, 1
      %p291 = por %p289, %p290
      %p292 = scmp.ne.s32.totalorder %s281, %s282
      %p293 = scmp.eq.s32.totalorder %s32, 0
      %p294 = por %p292, %p293
      %p295 = scmp.ne.s32.totalorder %s281, %s282
      %p296 = scmp.eq.s32.totalorder %s33, 1
      %p297 = por %p295, %p296
      %p299 = scmp.ne.s32.totalorder %s282, %s298
      %p300 = scmp.eq.s32.totalorder %s33, 0
      %p301 = por %p299, %p300
      %p302 = scmp.le.s32.totalorder 1, %s27
      %p303 = scmp.lt.s32.totalorder %s27, 3
      %p304 = pnand %p302, %p303
      %p305 = pneg %p304
      // Predicated region
      $region9: #{tpu_custom_call.1} parent=5 // pred_check
        _
      $region10: #{tpu_custom_call.1} parent=5 // pred_check_branch
        %307 = sbr.rel (%p304) target = $region12
      $region11: #{tpu_custom_call.1} parent=5 // pred_region
        %s308 = ssub.s32 %s27, 1
        // Predicated region
        $region13: #{tpu_custom_call.1} parent=11 // pred_check
          %p309 = pneg %p100
        $region14: #{tpu_custom_call.1} parent=11 // pred_check_branch
          %311 = sbr.rel (%p309) target = $region16
        $region15: #{tpu_custom_call.1} parent=11 // pred_region
          _
        $region16: #{tpu_custom_call.1} parent=11 // pred_fallthru
          _
        // Predicated region
        $region17: #{tpu_custom_call.1} parent=11 // pred_check
          %p312 = pneg %p121
        $region18: #{tpu_custom_call.1} parent=11 // pred_check_branch
          %314 = sbr.rel (%p312) target = $region20
        $region19: #{tpu_custom_call.1} parent=11 // pred_region
          _
        $region20: #{tpu_custom_call.1} parent=11 // pred_fallthru
          _
        // Predicated region
        $region21: #{tpu_custom_call.1} parent=11 // pred_check
          %p315 = pneg %p142
        $region22: #{tpu_custom_call.1} parent=11 // pred_check_branch
          %317 = sbr.rel (%p315) target = $region24
        $region23: #{tpu_custom_call.1} parent=11 // pred_region
          _
        $region24: #{tpu_custom_call.1} parent=11 // pred_fallthru
          _
        // Predicated region
        $region25: #{tpu_custom_call.1} parent=11 // pred_check
          %p318 = pneg %p163
        $region26: #{tpu_custom_call.1} parent=11 // pred_check_branch
          %320 = sbr.rel (%p318) target = $region28
        $region27: #{tpu_custom_call.1} parent=11 // pred_region
          %s322 = ssub.s32 32, 32
          %323 = vsyncadd [#allocation6], %s322
          %s324 = sshll.u32 [#allocation7], 4
          %s325 = int_to_ptr.vmem [resolvable:$true] %s324
          %330 = dma.hbm_to_vmem [thread:$0]  %s5, 32, %s325, [#allocation6], 16, 16, 1
        $region28: #{tpu_custom_call.1} parent=11 // pred_fallthru
          _
        // Predicated region
        $region29: #{tpu_custom_call.1} parent=11 // pred_check
          %p331 = pneg %p184
        $region30: #{tpu_custom_call.1} parent=11 // pred_check_branch
          %333 = sbr.rel (%p331) target = $region32
        $region31: #{tpu_custom_call.1} parent=11 // pred_region
          _
        $region32: #{tpu_custom_call.1} parent=11 // pred_fallthru
          _
        // Predicated region
        $region33: #{tpu_custom_call.1} parent=11 // pred_check
          %p334 = pneg %p205
        $region34: #{tpu_custom_call.1} parent=11 // pred_check_branch
          %336 = sbr.rel (%p334) target = $region36
        $region35: #{tpu_custom_call.1} parent=11 // pred_region
          %s338 = ssub.s32 32, 32
          %339 = vsyncadd [#allocation9], %s338
          %s340 = sshll.u32 [#allocation8], 4
          %s341 = int_to_ptr.vmem [resolvable:$true] %s340
          %346 = dma.hbm_to_vmem [thread:$0]  %s7, 32, %s341, [#allocation9], 16, 16, 1
        $region36: #{tpu_custom_call.1} parent=11 // pred_fallthru
          _
        // Predicated region
        $region37: #{tpu_custom_call.1} parent=11 // pred_check
          %p347 = pneg %p226
        $region38: #{tpu_custom_call.1} parent=11 // pred_check_branch
          %349 = sbr.rel (%p347) target = $region40
        $region39: #{tpu_custom_call.1} parent=11 // pred_region
          _
        $region40: #{tpu_custom_call.1} parent=11 // pred_fallthru
          _
        // Predicated region
        $region41: #{tpu_custom_call.1} parent=11 // pred_check
          %p350 = pneg %p247
        $region42: #{tpu_custom_call.1} parent=11 // pred_check_branch
          %352 = sbr.rel (%p350) target = $region44
        $region43: #{tpu_custom_call.1} parent=11 // pred_region
          _
        $region44: #{tpu_custom_call.1} parent=11 // pred_fallthru
          _
        // Predicated region
        $region45: #{tpu_custom_call.1} parent=11 // pred_check
          %p353 = pneg %p268
        $region46: #{tpu_custom_call.1} parent=11 // pred_check_branch
          %355 = sbr.rel (%p353) target = $region48
        $region47: #{tpu_custom_call.1} parent=11 // pred_region
          _
        $region48: #{tpu_custom_call.1} parent=11 // pred_fallthru
          _
      $region12: #{tpu_custom_call.1} parent=5 // pred_fallthru
        _
      %p356 = scmp.lt.s32.totalorder %s27, 2
      // Predicated region
      $region49: #{tpu_custom_call.1} parent=5 // pred_check
        %p357 = pneg %p356
      $region50: #{tpu_custom_call.1} parent=5 // pred_check_branch
        %359 = sbr.rel (%p357) target = $region52
      $region51: #{tpu_custom_call.1} parent=5 // pred_region
        // Predicated region
        $region53: #{tpu_custom_call.1} parent=51 // pred_check
          %p360 = pneg %p47
        $region54: #{tpu_custom_call.1} parent=51 // pred_check_branch
          %362 = sbr.rel (%p360) target = $region56
        $region55: #{tpu_custom_call.1} parent=51 // pred_region
          %s363 = sand.u32 %s37, 1
          %s364 = scalar_lea.sflag [#allocation3], %s363
          %s365 = sand.u32 %s37, 1
          %s366 = smul.addr %s365, 8
          %s367 = scalar_lea.vmem [#allocation2], %s366
          %s369 = ssub.s32 128, 128
          %370 = vsyncadd %s364, %s369
          %s371 = smul.addr %s27, 128
          %s372 = scalar_lea.hbm %s0, %s371
          %s374 = sshll.u32 %s367, 4
          %s375 = int_to_ptr.vmem [resolvable:$true] %s374
          %377 = dma.hbm_to_vmem [thread:$0]  %s372, 128, %s375, %s364
        $region56: #{tpu_custom_call.1} parent=51 // pred_fallthru
          _
        // Predicated region
        $region57: #{tpu_custom_call.1} parent=51 // pred_check
          %p378 = pneg %p73
        $region58: #{tpu_custom_call.1} parent=51 // pred_check_branch
          %380 = sbr.rel (%p378) target = $region60
        $region59: #{tpu_custom_call.1} parent=51 // pred_region
          %s381 = sand.u32 %s27, 1
          %s382 = scalar_lea.sflag [#allocation6], %s381
          %s383 = sand.u32 %s63, 1
          %s384 = scalar_lea.vmem [#allocation5], %s383
          %s386 = ssub.s32 16, 16
          %387 = vsyncadd %s382, %s386
          %s388 = smul.addr %s27, 16
          %s389 = scalar_lea.hbm %s1, %s388
          %s391 = sshll.u32 %s384, 4
          %s392 = int_to_ptr.vmem [resolvable:$true] %s391
          %394 = dma.hbm_to_vmem [thread:$0]  %s389, 16, %s392, %s382
        $region60: #{tpu_custom_call.1} parent=51 // pred_fallthru
          _
      $region52: #{tpu_custom_call.1} parent=5 // pred_fallthru
        _
      %p395 = scmp.le.s32.totalorder 1, %s27
      %p396 = scmp.lt.s32.totalorder %s27, 3
      %p397 = pnand %p395, %p396
      %p398 = pneg %p397
      // Predicated region
      $region61: #{tpu_custom_call.1} parent=5 // pred_check
        _
      $region62: #{tpu_custom_call.1} parent=5 // pred_check_branch
        %400 = sbr.rel (%p397) target = $region64
      $region63: #{tpu_custom_call.1} parent=5 // pred_region
        %s401 = ssub.s32 %s27, 1
        %s402 = sand.u32 %s40, 1
        %s403 = scalar_lea.sflag [#allocation3], %s402
        %s404 = sand.u32 %s40, 1
        %s405 = smul.addr %s404, 8
        %s406 = scalar_lea.vmem [#allocation2], %s405
        // Predicated region
        $region65: #{tpu_custom_call.1} parent=63 // pred_check
          %p407 = pneg %p53
        $region66: #{tpu_custom_call.1} parent=63 // pred_check_branch
          %409 = sbr.rel (%p407) target = $region68
        $region67: #{tpu_custom_call.1} parent=63 // pred_region
          %410 = dma.done %s403, 128
        $region68: #{tpu_custom_call.1} parent=63 // pred_fallthru
          _
        %s411 = sand.u32 %s32, 1
        %s412 = scalar_lea.sflag [#allocation6], %s411
        %s413 = sand.u32 %s66, 1
        %s414 = scalar_lea.vmem [#allocation5], %s413
        // Predicated region
        $region69: #{tpu_custom_call.1} parent=63 // pred_check
          %p415 = pneg %p79
        $region70: #{tpu_custom_call.1} parent=63 // pred_check_branch
          %417 = sbr.rel (%p415) target = $region72
        $region71: #{tpu_custom_call.1} parent=63 // pred_region
          %418 = dma.done %s412, 16
        $region72: #{tpu_custom_call.1} parent=63 // pred_fallthru
          _
        // Predicated region
        $region73: #{tpu_custom_call.1} parent=63 // pred_check
          %p419 = pneg %p163
        $region74: #{tpu_custom_call.1} parent=63 // pred_check_branch
          %421 = sbr.rel (%p419) target = $region76
        $region75: #{tpu_custom_call.1} parent=63 // pred_region
          %422 = dma.done [#allocation6], 32
        $region76: #{tpu_custom_call.1} parent=63 // pred_fallthru
          _
        // Predicated region
        $region77: #{tpu_custom_call.1} parent=63 // pred_check
          %p423 = pneg %p205
        $region78: #{tpu_custom_call.1} parent=63 // pred_check_branch
          %425 = sbr.rel (%p423) target = $region80
        $region79: #{tpu_custom_call.1} parent=63 // pred_region
          %426 = dma.done [#allocation9], 32
        $region80: #{tpu_custom_call.1} parent=63 // pred_fallthru
          _
        %s427 = sand.u32 %s40, 1
        %s428 = scalar_lea.sflag [#allocation3], %s427
        %s429 = sand.u32 %s40, 1
        %s430 = smul.addr %s429, 8
        %s431 = scalar_lea.vmem [#allocation2], %s430
        %p432 = pneg %p53
        %p433 = pneg %p50
        %s434 = sand.u32 %s32, 1
        %s435 = scalar_lea.sflag [#allocation6], %s434
        %s436 = sand.u32 %s66, 1
        %s437 = scalar_lea.vmem [#allocation5], %s436
        %p438 = pneg %p79
        %p439 = pneg %p76
        %p440 = pneg %p100
        %p441 = pneg %p97
        %p442 = pneg %p121
        %p443 = pneg %p118
        %p444 = pneg %p142
        %p445 = pneg %p139
        %p446 = pneg %p163
        %p447 = pneg %p160
        %p448 = pneg %p184
        %p449 = pneg %p181
        %p450 = pneg %p205
        %p451 = pneg %p202
        %p452 = pneg %p226
        %p453 = pneg %p223
        %p454 = pneg %p247
        %p455 = pneg %p244
        %p456 = pneg %p268
        %p457 = pneg %p265
        %p458 = pneg %p294
        %p459 = pneg %p291
        %s460 = sand.u32 %s281, 1
        %s461 = scalar_lea.sflag [#allocation4], %s460
        %s462 = sand.u32 %s281, 1
        %s463 = smul.addr %s462, 8
        %s464 = scalar_lea.vmem [#allocation10], %s463
        %v465 = vld [vmem:[%s406] sm:$0xff]
        %v466 = vld [vmem:[%s414] sm:$0x1]
        %v467 = vld [vmem:[%s2] sm:$0xff]
        %v468 = vld [vmem:[%s2 + $0x8] sm:$0xff]
        %v469 = vld [vmem:[%s2 + $0x10] sm:$0xff]
        %v470 = vld [vmem:[%s2 + $0x18] sm:$0xff]
        %v471 = vld [vmem:[%s3] sm:$0x1]
        %v473 = vlaneseq
        %v474 = vshrl.u32 %v473, 7
        %v475 = vsub.s32 0, %v474
        %v476 = vrot.slane %v471, %v475
        %vm478 = vcmask 261120
        %v480 = vsel %vm478, %v465, 0
        %482 = vmatprep.subr.mxu0 0.0
        %483 = vmatpush1.msra.mxu0 0.0
        %484 = vmatprep.subr.mxu0 0.0
        %485 = vmatpush1.msra.mxu0 0.0
        %486 = vmatprep.subr.mxu0 0.0
        %487 = vmatpush1.msra.mxu0 0.0
        %488 = vmatprep.subr.mxu0 0.0
        %489 = vmatpush1.msra.mxu0 0.0
        %490 = vmatprep.subr.mxu0 0.0
        %491 = vmatpush1.msra.mxu0 0.0
        %492 = vmatprep.subr.mxu0 0.0
        %493 = vmatpush1.msra.mxu0 0.0
        %494 = vmatprep.subr.mxu0 0.0
        %495 = vmatpush1.msra.mxu0 0.0
        %496 = vmatprep.subr.mxu0 0.0
        %497 = vmatpush1.msra.mxu0 0.0
        %498 = vmatprep.subr.mxu0 0.0
        %499 = vmatpush1.msra.mxu0 0.0
        %500 = vmatprep.subr.mxu0 0.0
        %501 = vmatpush1.msra.mxu0 0.0
        %502 = vmatprep.subr.mxu0 0.0
        %503 = vmatpush1.msra.mxu0 0.0
        %504 = vmatprep.subr.mxu0 0.0
        %505 = vmatpush1.msra.mxu0 0.0
        %506 = vmatprep.subr.mxu0 0.0
        %507 = vmatpush1.msra.mxu0 %v470
        %508 = vmatprep.subr.mxu0 0.0
        %509 = vmatpush1.msra.mxu0 %v469
        %510 = vmatprep.subr.mxu0 0.0
        %511 = vmatpush1.msra.mxu0 %v468
        %512 = vmatprep.subr.mxu0 0.0
        %513 = vmatpush1.msra.mxu0 %v467
        %514 = vmatprep.subr.mxu0 0.0
        %515 = vmatpush2.msra.mxu0 0.0
        %516 = vmatprep.subr.mxu0 0.0
        %517 = vmatpush2.msra.mxu0 0.0
        %518 = vmatprep.subr.mxu0 0.0
        %519 = vmatpush2.msra.mxu0 0.0
        %520 = vmatprep.subr.mxu0 0.0
        %521 = vmatpush2.msra.mxu0 0.0
        %522 = vmatprep.subr.mxu0 0.0
        %523 = vmatpush2.msra.mxu0 0.0
        %524 = vmatprep.subr.mxu0 0.0
        %525 = vmatpush2.msra.mxu0 0.0
        %526 = vmatprep.subr.mxu0 0.0
        %527 = vmatpush2.msra.mxu0 0.0
        %528 = vmatprep.subr.mxu0 0.0
        %529 = vmatpush2.msra.mxu0 0.0
        %530 = vmatprep.subr.mxu0 0.0
        %531 = vmatpush2.msra.mxu0 0.0
        %532 = vmatprep.subr.mxu0 0.0
        %533 = vmatpush2.msra.mxu0 0.0
        %534 = vmatprep.subr.mxu0 0.0
        %535 = vmatpush2.msra.mxu0 0.0
        %536 = vmatprep.subr.mxu0 0.0
        %537 = vmatpush2.msra.mxu0 0.0
        %538 = vmatprep.subr.mxu0 0.0
        %539 = vmatpush2.msra.mxu0 0.0
        %540 = vmatprep.subr.mxu0 0.0
        %541 = vmatpush2.msra.mxu0 0.0
        %542 = vmatprep.subr.mxu0 0.0
        %543 = vmatpush2.msra.mxu0 0.0
        %544 = vmatprep.subr.mxu0 0.0
        %545 = vmatpush2.msra.mxu0 0.0
        %546 = vmatprep.mubr.f32.mxu0 0.0
        %547 = vmatmul.mubr.f32.gmra.mxu0 %v480
        %v548 = vpop.f32.mrf.mxu0
        %v549 = vadd.f32 %v476, %v548
        %v550 = vpop.f32.mrf.mxu0
        %551 = vdwg.mxu0
        %v552 = vmul.f32 %v549, 0.35355338
        %v554 = vlaneseq
        %v555 = vshrl.u32 %v554, 7
        %v556 = vsub.s32 0, %v555
        %v557 = vrot.slane %v466, %v556
        %560 = vrot.lane.b32.xlu0 %v549, 96
        %v561 = vpop.permute.xlu0 %560
        %vm562 = vcmask 64512
        %v564 = vsel %vm562, %v552, 0
        %v566 = vsel %vm562, %v561, 0
        %568 = vmatprep.subr.mxu0 0.0
        %569 = vmatpush1.xpose.msra.mxu0 0.0
        %570 = vmatprep.subr.mxu0 0.0
        %571 = vmatpush1.xpose.msra.mxu0 0.0
        %572 = vmatprep.subr.mxu0 0.0
        %573 = vmatpush1.xpose.msra.mxu0 0.0
        %574 = vmatprep.subr.mxu0 0.0
        %575 = vmatpush1.xpose.msra.mxu0 0.0
        %576 = vmatprep.subr.mxu0 0.0
        %577 = vmatpush1.xpose.msra.mxu0 0.0
        %578 = vmatprep.subr.mxu0 0.0
        %579 = vmatpush1.xpose.msra.mxu0 0.0
        %580 = vmatprep.subr.mxu0 0.0
        %581 = vmatpush1.xpose.msra.mxu0 0.0
        %582 = vmatprep.subr.mxu0 0.0
        %583 = vmatpush1.xpose.msra.mxu0 0.0
        %584 = vmatprep.subr.mxu0 0.0
        %585 = vmatpush1.xpose.msra.mxu0 0.0
        %586 = vmatprep.subr.mxu0 0.0
        %587 = vmatpush1.xpose.msra.mxu0 0.0
        %588 = vmatprep.subr.mxu0 0.0
        %589 = vmatpush1.xpose.msra.mxu0 0.0
        %590 = vmatprep.subr.mxu0 0.0
        %591 = vmatpush1.xpose.msra.mxu0 0.0
        %592 = vmatprep.subr.mxu0 0.0
        %593 = vmatpush1.xpose.msra.mxu0 0.0
        %594 = vmatprep.subr.mxu0 0.0
        %595 = vmatpush1.xpose.msra.mxu0 0.0
        %596 = vmatprep.subr.mxu0 0.0
        %597 = vmatpush1.xpose.msra.mxu0 0.0
        %598 = vmatprep.subr.mxu0 0.0
        %599 = vmatpush1.xpose.msra.mxu0 %v566
        %600 = vmatprep.subr.mxu0 0.0
        %601 = vmatpush2.xpose.msra.mxu0 0.0
        %602 = vmatprep.subr.mxu0 0.0
        %603 = vmatpush2.xpose.msra.mxu0 0.0
        %604 = vmatprep.subr.mxu0 0.0
        %605 = vmatpush2.xpose.msra.mxu0 0.0
        %606 = vmatprep.subr.mxu0 0.0
        %607 = vmatpush2.xpose.msra.mxu0 0.0
        %608 = vmatprep.subr.mxu0 0.0
        %609 = vmatpush2.xpose.msra.mxu0 0.0
        %610 = vmatprep.subr.mxu0 0.0
        %611 = vmatpush2.xpose.msra.mxu0 0.0
        %612 = vmatprep.subr.mxu0 0.0
        %613 = vmatpush2.xpose.msra.mxu0 0.0
        %614 = vmatprep.subr.mxu0 0.0
        %615 = vmatpush2.xpose.msra.mxu0 0.0
        %616 = vmatprep.subr.mxu0 0.0
        %617 = vmatpush2.xpose.msra.mxu0 0.0
        %618 = vmatprep.subr.mxu0 0.0
        %619 = vmatpush2.xpose.msra.mxu0 0.0
        %620 = vmatprep.subr.mxu0 0.0
        %621 = vmatpush2.xpose.msra.mxu0 0.0
        %622 = vmatprep.subr.mxu0 0.0
        %623 = vmatpush2.xpose.msra.mxu0 0.0
        %624 = vmatprep.subr.mxu0 0.0
        %625 = vmatpush2.xpose.msra.mxu0 0.0
        %626 = vmatprep.subr.mxu0 0.0
        %627 = vmatpush2.xpose.msra.mxu0 0.0
        %628 = vmatprep.subr.mxu0 0.0
        %629 = vmatpush2.xpose.msra.mxu0 0.0
        %630 = vmatprep.subr.mxu0 0.0
        %631 = vmatpush2.xpose.msra.mxu0 0.0
        %632 = vmatprep.mubr.f32.mxu0 0.0
        %633 = vmatmul.mubr.f32.gmra.mxu0 %v564
        %v634 = vpop.f32.mrf.mxu0
        %v635 = vadd.f32 %v557, %v634
        %v636 = vpop.f32.mrf.mxu0
        %637 = vdwg.mxu0
        %v638 = vsel %vm562, %v635, -inf
        %639 = vmax.xlane.f32.xlu0 %v638
        %v640 = vpop.xlane.xlu0 %639
        %v641 = vsub.f32 %v635, %v640
        %v642 = vmul.f32 %v641, 1.442695
        %v643 = vpow.pop %v642
        %v644 = vsel %vm562, %v643, 0.0
        %645 = vadd.xlane.f32.xlu0 %v644
        %v646 = vpop.xlane.xlu0 %645
        %v647 = vrcp.pop %v646
        %v648 = vmul.f32 %v643, %v647
        %649 = vrot.lane.b32.xlu0 %v549, 64
        %v650 = vpop.permute.xlu0 %649
        %v653 = vsel %vm562, %v648, 0
        %655 = vmatprep.subr.mxu0 0.0
        %656 = vmatpush1.msra.mxu0 0.0
        %657 = vmatprep.subr.mxu0 0.0
        %658 = vmatpush1.msra.mxu0 0.0
        %659 = vmatprep.subr.mxu0 0.0
        %660 = vmatpush1.msra.mxu0 0.0
        %661 = vmatprep.subr.mxu0 0.0
        %662 = vmatpush1.msra.mxu0 0.0
        %663 = vmatprep.subr.mxu0 0.0
        %664 = vmatpush1.msra.mxu0 0.0
        %665 = vmatprep.subr.mxu0 0.0
        %666 = vmatpush1.msra.mxu0 0.0
        %667 = vmatprep.subr.mxu0 0.0
        %668 = vmatpush1.msra.mxu0 0.0
        %669 = vmatprep.subr.mxu0 0.0
        %670 = vmatpush1.msra.mxu0 0.0
        %671 = vmatprep.subr.mxu0 0.0
        %672 = vmatpush1.msra.mxu0 0.0
        %673 = vmatprep.subr.mxu0 0.0
        %674 = vmatpush1.msra.mxu0 0.0
        %675 = vmatprep.subr.mxu0 0.0
        %676 = vmatpush1.msra.mxu0 0.0
        %677 = vmatprep.subr.mxu0 0.0
        %678 = vmatpush1.msra.mxu0 0.0
        %679 = vmatprep.subr.mxu0 0.0
        %680 = vmatpush1.msra.mxu0 0.0
        %681 = vmatprep.subr.mxu0 0.0
        %682 = vmatpush1.msra.mxu0 0.0
        %683 = vmatprep.subr.mxu0 0.0
        %684 = vmatpush1.msra.mxu0 0.0
        %685 = vmatprep.subr.mxu0 0.0
        %686 = vmatpush1.msra.mxu0 %v650
        %687 = vmatprep.subr.mxu0 0.0
        %688 = vmatpush2.msra.mxu0 0.0
        %689 = vmatprep.subr.mxu0 0.0
        %690 = vmatpush2.msra.mxu0 0.0
        %691 = vmatprep.subr.mxu0 0.0
        %692 = vmatpush2.msra.mxu0 0.0
        %693 = vmatprep.subr.mxu0 0.0
        %694 = vmatpush2.msra.mxu0 0.0
        %695 = vmatprep.subr.mxu0 0.0
        %696 = vmatpush2.msra.mxu0 0.0
        %697 = vmatprep.subr.mxu0 0.0
        %698 = vmatpush2.msra.mxu0 0.0
        %699 = vmatprep.subr.mxu0 0.0
        %700 = vmatpush2.msra.mxu0 0.0
        %701 = vmatprep.subr.mxu0 0.0
        %702 = vmatpush2.msra.mxu0 0.0
        %703 = vmatprep.subr.mxu0 0.0
        %704 = vmatpush2.msra.mxu0 0.0
        %705 = vmatprep.subr.mxu0 0.0
        %706 = vmatpush2.msra.mxu0 0.0
        %707 = vmatprep.subr.mxu0 0.0
        %708 = vmatpush2.msra.mxu0 0.0
        %709 = vmatprep.subr.mxu0 0.0
        %710 = vmatpush2.msra.mxu0 0.0
        %711 = vmatprep.subr.mxu0 0.0
        %712 = vmatpush2.msra.mxu0 0.0
        %713 = vmatprep.subr.mxu0 0.0
        %714 = vmatpush2.msra.mxu0 0.0
        %715 = vmatprep.subr.mxu0 0.0
        %716 = vmatpush2.msra.mxu0 0.0
        %717 = vmatprep.subr.mxu0 0.0
        %718 = vmatpush2.msra.mxu0 0.0
        %719 = vmatprep.mubr.f32.mxu0 0.0
        %720 = vmatmul.mubr.f32.gmra.mxu0 %v653
        %v721 = vpop.f32.mrf.mxu0
        %v722 = vadd.f32 0.0, %v721
        %v723 = vpop.f32.mrf.mxu0
        %724 = vdwg.mxu0
        %725 = vrot.lane.b32.xlu0 %v552, 120
        %v726 = vpop.permute.xlu0 %725
        %727 = vrot.lane.b32.xlu0 %v549, 88
        %v728 = vpop.permute.xlu0 %727
        %v729 = vsel %vm562, %v726, 0
        %v731 = vsel %vm562, %v728, 0
        %733 = vmatprep.subr.mxu0 0.0
        %734 = vmatpush1.xpose.msra.mxu0 0.0
        %735 = vmatprep.subr.mxu0 0.0
        %736 = vmatpush1.xpose.msra.mxu0 0.0
        %737 = vmatprep.subr.mxu0 0.0
        %738 = vmatpush1.xpose.msra.mxu0 0.0
        %739 = vmatprep.subr.mxu0 0.0
        %740 = vmatpush1.xpose.msra.mxu0 0.0
        %741 = vmatprep.subr.mxu0 0.0
        %742 = vmatpush1.xpose.msra.mxu0 0.0
        %743 = vmatprep.subr.mxu0 0.0
        %744 = vmatpush1.xpose.msra.mxu0 0.0
        %745 = vmatprep.subr.mxu0 0.0
        %746 = vmatpush1.xpose.msra.mxu0 0.0
        %747 = vmatprep.subr.mxu0 0.0
        %748 = vmatpush1.xpose.msra.mxu0 0.0
        %749 = vmatprep.subr.mxu0 0.0
        %750 = vmatpush1.xpose.msra.mxu0 0.0
        %751 = vmatprep.subr.mxu0 0.0
        %752 = vmatpush1.xpose.msra.mxu0 0.0
        %753 = vmatprep.subr.mxu0 0.0
        %754 = vmatpush1.xpose.msra.mxu0 0.0
        %755 = vmatprep.subr.mxu0 0.0
        %756 = vmatpush1.xpose.msra.mxu0 0.0
        %757 = vmatprep.subr.mxu0 0.0
        %758 = vmatpush1.xpose.msra.mxu0 0.0
        %759 = vmatprep.subr.mxu0 0.0
        %760 = vmatpush1.xpose.msra.mxu0 0.0
        %761 = vmatprep.subr.mxu0 0.0
        %762 = vmatpush1.xpose.msra.mxu0 0.0
        %763 = vmatprep.subr.mxu0 0.0
        %764 = vmatpush1.xpose.msra.mxu0 %v731
        %765 = vmatprep.subr.mxu0 0.0
        %766 = vmatpush2.xpose.msra.mxu0 0.0
        %767 = vmatprep.subr.mxu0 0.0
        %768 = vmatpush2.xpose.msra.mxu0 0.0
        %769 = vmatprep.subr.mxu0 0.0
        %770 = vmatpush2.xpose.msra.mxu0 0.0
        %771 = vmatprep.subr.mxu0 0.0
        %772 = vmatpush2.xpose.msra.mxu0 0.0
        %773 = vmatprep.subr.mxu0 0.0
        %774 = vmatpush2.xpose.msra.mxu0 0.0
        %775 = vmatprep.subr.mxu0 0.0
        %776 = vmatpush2.xpose.msra.mxu0 0.0
        %777 = vmatprep.subr.mxu0 0.0
        %778 = vmatpush2.xpose.msra.mxu0 0.0
        %779 = vmatprep.subr.mxu0 0.0
        %780 = vmatpush2.xpose.msra.mxu0 0.0
        %781 = vmatprep.subr.mxu0 0.0
        %782 = vmatpush2.xpose.msra.mxu0 0.0
        %783 = vmatprep.subr.mxu0 0.0
        %784 = vmatpush2.xpose.msra.mxu0 0.0
        %785 = vmatprep.subr.mxu0 0.0
        %786 = vmatpush2.xpose.msra.mxu0 0.0
        %787 = vmatprep.subr.mxu0 0.0
        %788 = vmatpush2.xpose.msra.mxu0 0.0
        %789 = vmatprep.subr.mxu0 0.0
        %790 = vmatpush2.xpose.msra.mxu0 0.0
        %791 = vmatprep.subr.mxu0 0.0
        %792 = vmatpush2.xpose.msra.mxu0 0.0
        %793 = vmatprep.subr.mxu0 0.0
        %794 = vmatpush2.xpose.msra.mxu0 0.0
        %795 = vmatprep.subr.mxu0 0.0
        %796 = vmatpush2.xpose.msra.mxu0 0.0
        %797 = vmatprep.mubr.f32.mxu0 0.0
        %798 = vmatmul.mubr.f32.gmra.mxu0 %v729
        %v799 = vpop.f32.mrf.mxu0
        %v800 = vadd.f32 %v557, %v799
        %v801 = vpop.f32.mrf.mxu0
        %802 = vdwg.mxu0
        %v803 = vsel %vm562, %v800, -inf
        %804 = vmax.xlane.f32.xlu0 %v803
        %v805 = vpop.xlane.xlu0 %804
        %v806 = vsub.f32 %v800, %v805
        %v807 = vmul.f32 %v806, 1.442695
        %v808 = vpow.pop %v807
        %v809 = vsel %vm562, %v808, 0.0
        %810 = vadd.xlane.f32.xlu0 %v809
        %v811 = vpop.xlane.xlu0 %810
        %v812 = vrcp.pop %v811
        %v813 = vmul.f32 %v808, %v812
        %814 = vrot.lane.b32.xlu0 %v549, 56
        %v815 = vpop.permute.xlu0 %814
        %v818 = vsel %vm562, %v813, 0
        %820 = vmatprep.subr.mxu0 0.0
        %821 = vmatpush1.msra.mxu0 0.0
        %822 = vmatprep.subr.mxu0 0.0
        %823 = vmatpush1.msra.mxu0 0.0
        %824 = vmatprep.subr.mxu0 0.0
        %825 = vmatpush1.msra.mxu0 0.0
        %826 = vmatprep.subr.mxu0 0.0
        %827 = vmatpush1.msra.mxu0 0.0
        %828 = vmatprep.subr.mxu0 0.0
        %829 = vmatpush1.msra.mxu0 0.0
        %830 = vmatprep.subr.mxu0 0.0
        %831 = vmatpush1.msra.mxu0 0.0
        %832 = vmatprep.subr.mxu0 0.0
        %833 = vmatpush1.msra.mxu0 0.0
        %834 = vmatprep.subr.mxu0 0.0
        %835 = vmatpush1.msra.mxu0 0.0
        %836 = vmatprep.subr.mxu0 0.0
        %837 = vmatpush1.msra.mxu0 0.0
        %838 = vmatprep.subr.mxu0 0.0
        %839 = vmatpush1.msra.mxu0 0.0
        %840 = vmatprep.subr.mxu0 0.0
        %841 = vmatpush1.msra.mxu0 0.0
        %842 = vmatprep.subr.mxu0 0.0
        %843 = vmatpush1.msra.mxu0 0.0
        %844 = vmatprep.subr.mxu0 0.0
        %845 = vmatpush1.msra.mxu0 0.0
        %846 = vmatprep.subr.mxu0 0.0
        %847 = vmatpush1.msra.mxu0 0.0
        %848 = vmatprep.subr.mxu0 0.0
        %849 = vmatpush1.msra.mxu0 0.0
        %850 = vmatprep.subr.mxu0 0.0
        %851 = vmatpush1.msra.mxu0 %v815
        %852 = vmatprep.subr.mxu0 0.0
        %853 = vmatpush2.msra.mxu0 0.0
        %854 = vmatprep.subr.mxu0 0.0
        %855 = vmatpush2.msra.mxu0 0.0
        %856 = vmatprep.subr.mxu0 0.0
        %857 = vmatpush2.msra.mxu0 0.0
        %858 = vmatprep.subr.mxu0 0.0
        %859 = vmatpush2.msra.mxu0 0.0
        %860 = vmatprep.subr.mxu0 0.0
        %861 = vmatpush2.msra.mxu0 0.0
        %862 = vmatprep.subr.mxu0 0.0
        %863 = vmatpush2.msra.mxu0 0.0
        %864 = vmatprep.subr.mxu0 0.0
        %865 = vmatpush2.msra.mxu0 0.0
        %866 = vmatprep.subr.mxu0 0.0
        %867 = vmatpush2.msra.mxu0 0.0
        %868 = vmatprep.subr.mxu0 0.0
        %869 = vmatpush2.msra.mxu0 0.0
        %870 = vmatprep.subr.mxu0 0.0
        %871 = vmatpush2.msra.mxu0 0.0
        %872 = vmatprep.subr.mxu0 0.0
        %873 = vmatpush2.msra.mxu0 0.0
        %874 = vmatprep.subr.mxu0 0.0
        %875 = vmatpush2.msra.mxu0 0.0
        %876 = vmatprep.subr.mxu0 0.0
        %877 = vmatpush2.msra.mxu0 0.0
        %878 = vmatprep.subr.mxu0 0.0
        %879 = vmatpush2.msra.mxu0 0.0
        %880 = vmatprep.subr.mxu0 0.0
        %881 = vmatpush2.msra.mxu0 0.0
        %882 = vmatprep.subr.mxu0 0.0
        %883 = vmatpush2.msra.mxu0 0.0
        %884 = vmatprep.mubr.f32.mxu0 0.0
        %885 = vmatmul.mubr.f32.gmra.mxu0 %v818
        %v886 = vpop.f32.mrf.mxu0
        %v887 = vadd.f32 0.0, %v886
        %v888 = vpop.f32.mrf.mxu0
        %889 = vdwg.mxu0
        %890 = vrot.lane.b32.xlu0 %v552, 112
        %v891 = vpop.permute.xlu0 %890
        %892 = vrot.lane.b32.xlu0 %v549, 80
        %v893 = vpop.permute.xlu0 %892
        %v894 = vsel %vm562, %v891, 0
        %v896 = vsel %vm562, %v893, 0
        %898 = vmatprep.subr.mxu0 0.0
        %899 = vmatpush1.xpose.msra.mxu0 0.0
        %900 = vmatprep.subr.mxu0 0.0
        %901 = vmatpush1.xpose.msra.mxu0 0.0
        %902 = vmatprep.subr.mxu0 0.0
        %903 = vmatpush1.xpose.msra.mxu0 0.0
        %904 = vmatprep.subr.mxu0 0.0
        %905 = vmatpush1.xpose.msra.mxu0 0.0
        %906 = vmatprep.subr.mxu0 0.0
        %907 = vmatpush1.xpose.msra.mxu0 0.0
        %908 = vmatprep.subr.mxu0 0.0
        %909 = vmatpush1.xpose.msra.mxu0 0.0
        %910 = vmatprep.subr.mxu0 0.0
        %911 = vmatpush1.xpose.msra.mxu0 0.0
        %912 = vmatprep.subr.mxu0 0.0
        %913 = vmatpush1.xpose.msra.mxu0 0.0
        %914 = vmatprep.subr.mxu0 0.0
        %915 = vmatpush1.xpose.msra.mxu0 0.0
        %916 = vmatprep.subr.mxu0 0.0
        %917 = vmatpush1.xpose.msra.mxu0 0.0
        %918 = vmatprep.subr.mxu0 0.0
        %919 = vmatpush1.xpose.msra.mxu0 0.0
        %920 = vmatprep.subr.mxu0 0.0
        %921 = vmatpush1.xpose.msra.mxu0 0.0
        %922 = vmatprep.subr.mxu0 0.0
        %923 = vmatpush1.xpose.msra.mxu0 0.0
        %924 = vmatprep.subr.mxu0 0.0
        %925 = vmatpush1.xpose.msra.mxu0 0.0
        %926 = vmatprep.subr.mxu0 0.0
        %927 = vmatpush1.xpose.msra.mxu0 0.0
        %928 = vmatprep.subr.mxu0 0.0
        %929 = vmatpush1.xpose.msra.mxu0 %v896
        %930 = vmatprep.subr.mxu0 0.0
        %931 = vmatpush2.xpose.msra.mxu0 0.0
        %932 = vmatprep.subr.mxu0 0.0
        %933 = vmatpush2.xpose.msra.mxu0 0.0
        %934 = vmatprep.subr.mxu0 0.0
        %935 = vmatpush2.xpose.msra.mxu0 0.0
        %936 = vmatprep.subr.mxu0 0.0
        %937 = vmatpush2.xpose.msra.mxu0 0.0
        %938 = vmatprep.subr.mxu0 0.0
        %939 = vmatpush2.xpose.msra.mxu0 0.0
        %940 = vmatprep.subr.mxu0 0.0
        %941 = vmatpush2.xpose.msra.mxu0 0.0
        %942 = vmatprep.subr.mxu0 0.0
        %943 = vmatpush2.xpose.msra.mxu0 0.0
        %944 = vmatprep.subr.mxu0 0.0
        %945 = vmatpush2.xpose.msra.mxu0 0.0
        %946 = vmatprep.subr.mxu0 0.0
        %947 = vmatpush2.xpose.msra.mxu0 0.0
        %948 = vmatprep.subr.mxu0 0.0
        %949 = vmatpush2.xpose.msra.mxu0 0.0
        %950 = vmatprep.subr.mxu0 0.0
        %951 = vmatpush2.xpose.msra.mxu0 0.0
        %952 = vmatprep.subr.mxu0 0.0
        %953 = vmatpush2.xpose.msra.mxu0 0.0
        %954 = vmatprep.subr.mxu0 0.0
        %955 = vmatpush2.xpose.msra.mxu0 0.0
        %956 = vmatprep.subr.mxu0 0.0
        %957 = vmatpush2.xpose.msra.mxu0 0.0
        %958 = vmatprep.subr.mxu0 0.0
        %959 = vmatpush2.xpose.msra.mxu0 0.0
        %960 = vmatprep.subr.mxu0 0.0
        %961 = vmatpush2.xpose.msra.mxu0 0.0
        %962 = vmatprep.mubr.f32.mxu0 0.0
        %963 = vmatmul.mubr.f32.gmra.mxu0 %v894
        %v964 = vpop.f32.mrf.mxu0
        %v965 = vadd.f32 %v557, %v964
        %v966 = vpop.f32.mrf.mxu0
        %967 = vdwg.mxu0
        %v968 = vsel %vm562, %v965, -inf
        %969 = vmax.xlane.f32.xlu0 %v968
        %v970 = vpop.xlane.xlu0 %969
        %v971 = vsub.f32 %v965, %v970
        %v972 = vmul.f32 %v971, 1.442695
        %v973 = vpow.pop %v972
        %v974 = vsel %vm562, %v973, 0.0
        %975 = vadd.xlane.f32.xlu0 %v974
        %v976 = vpop.xlane.xlu0 %975
        %v977 = vrcp.pop %v976
        %v978 = vmul.f32 %v973, %v977
        %979 = vrot.lane.b32.xlu0 %v549, 48
        %v980 = vpop.permute.xlu0 %979
        %v983 = vsel %vm562, %v978, 0
        %985 = vmatprep.subr.mxu0 0.0
        %986 = vmatpush1.msra.mxu0 0.0
        %987 = vmatprep.subr.mxu0 0.0
        %988 = vmatpush1.msra.mxu0 0.0
        %989 = vmatprep.subr.mxu0 0.0
        %990 = vmatpush1.msra.mxu0 0.0
        %991 = vmatprep.subr.mxu0 0.0
        %992 = vmatpush1.msra.mxu0 0.0
        %993 = vmatprep.subr.mxu0 0.0
        %994 = vmatpush1.msra.mxu0 0.0
        %995 = vmatprep.subr.mxu0 0.0
        %996 = vmatpush1.msra.mxu0 0.0
        %997 = vmatprep.subr.mxu0 0.0
        %998 = vmatpush1.msra.mxu0 0.0
        %999 = vmatprep.subr.mxu0 0.0
        %1000 = vmatpush1.msra.mxu0 0.0
        %1001 = vmatprep.subr.mxu0 0.0
        %1002 = vmatpush1.msra.mxu0 0.0
        %1003 = vmatprep.subr.mxu0 0.0
        %1004 = vmatpush1.msra.mxu0 0.0
        %1005 = vmatprep.subr.mxu0 0.0
        %1006 = vmatpush1.msra.mxu0 0.0
        %1007 = vmatprep.subr.mxu0 0.0
        %1008 = vmatpush1.msra.mxu0 0.0
        %1009 = vmatprep.subr.mxu0 0.0
        %1010 = vmatpush1.msra.mxu0 0.0
        %1011 = vmatprep.subr.mxu0 0.0
        %1012 = vmatpush1.msra.mxu0 0.0
        %1013 = vmatprep.subr.mxu0 0.0
        %1014 = vmatpush1.msra.mxu0 0.0
        %1015 = vmatprep.subr.mxu0 0.0
        %1016 = vmatpush1.msra.mxu0 %v980
        %1017 = vmatprep.subr.mxu0 0.0
        %1018 = vmatpush2.msra.mxu0 0.0
        %1019 = vmatprep.subr.mxu0 0.0
        %1020 = vmatpush2.msra.mxu0 0.0
        %1021 = vmatprep.subr.mxu0 0.0
        %1022 = vmatpush2.msra.mxu0 0.0
        %1023 = vmatprep.subr.mxu0 0.0
        %1024 = vmatpush2.msra.mxu0 0.0
        %1025 = vmatprep.subr.mxu0 0.0
        %1026 = vmatpush2.msra.mxu0 0.0
        %1027 = vmatprep.subr.mxu0 0.0
        %1028 = vmatpush2.msra.mxu0 0.0
        %1029 = vmatprep.subr.mxu0 0.0
        %1030 = vmatpush2.msra.mxu0 0.0
        %1031 = vmatprep.subr.mxu0 0.0
        %1032 = vmatpush2.msra.mxu0 0.0
        %1033 = vmatprep.subr.mxu0 0.0
        %1034 = vmatpush2.msra.mxu0 0.0
        %1035 = vmatprep.subr.mxu0 0.0
        %1036 = vmatpush2.msra.mxu0 0.0
        %1037 = vmatprep.subr.mxu0 0.0
        %1038 = vmatpush2.msra.mxu0 0.0
        %1039 = vmatprep.subr.mxu0 0.0
        %1040 = vmatpush2.msra.mxu0 0.0
        %1041 = vmatprep.subr.mxu0 0.0
        %1042 = vmatpush2.msra.mxu0 0.0
        %1043 = vmatprep.subr.mxu0 0.0
        %1044 = vmatpush2.msra.mxu0 0.0
        %1045 = vmatprep.subr.mxu0 0.0
        %1046 = vmatpush2.msra.mxu0 0.0
        %1047 = vmatprep.subr.mxu0 0.0
        %1048 = vmatpush2.msra.mxu0 0.0
        %1049 = vmatprep.mubr.f32.mxu0 0.0
        %1050 = vmatmul.mubr.f32.gmra.mxu0 %v983
        %v1051 = vpop.f32.mrf.mxu0
        %v1052 = vadd.f32 0.0, %v1051
        %v1053 = vpop.f32.mrf.mxu0
        %1054 = vdwg.mxu0
        %1055 = vrot.lane.b32.xlu0 %v552, 104
        %v1056 = vpop.permute.xlu0 %1055
        %1057 = vrot.lane.b32.xlu0 %v549, 72
        %v1058 = vpop.permute.xlu0 %1057
        %v1059 = vsel %vm562, %v1056, 0
        %v1061 = vsel %vm562, %v1058, 0
        %1063 = vmatprep.subr.mxu0 0.0
        %1064 = vmatpush1.xpose.msra.mxu0 0.0
        %1065 = vmatprep.subr.mxu0 0.0
        %1066 = vmatpush1.xpose.msra.mxu0 0.0
        %1067 = vmatprep.subr.mxu0 0.0
        %1068 = vmatpush1.xpose.msra.mxu0 0.0
        %1069 = vmatprep.subr.mxu0 0.0
        %1070 = vmatpush1.xpose.msra.mxu0 0.0
        %1071 = vmatprep.subr.mxu0 0.0
        %1072 = vmatpush1.xpose.msra.mxu0 0.0
        %1073 = vmatprep.subr.mxu0 0.0
        %1074 = vmatpush1.xpose.msra.mxu0 0.0
        %1075 = vmatprep.subr.mxu0 0.0
        %1076 = vmatpush1.xpose.msra.mxu0 0.0
        %1077 = vmatprep.subr.mxu0 0.0
        %1078 = vmatpush1.xpose.msra.mxu0 0.0
        %1079 = vmatprep.subr.mxu0 0.0
        %1080 = vmatpush1.xpose.msra.mxu0 0.0
        %1081 = vmatprep.subr.mxu0 0.0
        %1082 = vmatpush1.xpose.msra.mxu0 0.0
        %1083 = vmatprep.subr.mxu0 0.0
        %1084 = vmatpush1.xpose.msra.mxu0 0.0
        %1085 = vmatprep.subr.mxu0 0.0
        %1086 = vmatpush1.xpose.msra.mxu0 0.0
        %1087 = vmatprep.subr.mxu0 0.0
        %1088 = vmatpush1.xpose.msra.mxu0 0.0
        %1089 = vmatprep.subr.mxu0 0.0
        %1090 = vmatpush1.xpose.msra.mxu0 0.0
        %1091 = vmatprep.subr.mxu0 0.0
        %1092 = vmatpush1.xpose.msra.mxu0 0.0
        %1093 = vmatprep.subr.mxu0 0.0
        %1094 = vmatpush1.xpose.msra.mxu0 %v1061
        %1095 = vmatprep.subr.mxu0 0.0
        %1096 = vmatpush2.xpose.msra.mxu0 0.0
        %1097 = vmatprep.subr.mxu0 0.0
        %1098 = vmatpush2.xpose.msra.mxu0 0.0
        %1099 = vmatprep.subr.mxu0 0.0
        %1100 = vmatpush2.xpose.msra.mxu0 0.0
        %1101 = vmatprep.subr.mxu0 0.0
        %1102 = vmatpush2.xpose.msra.mxu0 0.0
        %1103 = vmatprep.subr.mxu0 0.0
        %1104 = vmatpush2.xpose.msra.mxu0 0.0
        %1105 = vmatprep.subr.mxu0 0.0
        %1106 = vmatpush2.xpose.msra.mxu0 0.0
        %1107 = vmatprep.subr.mxu0 0.0
        %1108 = vmatpush2.xpose.msra.mxu0 0.0
        %1109 = vmatprep.subr.mxu0 0.0
        %1110 = vmatpush2.xpose.msra.mxu0 0.0
        %1111 = vmatprep.subr.mxu0 0.0
        %1112 = vmatpush2.xpose.msra.mxu0 0.0
        %1113 = vmatprep.subr.mxu0 0.0
        %1114 = vmatpush2.xpose.msra.mxu0 0.0
        %1115 = vmatprep.subr.mxu0 0.0
        %1116 = vmatpush2.xpose.msra.mxu0 0.0
        %1117 = vmatprep.subr.mxu0 0.0
        %1118 = vmatpush2.xpose.msra.mxu0 0.0
        %1119 = vmatprep.subr.mxu0 0.0
        %1120 = vmatpush2.xpose.msra.mxu0 0.0
        %1121 = vmatprep.subr.mxu0 0.0
        %1122 = vmatpush2.xpose.msra.mxu0 0.0
        %1123 = vmatprep.subr.mxu0 0.0
        %1124 = vmatpush2.xpose.msra.mxu0 0.0
        %1125 = vmatprep.subr.mxu0 0.0
        %1126 = vmatpush2.xpose.msra.mxu0 0.0
        %1127 = vmatprep.mubr.f32.mxu0 0.0
        %1128 = vmatmul.mubr.f32.gmra.mxu0 %v1059
        %v1129 = vpop.f32.mrf.mxu0
        %v1130 = vadd.f32 %v557, %v1129
        %v1131 = vpop.f32.mrf.mxu0
        %1132 = vdwg.mxu0
        %v1133 = vsel %vm562, %v1130, -inf
        %1134 = vmax.xlane.f32.xlu0 %v1133
        %v1135 = vpop.xlane.xlu0 %1134
        %v1136 = vsub.f32 %v1130, %v1135
        %v1137 = vmul.f32 %v1136, 1.442695
        %v1138 = vpow.pop %v1137
        %v1139 = vsel %vm562, %v1138, 0.0
        %1140 = vadd.xlane.f32.xlu0 %v1139
        %v1141 = vpop.xlane.xlu0 %1140
        %v1142 = vrcp.pop %v1141
        %v1143 = vmul.f32 %v1138, %v1142
        %1144 = vrot.lane.b32.xlu0 %v549, 40
        %v1145 = vpop.permute.xlu0 %1144
        %v1148 = vsel %vm562, %v1143, 0
        %1150 = vmatprep.subr.mxu0 0.0
        %1151 = vmatpush1.msra.mxu0 0.0
        %1152 = vmatprep.subr.mxu0 0.0
        %1153 = vmatpush1.msra.mxu0 0.0
        %1154 = vmatprep.subr.mxu0 0.0
        %1155 = vmatpush1.msra.mxu0 0.0
        %1156 = vmatprep.subr.mxu0 0.0
        %1157 = vmatpush1.msra.mxu0 0.0
        %1158 = vmatprep.subr.mxu0 0.0
        %1159 = vmatpush1.msra.mxu0 0.0
        %1160 = vmatprep.subr.mxu0 0.0
        %1161 = vmatpush1.msra.mxu0 0.0
        %1162 = vmatprep.subr.mxu0 0.0
        %1163 = vmatpush1.msra.mxu0 0.0
        %1164 = vmatprep.subr.mxu0 0.0
        %1165 = vmatpush1.msra.mxu0 0.0
        %1166 = vmatprep.subr.mxu0 0.0
        %1167 = vmatpush1.msra.mxu0 0.0
        %1168 = vmatprep.subr.mxu0 0.0
        %1169 = vmatpush1.msra.mxu0 0.0
        %1170 = vmatprep.subr.mxu0 0.0
        %1171 = vmatpush1.msra.mxu0 0.0
        %1172 = vmatprep.subr.mxu0 0.0
        %1173 = vmatpush1.msra.mxu0 0.0
        %1174 = vmatprep.subr.mxu0 0.0
        %1175 = vmatpush1.msra.mxu0 0.0
        %1176 = vmatprep.subr.mxu0 0.0
        %1177 = vmatpush1.msra.mxu0 0.0
        %1178 = vmatprep.subr.mxu0 0.0
        %1179 = vmatpush1.msra.mxu0 0.0
        %1180 = vmatprep.subr.mxu0 0.0
        %1181 = vmatpush1.msra.mxu0 %v1145
        %1182 = vmatprep.subr.mxu0 0.0
        %1183 = vmatpush2.msra.mxu0 0.0
        %1184 = vmatprep.subr.mxu0 0.0
        %1185 = vmatpush2.msra.mxu0 0.0
        %1186 = vmatprep.subr.mxu0 0.0
        %1187 = vmatpush2.msra.mxu0 0.0
        %1188 = vmatprep.subr.mxu0 0.0
        %1189 = vmatpush2.msra.mxu0 0.0
        %1190 = vmatprep.subr.mxu0 0.0
        %1191 = vmatpush2.msra.mxu0 0.0
        %1192 = vmatprep.subr.mxu0 0.0
        %1193 = vmatpush2.msra.mxu0 0.0
        %1194 = vmatprep.subr.mxu0 0.0
        %1195 = vmatpush2.msra.mxu0 0.0
        %1196 = vmatprep.subr.mxu0 0.0
        %1197 = vmatpush2.msra.mxu0 0.0
        %1198 = vmatprep.subr.mxu0 0.0
        %1199 = vmatpush2.msra.mxu0 0.0
        %1200 = vmatprep.subr.mxu0 0.0
        %1201 = vmatpush2.msra.mxu0 0.0
        %1202 = vmatprep.subr.mxu0 0.0
        %1203 = vmatpush2.msra.mxu0 0.0
        %1204 = vmatprep.subr.mxu0 0.0
        %1205 = vmatpush2.msra.mxu0 0.0
        %1206 = vmatprep.subr.mxu0 0.0
        %1207 = vmatpush2.msra.mxu0 0.0
        %1208 = vmatprep.subr.mxu0 0.0
        %1209 = vmatpush2.msra.mxu0 0.0
        %1210 = vmatprep.subr.mxu0 0.0
        %1211 = vmatpush2.msra.mxu0 0.0
        %1212 = vmatprep.subr.mxu0 0.0
        %1213 = vmatpush2.msra.mxu0 0.0
        %1214 = vmatprep.mubr.f32.mxu0 0.0
        %1215 = vmatmul.mubr.f32.gmra.mxu0 %v1148
        %v1216 = vpop.f32.mrf.mxu0
        %v1217 = vadd.f32 0.0, %v1216
        %v1218 = vpop.f32.mrf.mxu0
        %1219 = vdwg.mxu0
        %1221 = vrot.lane.b32.xlu0 %v887, 8
        %v1222 = vpop.permute.xlu0 %1221
        %1225 = vrot.lane.b32.xlu0 %v1052, 16
        %v1226 = vpop.permute.xlu0 %1225
        %1229 = vrot.lane.b32.xlu0 %v1217, 24
        %v1230 = vpop.permute.xlu0 %1229
        %v1232 = vsel %vm562, %v722, %v1222
        %vm1233 = vcmask 130048
        %v1234 = vsel %vm1233, %v1232, %v1226
        %vm1235 = vcmask 195584
        %v1236 = vsel %vm1235, %v1234, %v1230
        %v1237 = vld [vmem:[%s10] sm:$0xf]
        %v1238 = vld [vmem:[%s4] sm:$0xff]
        %v1239 = vld [vmem:[%s4 + $0x8] sm:$0xff]
        %v1240 = vld [vmem:[%s4 + $0x10] sm:$0xff]
        %v1241 = vld [vmem:[%s4 + $0x18] sm:$0xff]
        %v1242 = vld [vmem:[#allocation7] sm:$0x1]
        %v1244 = vlaneseq
        %v1245 = vshrl.u32 %v1244, 7
        %v1246 = vsub.s32 0, %v1245
        %v1247 = vrot.slane %v1242, %v1246
        %v1250 = vsel %vm478, %v1236, 0
        %1252 = vmatprep.subr.mxu0 0.0
        %1253 = vmatpush1.msra.mxu0 0.0
        %1254 = vmatprep.subr.mxu0 0.0
        %1255 = vmatpush1.msra.mxu0 0.0
        %1256 = vmatprep.subr.mxu0 0.0
        %1257 = vmatpush1.msra.mxu0 0.0
        %1258 = vmatprep.subr.mxu0 0.0
        %1259 = vmatpush1.msra.mxu0 0.0
        %1260 = vmatprep.subr.mxu0 0.0
        %1261 = vmatpush1.msra.mxu0 0.0
        %1262 = vmatprep.subr.mxu0 0.0
        %1263 = vmatpush1.msra.mxu0 0.0
        %1264 = vmatprep.subr.mxu0 0.0
        %1265 = vmatpush1.msra.mxu0 0.0
        %1266 = vmatprep.subr.mxu0 0.0
        %1267 = vmatpush1.msra.mxu0 0.0
        %1268 = vmatprep.subr.mxu0 0.0
        %1269 = vmatpush1.msra.mxu0 0.0
        %1270 = vmatprep.subr.mxu0 0.0
        %1271 = vmatpush1.msra.mxu0 0.0
        %1272 = vmatprep.subr.mxu0 0.0
        %1273 = vmatpush1.msra.mxu0 0.0
        %1274 = vmatprep.subr.mxu0 0.0
        %1275 = vmatpush1.msra.mxu0 0.0
        %1276 = vmatprep.subr.mxu0 0.0
        %1277 = vmatpush1.msra.mxu0 %v1241
        %1278 = vmatprep.subr.mxu0 0.0
        %1279 = vmatpush1.msra.mxu0 %v1240
        %1280 = vmatprep.subr.mxu0 0.0
        %1281 = vmatpush1.msra.mxu0 %v1239
        %1282 = vmatprep.subr.mxu0 0.0
        %1283 = vmatpush1.msra.mxu0 %v1238
        %1284 = vmatprep.subr.mxu0 0.0
        %1285 = vmatpush2.msra.mxu0 0.0
        %1286 = vmatprep.subr.mxu0 0.0
        %1287 = vmatpush2.msra.mxu0 0.0
        %1288 = vmatprep.subr.mxu0 0.0
        %1289 = vmatpush2.msra.mxu0 0.0
        %1290 = vmatprep.subr.mxu0 0.0
        %1291 = vmatpush2.msra.mxu0 0.0
        %1292 = vmatprep.subr.mxu0 0.0
        %1293 = vmatpush2.msra.mxu0 0.0
        %1294 = vmatprep.subr.mxu0 0.0
        %1295 = vmatpush2.msra.mxu0 0.0
        %1296 = vmatprep.subr.mxu0 0.0
        %1297 = vmatpush2.msra.mxu0 0.0
        %1298 = vmatprep.subr.mxu0 0.0
        %1299 = vmatpush2.msra.mxu0 0.0
        %1300 = vmatprep.subr.mxu0 0.0
        %1301 = vmatpush2.msra.mxu0 0.0
        %1302 = vmatprep.subr.mxu0 0.0
        %1303 = vmatpush2.msra.mxu0 0.0
        %1304 = vmatprep.subr.mxu0 0.0
        %1305 = vmatpush2.msra.mxu0 0.0
        %1306 = vmatprep.subr.mxu0 0.0
        %1307 = vmatpush2.msra.mxu0 0.0
        %1308 = vmatprep.subr.mxu0 0.0
        %1309 = vmatpush2.msra.mxu0 0.0
        %1310 = vmatprep.subr.mxu0 0.0
        %1311 = vmatpush2.msra.mxu0 0.0
        %1312 = vmatprep.subr.mxu0 0.0
        %1313 = vmatpush2.msra.mxu0 0.0
        %1314 = vmatprep.subr.mxu0 0.0
        %1315 = vmatpush2.msra.mxu0 0.0
        %1316 = vmatprep.mubr.f32.mxu0 0.0
        %1317 = vmatmul.mubr.f32.gmra.mxu0 %v1250
        %v1318 = vpop.f32.mrf.mxu0
        %v1319 = vadd.f32 %v1247, %v1318
        %v1320 = vpop.f32.mrf.mxu0
        %1321 = vdwg.mxu0
        %v1322 = vadd.f32 %v1319, %v465
        %v1323 = vsel %vm478, %v1322, 0.0
        %1324 = vadd.xlane.f32.xlu0 %v1323
        %v1325 = vpop.xlane.xlu0 %1324
        %v1326 = vrcp.pop 32.0
        %v1327 = vmul.f32 %v1325, %v1326
        %v1328 = vsub.f32 %v1322, %v1327
        %v1329 = vmul.f32 %v1328, %v1328
        %v1330 = vsel %vm478, %v1329, 0.0
        %1331 = vadd.xlane.f32.xlu0 %v1330
        %v1332 = vpop.xlane.xlu0 %1331
        %v1333 = vmul.f32 %v1332, %v1326
        %v1334 = vadd.f32 %v1333, 1e-12
        %v1335 = vrsqrt.pop %v1334
        %v1336 = vmul.f32 %v1328, %v1335
        %v1337 = vlaneseq
        %v1338 = vshrl.u32 %v1337, 7
        %v1339 = vsub.s32 0, %v1338
        %v1340 = vrot.slane %v1237, %v1339
        %v1341 = vmul.f32 %v1336, %v1340
        %v1342 = vlaneseq
        %v1343 = vshrl.u32 %v1342, 7
        %v1344 = vsub.s32 1, %v1343
        %v1345 = vrot.slane %v1237, %v1344
        %v1346 = vadd.f32 %v1341, %v1345
        %v1347 = vld [vmem:[%s6] sm:$0xff]
        %v1348 = vld [vmem:[%s6 + $0x8] sm:$0xff]
        %v1349 = vld [vmem:[%s6 + $0x10] sm:$0xff]
        %v1350 = vld [vmem:[%s6 + $0x18] sm:$0xff]
        %v1351 = vld [vmem:[#allocation8] sm:$0x1]
        %v1353 = vlaneseq
        %v1354 = vshrl.u32 %v1353, 7
        %v1355 = vsub.s32 0, %v1354
        %v1356 = vrot.slane %v1351, %v1355
        %v1359 = vsel %vm478, %v1346, 0
        %1361 = vmatprep.subr.mxu0 0.0
        %1362 = vmatpush1.msra.mxu0 0.0
        %1363 = vmatprep.subr.mxu0 0.0
        %1364 = vmatpush1.msra.mxu0 0.0
        %1365 = vmatprep.subr.mxu0 0.0
        %1366 = vmatpush1.msra.mxu0 0.0
        %1367 = vmatprep.subr.mxu0 0.0
        %1368 = vmatpush1.msra.mxu0 0.0
        %1369 = vmatprep.subr.mxu0 0.0
        %1370 = vmatpush1.msra.mxu0 0.0
        %1371 = vmatprep.subr.mxu0 0.0
        %1372 = vmatpush1.msra.mxu0 0.0
        %1373 = vmatprep.subr.mxu0 0.0
        %1374 = vmatpush1.msra.mxu0 0.0
        %1375 = vmatprep.subr.mxu0 0.0
        %1376 = vmatpush1.msra.mxu0 0.0
        %1377 = vmatprep.subr.mxu0 0.0
        %1378 = vmatpush1.msra.mxu0 0.0
        %1379 = vmatprep.subr.mxu0 0.0
        %1380 = vmatpush1.msra.mxu0 0.0
        %1381 = vmatprep.subr.mxu0 0.0
        %1382 = vmatpush1.msra.mxu0 0.0
        %1383 = vmatprep.subr.mxu0 0.0
        %1384 = vmatpush1.msra.mxu0 0.0
        %1385 = vmatprep.subr.mxu0 0.0
        %1386 = vmatpush1.msra.mxu0 %v1350
        %1387 = vmatprep.subr.mxu0 0.0
        %1388 = vmatpush1.msra.mxu0 %v1349
        %1389 = vmatprep.subr.mxu0 0.0
        %1390 = vmatpush1.msra.mxu0 %v1348
        %1391 = vmatprep.subr.mxu0 0.0
        %1392 = vmatpush1.msra.mxu0 %v1347
        %1393 = vmatprep.subr.mxu0 0.0
        %1394 = vmatpush2.msra.mxu0 0.0
        %1395 = vmatprep.subr.mxu0 0.0
        %1396 = vmatpush2.msra.mxu0 0.0
        %1397 = vmatprep.subr.mxu0 0.0
        %1398 = vmatpush2.msra.mxu0 0.0
        %1399 = vmatprep.subr.mxu0 0.0
        %1400 = vmatpush2.msra.mxu0 0.0
        %1401 = vmatprep.subr.mxu0 0.0
        %1402 = vmatpush2.msra.mxu0 0.0
        %1403 = vmatprep.subr.mxu0 0.0
        %1404 = vmatpush2.msra.mxu0 0.0
        %1405 = vmatprep.subr.mxu0 0.0
        %1406 = vmatpush2.msra.mxu0 0.0
        %1407 = vmatprep.subr.mxu0 0.0
        %1408 = vmatpush2.msra.mxu0 0.0
        %1409 = vmatprep.subr.mxu0 0.0
        %1410 = vmatpush2.msra.mxu0 0.0
        %1411 = vmatprep.subr.mxu0 0.0
        %1412 = vmatpush2.msra.mxu0 0.0
        %1413 = vmatprep.subr.mxu0 0.0
        %1414 = vmatpush2.msra.mxu0 0.0
        %1415 = vmatprep.subr.mxu0 0.0
        %1416 = vmatpush2.msra.mxu0 0.0
        %1417 = vmatprep.subr.mxu0 0.0
        %1418 = vmatpush2.msra.mxu0 0.0
        %1419 = vmatprep.subr.mxu0 0.0
        %1420 = vmatpush2.msra.mxu0 0.0
        %1421 = vmatprep.subr.mxu0 0.0
        %1422 = vmatpush2.msra.mxu0 0.0
        %1423 = vmatprep.subr.mxu0 0.0
        %1424 = vmatpush2.msra.mxu0 0.0
        %1425 = vmatprep.mubr.f32.mxu0 0.0
        %1426 = vmatmul.mubr.f32.gmra.mxu0 %v1359
        %v1427 = vpop.f32.mrf.mxu0
        %v1428 = vadd.f32 %v1356, %v1427
        %v1429 = vpop.f32.mrf.mxu0
        %1430 = vdwg.mxu0
        %v1431 = vmul.f32 %v1428, 0.5
        %v1432 = vmul.f32 %v1428, 0.70710677
        %vm1433 = vcmp.ge.f32.partialorder %v1432, 0.0
        %v1434 = vsel %vm1433, 1.0, -1.0
        %v1435 = vand.u32 2147483647, %v1432
        %v1436 = vmul.f32 %v1435, 0.3275911
        %v1437 = vadd.f32 %v1436, 1.0
        %v1438 = vrcp.pop %v1437
        %v1439 = vmul.f32 1.0, %v1438
        %v1440 = vmul.f32 %v1439, 1.0614054
        %v1441 = vadd.f32 %v1440, -1.4531521
        %v1442 = vmul.f32 %v1441, %v1439
        %v1443 = vadd.f32 %v1442, 1.4214138
        %v1444 = vmul.f32 %v1443, %v1439
        %v1445 = vadd.f32 %v1444, -0.28449672
        %v1446 = vmul.f32 %v1445, %v1439
        %v1447 = vadd.f32 %v1446, 0.2548296
        %v1448 = vmul.f32 %v1447, %v1439
        %v1449 = vsub.f32 0.0, %v1435
        %v1450 = vmul.f32 %v1449, %v1435
        %v1451 = vmul.f32 %v1450, 1.442695
        %v1452 = vpow.pop %v1451
        %v1453 = vmul.f32 %v1448, %v1452
        %v1454 = vsub.f32 1.0, %v1453
        %v1455 = vmul.f32 %v1434, %v1454
        %v1456 = vadd.f32 %v1455, 1.0
        %v1457 = vmul.f32 %v1431, %v1456
        %v1458 = vld [vmem:[%s8] sm:$0xff]
        %v1459 = vld [vmem:[%s8 + $0x8] sm:$0xff]
        %v1460 = vld [vmem:[%s8 + $0x10] sm:$0xff]
        %v1461 = vld [vmem:[%s8 + $0x18] sm:$0xff]
        %v1462 = vld [vmem:[%s8 + $0x20] sm:$0xff]
        %v1463 = vld [vmem:[%s8 + $0x28] sm:$0xff]
        %v1464 = vld [vmem:[%s8 + $0x30] sm:$0xff]
        %v1465 = vld [vmem:[%s8 + $0x38] sm:$0xff]
        %v1466 = vld [vmem:[%s9] sm:$0x1]
        %v1468 = vlaneseq
        %v1469 = vshrl.u32 %v1468, 7
        %v1470 = vsub.s32 0, %v1469
        %v1471 = vrot.slane %v1466, %v1470
        %vm1473 = vcmask 523264
        %v1475 = vsel %vm1473, %v1457, 0
        %1477 = vmatprep.subr.mxu0 0.0
        %1478 = vmatpush1.msra.mxu0 0.0
        %1479 = vmatprep.subr.mxu0 0.0
        %1480 = vmatpush1.msra.mxu0 0.0
        %1481 = vmatprep.subr.mxu0 0.0
        %1482 = vmatpush1.msra.mxu0 0.0
        %1483 = vmatprep.subr.mxu0 0.0
        %1484 = vmatpush1.msra.mxu0 0.0
        %1485 = vmatprep.subr.mxu0 0.0
        %1486 = vmatpush1.msra.mxu0 0.0
        %1487 = vmatprep.subr.mxu0 0.0
        %1488 = vmatpush1.msra.mxu0 0.0
        %1489 = vmatprep.subr.mxu0 0.0
        %1490 = vmatpush1.msra.mxu0 0.0
        %1491 = vmatprep.subr.mxu0 0.0
        %1492 = vmatpush1.msra.mxu0 0.0
        %1493 = vmatprep.subr.mxu0 0.0
        %1494 = vmatpush1.msra.mxu0 %v1465
        %1495 = vmatprep.subr.mxu0 0.0
        %1496 = vmatpush1.msra.mxu0 %v1464
        %1497 = vmatprep.subr.mxu0 0.0
        %1498 = vmatpush1.msra.mxu0 %v1463
        %1499 = vmatprep.subr.mxu0 0.0
        %1500 = vmatpush1.msra.mxu0 %v1462
        %1501 = vmatprep.subr.mxu0 0.0
        %1502 = vmatpush1.msra.mxu0 %v1461
        %1503 = vmatprep.subr.mxu0 0.0
        %1504 = vmatpush1.msra.mxu0 %v1460
        %1505 = vmatprep.subr.mxu0 0.0
        %1506 = vmatpush1.msra.mxu0 %v1459
        %1507 = vmatprep.subr.mxu0 0.0
        %1508 = vmatpush1.msra.mxu0 %v1458
        %1509 = vmatprep.subr.mxu0 0.0
        %1510 = vmatpush2.msra.mxu0 0.0
        %1511 = vmatprep.subr.mxu0 0.0
        %1512 = vmatpush2.msra.mxu0 0.0
        %1513 = vmatprep.subr.mxu0 0.0
        %1514 = vmatpush2.msra.mxu0 0.0
        %1515 = vmatprep.subr.mxu0 0.0
        %1516 = vmatpush2.msra.mxu0 0.0
        %1517 = vmatprep.subr.mxu0 0.0
        %1518 = vmatpush2.msra.mxu0 0.0
        %1519 = vmatprep.subr.mxu0 0.0
        %1520 = vmatpush2.msra.mxu0 0.0
        %1521 = vmatprep.subr.mxu0 0.0
        %1522 = vmatpush2.msra.mxu0 0.0
        %1523 = vmatprep.subr.mxu0 0.0
        %1524 = vmatpush2.msra.mxu0 0.0
        %1525 = vmatprep.subr.mxu0 0.0
        %1526 = vmatpush2.msra.mxu0 0.0
        %1527 = vmatprep.subr.mxu0 0.0
        %1528 = vmatpush2.msra.mxu0 0.0
        %1529 = vmatprep.subr.mxu0 0.0
        %1530 = vmatpush2.msra.mxu0 0.0
        %1531 = vmatprep.subr.mxu0 0.0
        %1532 = vmatpush2.msra.mxu0 0.0
        %1533 = vmatprep.subr.mxu0 0.0
        %1534 = vmatpush2.msra.mxu0 0.0
        %1535 = vmatprep.subr.mxu0 0.0
        %1536 = vmatpush2.msra.mxu0 0.0
        %1537 = vmatprep.subr.mxu0 0.0
        %1538 = vmatpush2.msra.mxu0 0.0
        %1539 = vmatprep.subr.mxu0 0.0
        %1540 = vmatpush2.msra.mxu0 0.0
        %1541 = vmatprep.mubr.f32.mxu0 0.0
        %1542 = vmatmul.mubr.f32.gmra.mxu0 %v1475
        %v1543 = vpop.f32.mrf.mxu0
        %v1544 = vadd.f32 %v1471, %v1543
        %v1545 = vpop.f32.mrf.mxu0
        %1546 = vdwg.mxu0
        %v1547 = vadd.f32 %v1544, %v1346
        %v1548 = vsel %vm478, %v1547, 0.0
        %1549 = vadd.xlane.f32.xlu0 %v1548
        %v1550 = vpop.xlane.xlu0 %1549
        %v1551 = vmul.f32 %v1550, %v1326
        %v1552 = vsub.f32 %v1547, %v1551
        %v1553 = vmul.f32 %v1552, %v1552
        %v1554 = vsel %vm478, %v1553, 0.0
        %1555 = vadd.xlane.f32.xlu0 %v1554
        %v1556 = vpop.xlane.xlu0 %1555
        %v1557 = vmul.f32 %v1556, %v1326
        %v1558 = vadd.f32 %v1557, 1e-12
        %v1559 = vrsqrt.pop %v1558
        %v1560 = vmul.f32 %v1552, %v1559
        %v1561 = vlaneseq
        %v1562 = vshrl.u32 %v1561, 7
        %v1563 = vsub.s32 2, %v1562
        %v1564 = vrot.slane %v1237, %v1563
        %v1565 = vmul.f32 %v1560, %v1564
        %v1566 = vlaneseq
        %v1567 = vshrl.u32 %v1566, 7
        %v1568 = vsub.s32 3, %v1567
        %v1569 = vrot.slane %v1237, %v1568
        %v1570 = vadd.f32 %v1565, %v1569
        %s1571 = scalar_lea.vmem %s2, 32
        %v1572 = vld [vmem:[%s1571] sm:$0xff]
        %v1573 = vld [vmem:[%s1571 + $0x8] sm:$0xff]
        %v1574 = vld [vmem:[%s1571 + $0x10] sm:$0xff]
        %v1575 = vld [vmem:[%s1571 + $0x18] sm:$0xff]
        %s1576 = scalar_lea.vmem %s3, 1
        %v1577 = vld [vmem:[%s1576] sm:$0x1]
        %v1579 = vlaneseq
        %v1580 = vshrl.u32 %v1579, 7
        %v1581 = vsub.s32 0, %v1580
        %v1582 = vrot.slane %v1577, %v1581
        %v1585 = vsel %vm478, %v1570, 0
        %1587 = vmatprep.subr.mxu0 0.0
        %1588 = vmatpush1.msra.mxu0 0.0
        %1589 = vmatprep.subr.mxu0 0.0
        %1590 = vmatpush1.msra.mxu0 0.0
        %1591 = vmatprep.subr.mxu0 0.0
        %1592 = vmatpush1.msra.mxu0 0.0
        %1593 = vmatprep.subr.mxu0 0.0
        %1594 = vmatpush1.msra.mxu0 0.0
        %1595 = vmatprep.subr.mxu0 0.0
        %1596 = vmatpush1.msra.mxu0 0.0
        %1597 = vmatprep.subr.mxu0 0.0
        %1598 = vmatpush1.msra.mxu0 0.0
        %1599 = vmatprep.subr.mxu0 0.0
        %1600 = vmatpush1.msra.mxu0 0.0
        %1601 = vmatprep.subr.mxu0 0.0
        %1602 = vmatpush1.msra.mxu0 0.0
        %1603 = vmatprep.subr.mxu0 0.0
        %1604 = vmatpush1.msra.mxu0 0.0
        %1605 = vmatprep.subr.mxu0 0.0
        %1606 = vmatpush1.msra.mxu0 0.0
        %1607 = vmatprep.subr.mxu0 0.0
        %1608 = vmatpush1.msra.mxu0 0.0
        %1609 = vmatprep.subr.mxu0 0.0
        %1610 = vmatpush1.msra.mxu0 0.0
        %1611 = vmatprep.subr.mxu0 0.0
        %1612 = vmatpush1.msra.mxu0 %v1575
        %1613 = vmatprep.subr.mxu0 0.0
        %1614 = vmatpush1.msra.mxu0 %v1574
        %1615 = vmatprep.subr.mxu0 0.0
        %1616 = vmatpush1.msra.mxu0 %v1573
        %1617 = vmatprep.subr.mxu0 0.0
        %1618 = vmatpush1.msra.mxu0 %v1572
        %1619 = vmatprep.subr.mxu0 0.0
        %1620 = vmatpush2.msra.mxu0 0.0
        %1621 = vmatprep.subr.mxu0 0.0
        %1622 = vmatpush2.msra.mxu0 0.0
        %1623 = vmatprep.subr.mxu0 0.0
        %1624 = vmatpush2.msra.mxu0 0.0
        %1625 = vmatprep.subr.mxu0 0.0
        %1626 = vmatpush2.msra.mxu0 0.0
        %1627 = vmatprep.subr.mxu0 0.0
        %1628 = vmatpush2.msra.mxu0 0.0
        %1629 = vmatprep.subr.mxu0 0.0
        %1630 = vmatpush2.msra.mxu0 0.0
        %1631 = vmatprep.subr.mxu0 0.0
        %1632 = vmatpush2.msra.mxu0 0.0
        %1633 = vmatprep.subr.mxu0 0.0
        %1634 = vmatpush2.msra.mxu0 0.0
        %1635 = vmatprep.subr.mxu0 0.0
        %1636 = vmatpush2.msra.mxu0 0.0
        %1637 = vmatprep.subr.mxu0 0.0
        %1638 = vmatpush2.msra.mxu0 0.0
        %1639 = vmatprep.subr.mxu0 0.0
        %1640 = vmatpush2.msra.mxu0 0.0
        %1641 = vmatprep.subr.mxu0 0.0
        %1642 = vmatpush2.msra.mxu0 0.0
        %1643 = vmatprep.subr.mxu0 0.0
        %1644 = vmatpush2.msra.mxu0 0.0
        %1645 = vmatprep.subr.mxu0 0.0
        %1646 = vmatpush2.msra.mxu0 0.0
        %1647 = vmatprep.subr.mxu0 0.0
        %1648 = vmatpush2.msra.mxu0 0.0
        %1649 = vmatprep.subr.mxu0 0.0
        %1650 = vmatpush2.msra.mxu0 0.0
        %1651 = vmatprep.mubr.f32.mxu0 0.0
        %1652 = vmatmul.mubr.f32.gmra.mxu0 %v1585
        %v1653 = vpop.f32.mrf.mxu0
        %v1654 = vadd.f32 %v1582, %v1653
        %v1655 = vpop.f32.mrf.mxu0
        %1656 = vdwg.mxu0
        %v1657 = vmul.f32 %v1654, 0.35355338
        %1659 = vrot.lane.b32.xlu0 %v1654, 96
        %v1660 = vpop.permute.xlu0 %1659
        %v1662 = vsel %vm562, %v1657, 0
        %v1664 = vsel %vm562, %v1660, 0
        %1666 = vmatprep.subr.mxu0 0.0
        %1667 = vmatpush1.xpose.msra.mxu0 0.0
        %1668 = vmatprep.subr.mxu0 0.0
        %1669 = vmatpush1.xpose.msra.mxu0 0.0
        %1670 = vmatprep.subr.mxu0 0.0
        %1671 = vmatpush1.xpose.msra.mxu0 0.0
        %1672 = vmatprep.subr.mxu0 0.0
        %1673 = vmatpush1.xpose.msra.mxu0 0.0
        %1674 = vmatprep.subr.mxu0 0.0
        %1675 = vmatpush1.xpose.msra.mxu0 0.0
        %1676 = vmatprep.subr.mxu0 0.0
        %1677 = vmatpush1.xpose.msra.mxu0 0.0
        %1678 = vmatprep.subr.mxu0 0.0
        %1679 = vmatpush1.xpose.msra.mxu0 0.0
        %1680 = vmatprep.subr.mxu0 0.0
        %1681 = vmatpush1.xpose.msra.mxu0 0.0
        %1682 = vmatprep.subr.mxu0 0.0
        %1683 = vmatpush1.xpose.msra.mxu0 0.0
        %1684 = vmatprep.subr.mxu0 0.0
        %1685 = vmatpush1.xpose.msra.mxu0 0.0
        %1686 = vmatprep.subr.mxu0 0.0
        %1687 = vmatpush1.xpose.msra.mxu0 0.0
        %1688 = vmatprep.subr.mxu0 0.0
        %1689 = vmatpush1.xpose.msra.mxu0 0.0
        %1690 = vmatprep.subr.mxu0 0.0
        %1691 = vmatpush1.xpose.msra.mxu0 0.0
        %1692 = vmatprep.subr.mxu0 0.0
        %1693 = vmatpush1.xpose.msra.mxu0 0.0
        %1694 = vmatprep.subr.mxu0 0.0
        %1695 = vmatpush1.xpose.msra.mxu0 0.0
        %1696 = vmatprep.subr.mxu0 0.0
        %1697 = vmatpush1.xpose.msra.mxu0 %v1664
        %1698 = vmatprep.subr.mxu0 0.0
        %1699 = vmatpush2.xpose.msra.mxu0 0.0
        %1700 = vmatprep.subr.mxu0 0.0
        %1701 = vmatpush2.xpose.msra.mxu0 0.0
        %1702 = vmatprep.subr.mxu0 0.0
        %1703 = vmatpush2.xpose.msra.mxu0 0.0
        %1704 = vmatprep.subr.mxu0 0.0
        %1705 = vmatpush2.xpose.msra.mxu0 0.0
        %1706 = vmatprep.subr.mxu0 0.0
        %1707 = vmatpush2.xpose.msra.mxu0 0.0
        %1708 = vmatprep.subr.mxu0 0.0
        %1709 = vmatpush2.xpose.msra.mxu0 0.0
        %1710 = vmatprep.subr.mxu0 0.0
        %1711 = vmatpush2.xpose.msra.mxu0 0.0
        %1712 = vmatprep.subr.mxu0 0.0
        %1713 = vmatpush2.xpose.msra.mxu0 0.0
        %1714 = vmatprep.subr.mxu0 0.0
        %1715 = vmatpush2.xpose.msra.mxu0 0.0
        %1716 = vmatprep.subr.mxu0 0.0
        %1717 = vmatpush2.xpose.msra.mxu0 0.0
        %1718 = vmatprep.subr.mxu0 0.0
        %1719 = vmatpush2.xpose.msra.mxu0 0.0
        %1720 = vmatprep.subr.mxu0 0.0
        %1721 = vmatpush2.xpose.msra.mxu0 0.0
        %1722 = vmatprep.subr.mxu0 0.0
        %1723 = vmatpush2.xpose.msra.mxu0 0.0
        %1724 = vmatprep.subr.mxu0 0.0
        %1725 = vmatpush2.xpose.msra.mxu0 0.0
        %1726 = vmatprep.subr.mxu0 0.0
        %1727 = vmatpush2.xpose.msra.mxu0 0.0
        %1728 = vmatprep.subr.mxu0 0.0
        %1729 = vmatpush2.xpose.msra.mxu0 0.0
        %1730 = vmatprep.mubr.f32.mxu0 0.0
        %1731 = vmatmul.mubr.f32.gmra.mxu0 %v1662
        %v1732 = vpop.f32.mrf.mxu0
        %v1733 = vadd.f32 %v557, %v1732
        %v1734 = vpop.f32.mrf.mxu0
        %1735 = vdwg.mxu0
        %v1736 = vsel %vm562, %v1733, -inf
        %1737 = vmax.xlane.f32.xlu0 %v1736
        %v1738 = vpop.xlane.xlu0 %1737
        %v1739 = vsub.f32 %v1733, %v1738
        %v1740 = vmul.f32 %v1739, 1.442695
        %v1741 = vpow.pop %v1740
        %v1742 = vsel %vm562, %v1741, 0.0
        %1743 = vadd.xlane.f32.xlu0 %v1742
        %v1744 = vpop.xlane.xlu0 %1743
        %v1745 = vrcp.pop %v1744
        %v1746 = vmul.f32 %v1741, %v1745
        %1747 = vrot.lane.b32.xlu0 %v1654, 64
        %v1748 = vpop.permute.xlu0 %1747
        %v1751 = vsel %vm562, %v1746, 0
        %1753 = vmatprep.subr.mxu0 0.0
        %1754 = vmatpush1.msra.mxu0 0.0
        %1755 = vmatprep.subr.mxu0 0.0
        %1756 = vmatpush1.msra.mxu0 0.0
        %1757 = vmatprep.subr.mxu0 0.0
        %1758 = vmatpush1.msra.mxu0 0.0
        %1759 = vmatprep.subr.mxu0 0.0
        %1760 = vmatpush1.msra.mxu0 0.0
        %1761 = vmatprep.subr.mxu0 0.0
        %1762 = vmatpush1.msra.mxu0 0.0
        %1763 = vmatprep.subr.mxu0 0.0
        %1764 = vmatpush1.msra.mxu0 0.0
        %1765 = vmatprep.subr.mxu0 0.0
        %1766 = vmatpush1.msra.mxu0 0.0
        %1767 = vmatprep.subr.mxu0 0.0
        %1768 = vmatpush1.msra.mxu0 0.0
        %1769 = vmatprep.subr.mxu0 0.0
        %1770 = vmatpush1.msra.mxu0 0.0
        %1771 = vmatprep.subr.mxu0 0.0
        %1772 = vmatpush1.msra.mxu0 0.0
        %1773 = vmatprep.subr.mxu0 0.0
        %1774 = vmatpush1.msra.mxu0 0.0
        %1775 = vmatprep.subr.mxu0 0.0
        %1776 = vmatpush1.msra.mxu0 0.0
        %1777 = vmatprep.subr.mxu0 0.0
        %1778 = vmatpush1.msra.mxu0 0.0
        %1779 = vmatprep.subr.mxu0 0.0
        %1780 = vmatpush1.msra.mxu0 0.0
        %1781 = vmatprep.subr.mxu0 0.0
        %1782 = vmatpush1.msra.mxu0 0.0
        %1783 = vmatprep.subr.mxu0 0.0
        %1784 = vmatpush1.msra.mxu0 %v1748
        %1785 = vmatprep.subr.mxu0 0.0
        %1786 = vmatpush2.msra.mxu0 0.0
        %1787 = vmatprep.subr.mxu0 0.0
        %1788 = vmatpush2.msra.mxu0 0.0
        %1789 = vmatprep.subr.mxu0 0.0
        %1790 = vmatpush2.msra.mxu0 0.0
        %1791 = vmatprep.subr.mxu0 0.0
        %1792 = vmatpush2.msra.mxu0 0.0
        %1793 = vmatprep.subr.mxu0 0.0
        %1794 = vmatpush2.msra.mxu0 0.0
        %1795 = vmatprep.subr.mxu0 0.0
        %1796 = vmatpush2.msra.mxu0 0.0
        %1797 = vmatprep.subr.mxu0 0.0
        %1798 = vmatpush2.msra.mxu0 0.0
        %1799 = vmatprep.subr.mxu0 0.0
        %1800 = vmatpush2.msra.mxu0 0.0
        %1801 = vmatprep.subr.mxu0 0.0
        %1802 = vmatpush2.msra.mxu0 0.0
        %1803 = vmatprep.subr.mxu0 0.0
        %1804 = vmatpush2.msra.mxu0 0.0
        %1805 = vmatprep.subr.mxu0 0.0
        %1806 = vmatpush2.msra.mxu0 0.0
        %1807 = vmatprep.subr.mxu0 0.0
        %1808 = vmatpush2.msra.mxu0 0.0
        %1809 = vmatprep.subr.mxu0 0.0
        %1810 = vmatpush2.msra.mxu0 0.0
        %1811 = vmatprep.subr.mxu0 0.0
        %1812 = vmatpush2.msra.mxu0 0.0
        %1813 = vmatprep.subr.mxu0 0.0
        %1814 = vmatpush2.msra.mxu0 0.0
        %1815 = vmatprep.subr.mxu0 0.0
        %1816 = vmatpush2.msra.mxu0 0.0
        %1817 = vmatprep.mubr.f32.mxu0 0.0
        %1818 = vmatmul.mubr.f32.gmra.mxu0 %v1751
        %v1819 = vpop.f32.mrf.mxu0
        %v1820 = vadd.f32 0.0, %v1819
        %v1821 = vpop.f32.mrf.mxu0
        %1822 = vdwg.mxu0
        %1823 = vrot.lane.b32.xlu0 %v1657, 120
        %v1824 = vpop.permute.xlu0 %1823
        %1825 = vrot.lane.b32.xlu0 %v1654, 88
        %v1826 = vpop.permute.xlu0 %1825
        %v1827 = vsel %vm562, %v1824, 0
        %v1829 = vsel %vm562, %v1826, 0
        %1831 = vmatprep.subr.mxu0 0.0
        %1832 = vmatpush1.xpose.msra.mxu0 0.0
        %1833 = vmatprep.subr.mxu0 0.0
        %1834 = vmatpush1.xpose.msra.mxu0 0.0
        %1835 = vmatprep.subr.mxu0 0.0
        %1836 = vmatpush1.xpose.msra.mxu0 0.0
        %1837 = vmatprep.subr.mxu0 0.0
        %1838 = vmatpush1.xpose.msra.mxu0 0.0
        %1839 = vmatprep.subr.mxu0 0.0
        %1840 = vmatpush1.xpose.msra.mxu0 0.0
        %1841 = vmatprep.subr.mxu0 0.0
        %1842 = vmatpush1.xpose.msra.mxu0 0.0
        %1843 = vmatprep.subr.mxu0 0.0
        %1844 = vmatpush1.xpose.msra.mxu0 0.0
        %1845 = vmatprep.subr.mxu0 0.0
        %1846 = vmatpush1.xpose.msra.mxu0 0.0
        %1847 = vmatprep.subr.mxu0 0.0
        %1848 = vmatpush1.xpose.msra.mxu0 0.0
        %1849 = vmatprep.subr.mxu0 0.0
        %1850 = vmatpush1.xpose.msra.mxu0 0.0
        %1851 = vmatprep.subr.mxu0 0.0
        %1852 = vmatpush1.xpose.msra.mxu0 0.0
        %1853 = vmatprep.subr.mxu0 0.0
        %1854 = vmatpush1.xpose.msra.mxu0 0.0
        %1855 = vmatprep.subr.mxu0 0.0
        %1856 = vmatpush1.xpose.msra.mxu0 0.0
        %1857 = vmatprep.subr.mxu0 0.0
        %1858 = vmatpush1.xpose.msra.mxu0 0.0
        %1859 = vmatprep.subr.mxu0 0.0
        %1860 = vmatpush1.xpose.msra.mxu0 0.0
        %1861 = vmatprep.subr.mxu0 0.0
        %1862 = vmatpush1.xpose.msra.mxu0 %v1829
        %1863 = vmatprep.subr.mxu0 0.0
        %1864 = vmatpush2.xpose.msra.mxu0 0.0
        %1865 = vmatprep.subr.mxu0 0.0
        %1866 = vmatpush2.xpose.msra.mxu0 0.0
        %1867 = vmatprep.subr.mxu0 0.0
        %1868 = vmatpush2.xpose.msra.mxu0 0.0
        %1869 = vmatprep.subr.mxu0 0.0
        %1870 = vmatpush2.xpose.msra.mxu0 0.0
        %1871 = vmatprep.subr.mxu0 0.0
        %1872 = vmatpush2.xpose.msra.mxu0 0.0
        %1873 = vmatprep.subr.mxu0 0.0
        %1874 = vmatpush2.xpose.msra.mxu0 0.0
        %1875 = vmatprep.subr.mxu0 0.0
        %1876 = vmatpush2.xpose.msra.mxu0 0.0
        %1877 = vmatprep.subr.mxu0 0.0
        %1878 = vmatpush2.xpose.msra.mxu0 0.0
        %1879 = vmatprep.subr.mxu0 0.0
        %1880 = vmatpush2.xpose.msra.mxu0 0.0
        %1881 = vmatprep.subr.mxu0 0.0
        %1882 = vmatpush2.xpose.msra.mxu0 0.0
        %1883 = vmatprep.subr.mxu0 0.0
        %1884 = vmatpush2.xpose.msra.mxu0 0.0
        %1885 = vmatprep.subr.mxu0 0.0
        %1886 = vmatpush2.xpose.msra.mxu0 0.0
        %1887 = vmatprep.subr.mxu0 0.0
        %1888 = vmatpush2.xpose.msra.mxu0 0.0
        %1889 = vmatprep.subr.mxu0 0.0
        %1890 = vmatpush2.xpose.msra.mxu0 0.0
        %1891 = vmatprep.subr.mxu0 0.0
        %1892 = vmatpush2.xpose.msra.mxu0 0.0
        %1893 = vmatprep.subr.mxu0 0.0
        %1894 = vmatpush2.xpose.msra.mxu0 0.0
        %1895 = vmatprep.mubr.f32.mxu0 0.0
        %1896 = vmatmul.mubr.f32.gmra.mxu0 %v1827
        %v1897 = vpop.f32.mrf.mxu0
        %v1898 = vadd.f32 %v557, %v1897
        %v1899 = vpop.f32.mrf.mxu0
        %1900 = vdwg.mxu0
        %v1901 = vsel %vm562, %v1898, -inf
        %1902 = vmax.xlane.f32.xlu0 %v1901
        %v1903 = vpop.xlane.xlu0 %1902
        %v1904 = vsub.f32 %v1898, %v1903
        %v1905 = vmul.f32 %v1904, 1.442695
        %v1906 = vpow.pop %v1905
        %v1907 = vsel %vm562, %v1906, 0.0
        %1908 = vadd.xlane.f32.xlu0 %v1907
        %v1909 = vpop.xlane.xlu0 %1908
        %v1910 = vrcp.pop %v1909
        %v1911 = vmul.f32 %v1906, %v1910
        %1912 = vrot.lane.b32.xlu0 %v1654, 56
        %v1913 = vpop.permute.xlu0 %1912
        %v1916 = vsel %vm562, %v1911, 0
        %1918 = vmatprep.subr.mxu0 0.0
        %1919 = vmatpush1.msra.mxu0 0.0
        %1920 = vmatprep.subr.mxu0 0.0
        %1921 = vmatpush1.msra.mxu0 0.0
        %1922 = vmatprep.subr.mxu0 0.0
        %1923 = vmatpush1.msra.mxu0 0.0
        %1924 = vmatprep.subr.mxu0 0.0
        %1925 = vmatpush1.msra.mxu0 0.0
        %1926 = vmatprep.subr.mxu0 0.0
        %1927 = vmatpush1.msra.mxu0 0.0
        %1928 = vmatprep.subr.mxu0 0.0
        %1929 = vmatpush1.msra.mxu0 0.0
        %1930 = vmatprep.subr.mxu0 0.0
        %1931 = vmatpush1.msra.mxu0 0.0
        %1932 = vmatprep.subr.mxu0 0.0
        %1933 = vmatpush1.msra.mxu0 0.0
        %1934 = vmatprep.subr.mxu0 0.0
        %1935 = vmatpush1.msra.mxu0 0.0
        %1936 = vmatprep.subr.mxu0 0.0
        %1937 = vmatpush1.msra.mxu0 0.0
        %1938 = vmatprep.subr.mxu0 0.0
        %1939 = vmatpush1.msra.mxu0 0.0
        %1940 = vmatprep.subr.mxu0 0.0
        %1941 = vmatpush1.msra.mxu0 0.0
        %1942 = vmatprep.subr.mxu0 0.0
        %1943 = vmatpush1.msra.mxu0 0.0
        %1944 = vmatprep.subr.mxu0 0.0
        %1945 = vmatpush1.msra.mxu0 0.0
        %1946 = vmatprep.subr.mxu0 0.0
        %1947 = vmatpush1.msra.mxu0 0.0
        %1948 = vmatprep.subr.mxu0 0.0
        %1949 = vmatpush1.msra.mxu0 %v1913
        %1950 = vmatprep.subr.mxu0 0.0
        %1951 = vmatpush2.msra.mxu0 0.0
        %1952 = vmatprep.subr.mxu0 0.0
        %1953 = vmatpush2.msra.mxu0 0.0
        %1954 = vmatprep.subr.mxu0 0.0
        %1955 = vmatpush2.msra.mxu0 0.0
        %1956 = vmatprep.subr.mxu0 0.0
        %1957 = vmatpush2.msra.mxu0 0.0
        %1958 = vmatprep.subr.mxu0 0.0
        %1959 = vmatpush2.msra.mxu0 0.0
        %1960 = vmatprep.subr.mxu0 0.0
        %1961 = vmatpush2.msra.mxu0 0.0
        %1962 = vmatprep.subr.mxu0 0.0
        %1963 = vmatpush2.msra.mxu0 0.0
        %1964 = vmatprep.subr.mxu0 0.0
        %1965 = vmatpush2.msra.mxu0 0.0
        %1966 = vmatprep.subr.mxu0 0.0
        %1967 = vmatpush2.msra.mxu0 0.0
        %1968 = vmatprep.subr.mxu0 0.0
        %1969 = vmatpush2.msra.mxu0 0.0
        %1970 = vmatprep.subr.mxu0 0.0
        %1971 = vmatpush2.msra.mxu0 0.0
        %1972 = vmatprep.subr.mxu0 0.0
        %1973 = vmatpush2.msra.mxu0 0.0
        %1974 = vmatprep.subr.mxu0 0.0
        %1975 = vmatpush2.msra.mxu0 0.0
        %1976 = vmatprep.subr.mxu0 0.0
        %1977 = vmatpush2.msra.mxu0 0.0
        %1978 = vmatprep.subr.mxu0 0.0
        %1979 = vmatpush2.msra.mxu0 0.0
        %1980 = vmatprep.subr.mxu0 0.0
        %1981 = vmatpush2.msra.mxu0 0.0
        %1982 = vmatprep.mubr.f32.mxu0 0.0
        %1983 = vmatmul.mubr.f32.gmra.mxu0 %v1916
        %v1984 = vpop.f32.mrf.mxu0
        %v1985 = vadd.f32 0.0, %v1984
        %v1986 = vpop.f32.mrf.mxu0
        %1987 = vdwg.mxu0
        %1988 = vrot.lane.b32.xlu0 %v1657, 112
        %v1989 = vpop.permute.xlu0 %1988
        %1990 = vrot.lane.b32.xlu0 %v1654, 80
        %v1991 = vpop.permute.xlu0 %1990
        %v1992 = vsel %vm562, %v1989, 0
        %v1994 = vsel %vm562, %v1991, 0
        %1996 = vmatprep.subr.mxu0 0.0
        %1997 = vmatpush1.xpose.msra.mxu0 0.0
        %1998 = vmatprep.subr.mxu0 0.0
        %1999 = vmatpush1.xpose.msra.mxu0 0.0
        %2000 = vmatprep.subr.mxu0 0.0
        %2001 = vmatpush1.xpose.msra.mxu0 0.0
        %2002 = vmatprep.subr.mxu0 0.0
        %2003 = vmatpush1.xpose.msra.mxu0 0.0
        %2004 = vmatprep.subr.mxu0 0.0
        %2005 = vmatpush1.xpose.msra.mxu0 0.0
        %2006 = vmatprep.subr.mxu0 0.0
        %2007 = vmatpush1.xpose.msra.mxu0 0.0
        %2008 = vmatprep.subr.mxu0 0.0
        %2009 = vmatpush1.xpose.msra.mxu0 0.0
        %2010 = vmatprep.subr.mxu0 0.0
        %2011 = vmatpush1.xpose.msra.mxu0 0.0
        %2012 = vmatprep.subr.mxu0 0.0
        %2013 = vmatpush1.xpose.msra.mxu0 0.0
        %2014 = vmatprep.subr.mxu0 0.0
        %2015 = vmatpush1.xpose.msra.mxu0 0.0
        %2016 = vmatprep.subr.mxu0 0.0
        %2017 = vmatpush1.xpose.msra.mxu0 0.0
        %2018 = vmatprep.subr.mxu0 0.0
        %2019 = vmatpush1.xpose.msra.mxu0 0.0
        %2020 = vmatprep.subr.mxu0 0.0
        %2021 = vmatpush1.xpose.msra.mxu0 0.0
        %2022 = vmatprep.subr.mxu0 0.0
        %2023 = vmatpush1.xpose.msra.mxu0 0.0
        %2024 = vmatprep.subr.mxu0 0.0
        %2025 = vmatpush1.xpose.msra.mxu0 0.0
        %2026 = vmatprep.subr.mxu0 0.0
        %2027 = vmatpush1.xpose.msra.mxu0 %v1994
        %2028 = vmatprep.subr.mxu0 0.0
        %2029 = vmatpush2.xpose.msra.mxu0 0.0
        %2030 = vmatprep.subr.mxu0 0.0
        %2031 = vmatpush2.xpose.msra.mxu0 0.0
        %2032 = vmatprep.subr.mxu0 0.0
        %2033 = vmatpush2.xpose.msra.mxu0 0.0
        %2034 = vmatprep.subr.mxu0 0.0
        %2035 = vmatpush2.xpose.msra.mxu0 0.0
        %2036 = vmatprep.subr.mxu0 0.0
        %2037 = vmatpush2.xpose.msra.mxu0 0.0
        %2038 = vmatprep.subr.mxu0 0.0
        %2039 = vmatpush2.xpose.msra.mxu0 0.0
        %2040 = vmatprep.subr.mxu0 0.0
        %2041 = vmatpush2.xpose.msra.mxu0 0.0
        %2042 = vmatprep.subr.mxu0 0.0
        %2043 = vmatpush2.xpose.msra.mxu0 0.0
        %2044 = vmatprep.subr.mxu0 0.0
        %2045 = vmatpush2.xpose.msra.mxu0 0.0
        %2046 = vmatprep.subr.mxu0 0.0
        %2047 = vmatpush2.xpose.msra.mxu0 0.0
        %2048 = vmatprep.subr.mxu0 0.0
        %2049 = vmatpush2.xpose.msra.mxu0 0.0
        %2050 = vmatprep.subr.mxu0 0.0
        %2051 = vmatpush2.xpose.msra.mxu0 0.0
        %2052 = vmatprep.subr.mxu0 0.0
        %2053 = vmatpush2.xpose.msra.mxu0 0.0
        %2054 = vmatprep.subr.mxu0 0.0
        %2055 = vmatpush2.xpose.msra.mxu0 0.0
        %2056 = vmatprep.subr.mxu0 0.0
        %2057 = vmatpush2.xpose.msra.mxu0 0.0
        %2058 = vmatprep.subr.mxu0 0.0
        %2059 = vmatpush2.xpose.msra.mxu0 0.0
        %2060 = vmatprep.mubr.f32.mxu0 0.0
        %2061 = vmatmul.mubr.f32.gmra.mxu0 %v1992
        %v2062 = vpop.f32.mrf.mxu0
        %v2063 = vadd.f32 %v557, %v2062
        %v2064 = vpop.f32.mrf.mxu0
        %2065 = vdwg.mxu0
        %v2066 = vsel %vm562, %v2063, -inf
        %2067 = vmax.xlane.f32.xlu0 %v2066
        %v2068 = vpop.xlane.xlu0 %2067
        %v2069 = vsub.f32 %v2063, %v2068
        %v2070 = vmul.f32 %v2069, 1.442695
        %v2071 = vpow.pop %v2070
        %v2072 = vsel %vm562, %v2071, 0.0
        %2073 = vadd.xlane.f32.xlu0 %v2072
        %v2074 = vpop.xlane.xlu0 %2073
        %v2075 = vrcp.pop %v2074
        %v2076 = vmul.f32 %v2071, %v2075
        %2077 = vrot.lane.b32.xlu0 %v1654, 48
        %v2078 = vpop.permute.xlu0 %2077
        %v2081 = vsel %vm562, %v2076, 0
        %2083 = vmatprep.subr.mxu0 0.0
        %2084 = vmatpush1.msra.mxu0 0.0
        %2085 = vmatprep.subr.mxu0 0.0
        %2086 = vmatpush1.msra.mxu0 0.0
        %2087 = vmatprep.subr.mxu0 0.0
        %2088 = vmatpush1.msra.mxu0 0.0
        %2089 = vmatprep.subr.mxu0 0.0
        %2090 = vmatpush1.msra.mxu0 0.0
        %2091 = vmatprep.subr.mxu0 0.0
        %2092 = vmatpush1.msra.mxu0 0.0
        %2093 = vmatprep.subr.mxu0 0.0
        %2094 = vmatpush1.msra.mxu0 0.0
        %2095 = vmatprep.subr.mxu0 0.0
        %2096 = vmatpush1.msra.mxu0 0.0
        %2097 = vmatprep.subr.mxu0 0.0
        %2098 = vmatpush1.msra.mxu0 0.0
        %2099 = vmatprep.subr.mxu0 0.0
        %2100 = vmatpush1.msra.mxu0 0.0
        %2101 = vmatprep.subr.mxu0 0.0
        %2102 = vmatpush1.msra.mxu0 0.0
        %2103 = vmatprep.subr.mxu0 0.0
        %2104 = vmatpush1.msra.mxu0 0.0
        %2105 = vmatprep.subr.mxu0 0.0
        %2106 = vmatpush1.msra.mxu0 0.0
        %2107 = vmatprep.subr.mxu0 0.0
        %2108 = vmatpush1.msra.mxu0 0.0
        %2109 = vmatprep.subr.mxu0 0.0
        %2110 = vmatpush1.msra.mxu0 0.0
        %2111 = vmatprep.subr.mxu0 0.0
        %2112 = vmatpush1.msra.mxu0 0.0
        %2113 = vmatprep.subr.mxu0 0.0
        %2114 = vmatpush1.msra.mxu0 %v2078
        %2115 = vmatprep.subr.mxu0 0.0
        %2116 = vmatpush2.msra.mxu0 0.0
        %2117 = vmatprep.subr.mxu0 0.0
        %2118 = vmatpush2.msra.mxu0 0.0
        %2119 = vmatprep.subr.mxu0 0.0
        %2120 = vmatpush2.msra.mxu0 0.0
        %2121 = vmatprep.subr.mxu0 0.0
        %2122 = vmatpush2.msra.mxu0 0.0
        %2123 = vmatprep.subr.mxu0 0.0
        %2124 = vmatpush2.msra.mxu0 0.0
        %2125 = vmatprep.subr.mxu0 0.0
        %2126 = vmatpush2.msra.mxu0 0.0
        %2127 = vmatprep.subr.mxu0 0.0
        %2128 = vmatpush2.msra.mxu0 0.0
        %2129 = vmatprep.subr.mxu0 0.0
        %2130 = vmatpush2.msra.mxu0 0.0
        %2131 = vmatprep.subr.mxu0 0.0
        %2132 = vmatpush2.msra.mxu0 0.0
        %2133 = vmatprep.subr.mxu0 0.0
        %2134 = vmatpush2.msra.mxu0 0.0
        %2135 = vmatprep.subr.mxu0 0.0
        %2136 = vmatpush2.msra.mxu0 0.0
        %2137 = vmatprep.subr.mxu0 0.0
        %2138 = vmatpush2.msra.mxu0 0.0
        %2139 = vmatprep.subr.mxu0 0.0
        %2140 = vmatpush2.msra.mxu0 0.0
        %2141 = vmatprep.subr.mxu0 0.0
        %2142 = vmatpush2.msra.mxu0 0.0
        %2143 = vmatprep.subr.mxu0 0.0
        %2144 = vmatpush2.msra.mxu0 0.0
        %2145 = vmatprep.subr.mxu0 0.0
        %2146 = vmatpush2.msra.mxu0 0.0
        %2147 = vmatprep.mubr.f32.mxu0 0.0
        %2148 = vmatmul.mubr.f32.gmra.mxu0 %v2081
        %v2149 = vpop.f32.mrf.mxu0
        %v2150 = vadd.f32 0.0, %v2149
        %v2151 = vpop.f32.mrf.mxu0
        %2152 = vdwg.mxu0
        %2153 = vrot.lane.b32.xlu0 %v1657, 104
        %v2154 = vpop.permute.xlu0 %2153
        %2155 = vrot.lane.b32.xlu0 %v1654, 72
        %v2156 = vpop.permute.xlu0 %2155
        %v2157 = vsel %vm562, %v2154, 0
        %v2159 = vsel %vm562, %v2156, 0
        %2161 = vmatprep.subr.mxu0 0.0
        %2162 = vmatpush1.xpose.msra.mxu0 0.0
        %2163 = vmatprep.subr.mxu0 0.0
        %2164 = vmatpush1.xpose.msra.mxu0 0.0
        %2165 = vmatprep.subr.mxu0 0.0
        %2166 = vmatpush1.xpose.msra.mxu0 0.0
        %2167 = vmatprep.subr.mxu0 0.0
        %2168 = vmatpush1.xpose.msra.mxu0 0.0
        %2169 = vmatprep.subr.mxu0 0.0
        %2170 = vmatpush1.xpose.msra.mxu0 0.0
        %2171 = vmatprep.subr.mxu0 0.0
        %2172 = vmatpush1.xpose.msra.mxu0 0.0
        %2173 = vmatprep.subr.mxu0 0.0
        %2174 = vmatpush1.xpose.msra.mxu0 0.0
        %2175 = vmatprep.subr.mxu0 0.0
        %2176 = vmatpush1.xpose.msra.mxu0 0.0
        %2177 = vmatprep.subr.mxu0 0.0
        %2178 = vmatpush1.xpose.msra.mxu0 0.0
        %2179 = vmatprep.subr.mxu0 0.0
        %2180 = vmatpush1.xpose.msra.mxu0 0.0
        %2181 = vmatprep.subr.mxu0 0.0
        %2182 = vmatpush1.xpose.msra.mxu0 0.0
        %2183 = vmatprep.subr.mxu0 0.0
        %2184 = vmatpush1.xpose.msra.mxu0 0.0
        %2185 = vmatprep.subr.mxu0 0.0
        %2186 = vmatpush1.xpose.msra.mxu0 0.0
        %2187 = vmatprep.subr.mxu0 0.0
        %2188 = vmatpush1.xpose.msra.mxu0 0.0
        %2189 = vmatprep.subr.mxu0 0.0
        %2190 = vmatpush1.xpose.msra.mxu0 0.0
        %2191 = vmatprep.subr.mxu0 0.0
        %2192 = vmatpush1.xpose.msra.mxu0 %v2159
        %2193 = vmatprep.subr.mxu0 0.0
        %2194 = vmatpush2.xpose.msra.mxu0 0.0
        %2195 = vmatprep.subr.mxu0 0.0
        %2196 = vmatpush2.xpose.msra.mxu0 0.0
        %2197 = vmatprep.subr.mxu0 0.0
        %2198 = vmatpush2.xpose.msra.mxu0 0.0
        %2199 = vmatprep.subr.mxu0 0.0
        %2200 = vmatpush2.xpose.msra.mxu0 0.0
        %2201 = vmatprep.subr.mxu0 0.0
        %2202 = vmatpush2.xpose.msra.mxu0 0.0
        %2203 = vmatprep.subr.mxu0 0.0
        %2204 = vmatpush2.xpose.msra.mxu0 0.0
        %2205 = vmatprep.subr.mxu0 0.0
        %2206 = vmatpush2.xpose.msra.mxu0 0.0
        %2207 = vmatprep.subr.mxu0 0.0
        %2208 = vmatpush2.xpose.msra.mxu0 0.0
        %2209 = vmatprep.subr.mxu0 0.0
        %2210 = vmatpush2.xpose.msra.mxu0 0.0
        %2211 = vmatprep.subr.mxu0 0.0
        %2212 = vmatpush2.xpose.msra.mxu0 0.0
        %2213 = vmatprep.subr.mxu0 0.0
        %2214 = vmatpush2.xpose.msra.mxu0 0.0
        %2215 = vmatprep.subr.mxu0 0.0
        %2216 = vmatpush2.xpose.msra.mxu0 0.0
        %2217 = vmatprep.subr.mxu0 0.0
        %2218 = vmatpush2.xpose.msra.mxu0 0.0
        %2219 = vmatprep.subr.mxu0 0.0
        %2220 = vmatpush2.xpose.msra.mxu0 0.0
        %2221 = vmatprep.subr.mxu0 0.0
        %2222 = vmatpush2.xpose.msra.mxu0 0.0
        %2223 = vmatprep.subr.mxu0 0.0
        %2224 = vmatpush2.xpose.msra.mxu0 0.0
        %2225 = vmatprep.mubr.f32.mxu0 0.0
        %2226 = vmatmul.mubr.f32.gmra.mxu0 %v2157
        %v2227 = vpop.f32.mrf.mxu0
        %v2228 = vadd.f32 %v557, %v2227
        %v2229 = vpop.f32.mrf.mxu0
        %2230 = vdwg.mxu0
        %v2231 = vsel %vm562, %v2228, -inf
        %2232 = vmax.xlane.f32.xlu0 %v2231
        %v2233 = vpop.xlane.xlu0 %2232
        %v2234 = vsub.f32 %v2228, %v2233
        %v2235 = vmul.f32 %v2234, 1.442695
        %v2236 = vpow.pop %v2235
        %v2237 = vsel %vm562, %v2236, 0.0
        %2238 = vadd.xlane.f32.xlu0 %v2237
        %v2239 = vpop.xlane.xlu0 %2238
        %v2240 = vrcp.pop %v2239
        %v2241 = vmul.f32 %v2236, %v2240
        %2242 = vrot.lane.b32.xlu0 %v1654, 40
        %v2243 = vpop.permute.xlu0 %2242
        %v2246 = vsel %vm562, %v2241, 0
        %2248 = vmatprep.subr.mxu0 0.0
        %2249 = vmatpush1.msra.mxu0 0.0
        %2250 = vmatprep.subr.mxu0 0.0
        %2251 = vmatpush1.msra.mxu0 0.0
        %2252 = vmatprep.subr.mxu0 0.0
        %2253 = vmatpush1.msra.mxu0 0.0
        %2254 = vmatprep.subr.mxu0 0.0
        %2255 = vmatpush1.msra.mxu0 0.0
        %2256 = vmatprep.subr.mxu0 0.0
        %2257 = vmatpush1.msra.mxu0 0.0
        %2258 = vmatprep.subr.mxu0 0.0
        %2259 = vmatpush1.msra.mxu0 0.0
        %2260 = vmatprep.subr.mxu0 0.0
        %2261 = vmatpush1.msra.mxu0 0.0
        %2262 = vmatprep.subr.mxu0 0.0
        %2263 = vmatpush1.msra.mxu0 0.0
        %2264 = vmatprep.subr.mxu0 0.0
        %2265 = vmatpush1.msra.mxu0 0.0
        %2266 = vmatprep.subr.mxu0 0.0
        %2267 = vmatpush1.msra.mxu0 0.0
        %2268 = vmatprep.subr.mxu0 0.0
        %2269 = vmatpush1.msra.mxu0 0.0
        %2270 = vmatprep.subr.mxu0 0.0
        %2271 = vmatpush1.msra.mxu0 0.0
        %2272 = vmatprep.subr.mxu0 0.0
        %2273 = vmatpush1.msra.mxu0 0.0
        %2274 = vmatprep.subr.mxu0 0.0
        %2275 = vmatpush1.msra.mxu0 0.0
        %2276 = vmatprep.subr.mxu0 0.0
        %2277 = vmatpush1.msra.mxu0 0.0
        %2278 = vmatprep.subr.mxu0 0.0
        %2279 = vmatpush1.msra.mxu0 %v2243
        %2280 = vmatprep.subr.mxu0 0.0
        %2281 = vmatpush2.msra.mxu0 0.0
        %2282 = vmatprep.subr.mxu0 0.0
        %2283 = vmatpush2.msra.mxu0 0.0
        %2284 = vmatprep.subr.mxu0 0.0
        %2285 = vmatpush2.msra.mxu0 0.0
        %2286 = vmatprep.subr.mxu0 0.0
        %2287 = vmatpush2.msra.mxu0 0.0
        %2288 = vmatprep.subr.mxu0 0.0
        %2289 = vmatpush2.msra.mxu0 0.0
        %2290 = vmatprep.subr.mxu0 0.0
        %2291 = vmatpush2.msra.mxu0 0.0
        %2292 = vmatprep.subr.mxu0 0.0
        %2293 = vmatpush2.msra.mxu0 0.0
        %2294 = vmatprep.subr.mxu0 0.0
        %2295 = vmatpush2.msra.mxu0 0.0
        %2296 = vmatprep.subr.mxu0 0.0
        %2297 = vmatpush2.msra.mxu0 0.0
        %2298 = vmatprep.subr.mxu0 0.0
        %2299 = vmatpush2.msra.mxu0 0.0
        %2300 = vmatprep.subr.mxu0 0.0
        %2301 = vmatpush2.msra.mxu0 0.0
        %2302 = vmatprep.subr.mxu0 0.0
        %2303 = vmatpush2.msra.mxu0 0.0
        %2304 = vmatprep.subr.mxu0 0.0
        %2305 = vmatpush2.msra.mxu0 0.0
        %2306 = vmatprep.subr.mxu0 0.0
        %2307 = vmatpush2.msra.mxu0 0.0
        %2308 = vmatprep.subr.mxu0 0.0
        %2309 = vmatpush2.msra.mxu0 0.0
        %2310 = vmatprep.subr.mxu0 0.0
        %2311 = vmatpush2.msra.mxu0 0.0
        %2312 = vmatprep.mubr.f32.mxu0 0.0
        %2313 = vmatmul.mubr.f32.gmra.mxu0 %v2246
        %v2314 = vpop.f32.mrf.mxu0
        %v2315 = vadd.f32 0.0, %v2314
        %v2316 = vpop.f32.mrf.mxu0
        %2317 = vdwg.mxu0
        %2319 = vrot.lane.b32.xlu0 %v1985, 8
        %v2320 = vpop.permute.xlu0 %2319
        %2323 = vrot.lane.b32.xlu0 %v2150, 16
        %v2324 = vpop.permute.xlu0 %2323
        %2327 = vrot.lane.b32.xlu0 %v2315, 24
        %v2328 = vpop.permute.xlu0 %2327
        %v2330 = vsel %vm562, %v1820, %v2320
        %v2331 = vsel %vm1233, %v2330, %v2324
        %v2332 = vsel %vm1235, %v2331, %v2328
        %s2333 = scalar_lea.vmem %s10, 4
        %v2334 = vld [vmem:[%s2333] sm:$0xf]
        %s2335 = scalar_lea.vmem %s4, 32
        %v2336 = vld [vmem:[%s2335] sm:$0xff]
        %v2337 = vld [vmem:[%s2335 + $0x8] sm:$0xff]
        %v2338 = vld [vmem:[%s2335 + $0x10] sm:$0xff]
        %v2339 = vld [vmem:[%s2335 + $0x18] sm:$0xff]
        %s2340 = scalar_lea.vmem [#allocation7], 1
        %v2341 = vld [vmem:[%s2340] sm:$0x1]
        %v2343 = vlaneseq
        %v2344 = vshrl.u32 %v2343, 7
        %v2345 = vsub.s32 0, %v2344
        %v2346 = vrot.slane %v2341, %v2345
        %v2349 = vsel %vm478, %v2332, 0
        %2351 = vmatprep.subr.mxu0 0.0
        %2352 = vmatpush1.msra.mxu0 0.0
        %2353 = vmatprep.subr.mxu0 0.0
        %2354 = vmatpush1.msra.mxu0 0.0
        %2355 = vmatprep.subr.mxu0 0.0
        %2356 = vmatpush1.msra.mxu0 0.0
        %2357 = vmatprep.subr.mxu0 0.0
        %2358 = vmatpush1.msra.mxu0 0.0
        %2359 = vmatprep.subr.mxu0 0.0
        %2360 = vmatpush1.msra.mxu0 0.0
        %2361 = vmatprep.subr.mxu0 0.0
        %2362 = vmatpush1.msra.mxu0 0.0
        %2363 = vmatprep.subr.mxu0 0.0
        %2364 = vmatpush1.msra.mxu0 0.0
        %2365 = vmatprep.subr.mxu0 0.0
        %2366 = vmatpush1.msra.mxu0 0.0
        %2367 = vmatprep.subr.mxu0 0.0
        %2368 = vmatpush1.msra.mxu0 0.0
        %2369 = vmatprep.subr.mxu0 0.0
        %2370 = vmatpush1.msra.mxu0 0.0
        %2371 = vmatprep.subr.mxu0 0.0
        %2372 = vmatpush1.msra.mxu0 0.0
        %2373 = vmatprep.subr.mxu0 0.0
        %2374 = vmatpush1.msra.mxu0 0.0
        %2375 = vmatprep.subr.mxu0 0.0
        %2376 = vmatpush1.msra.mxu0 %v2339
        %2377 = vmatprep.subr.mxu0 0.0
        %2378 = vmatpush1.msra.mxu0 %v2338
        %2379 = vmatprep.subr.mxu0 0.0
        %2380 = vmatpush1.msra.mxu0 %v2337
        %2381 = vmatprep.subr.mxu0 0.0
        %2382 = vmatpush1.msra.mxu0 %v2336
        %2383 = vmatprep.subr.mxu0 0.0
        %2384 = vmatpush2.msra.mxu0 0.0
        %2385 = vmatprep.subr.mxu0 0.0
        %2386 = vmatpush2.msra.mxu0 0.0
        %2387 = vmatprep.subr.mxu0 0.0
        %2388 = vmatpush2.msra.mxu0 0.0
        %2389 = vmatprep.subr.mxu0 0.0
        %2390 = vmatpush2.msra.mxu0 0.0
        %2391 = vmatprep.subr.mxu0 0.0
        %2392 = vmatpush2.msra.mxu0 0.0
        %2393 = vmatprep.subr.mxu0 0.0
        %2394 = vmatpush2.msra.mxu0 0.0
        %2395 = vmatprep.subr.mxu0 0.0
        %2396 = vmatpush2.msra.mxu0 0.0
        %2397 = vmatprep.subr.mxu0 0.0
        %2398 = vmatpush2.msra.mxu0 0.0
        %2399 = vmatprep.subr.mxu0 0.0
        %2400 = vmatpush2.msra.mxu0 0.0
        %2401 = vmatprep.subr.mxu0 0.0
        %2402 = vmatpush2.msra.mxu0 0.0
        %2403 = vmatprep.subr.mxu0 0.0
        %2404 = vmatpush2.msra.mxu0 0.0
        %2405 = vmatprep.subr.mxu0 0.0
        %2406 = vmatpush2.msra.mxu0 0.0
        %2407 = vmatprep.subr.mxu0 0.0
        %2408 = vmatpush2.msra.mxu0 0.0
        %2409 = vmatprep.subr.mxu0 0.0
        %2410 = vmatpush2.msra.mxu0 0.0
        %2411 = vmatprep.subr.mxu0 0.0
        %2412 = vmatpush2.msra.mxu0 0.0
        %2413 = vmatprep.subr.mxu0 0.0
        %2414 = vmatpush2.msra.mxu0 0.0
        %2415 = vmatprep.mubr.f32.mxu0 0.0
        %2416 = vmatmul.mubr.f32.gmra.mxu0 %v2349
        %v2417 = vpop.f32.mrf.mxu0
        %v2418 = vadd.f32 %v2346, %v2417
        %v2419 = vpop.f32.mrf.mxu0
        %2420 = vdwg.mxu0
        %v2421 = vadd.f32 %v2418, %v1570
        %v2422 = vsel %vm478, %v2421, 0.0
        %2423 = vadd.xlane.f32.xlu0 %v2422
        %v2424 = vpop.xlane.xlu0 %2423
        %v2425 = vmul.f32 %v2424, %v1326
        %v2426 = vsub.f32 %v2421, %v2425
        %v2427 = vmul.f32 %v2426, %v2426
        %v2428 = vsel %vm478, %v2427, 0.0
        %2429 = vadd.xlane.f32.xlu0 %v2428
        %v2430 = vpop.xlane.xlu0 %2429
        %v2431 = vmul.f32 %v2430, %v1326
        %v2432 = vadd.f32 %v2431, 1e-12
        %v2433 = vrsqrt.pop %v2432
        %v2434 = vmul.f32 %v2426, %v2433
        %v2435 = vlaneseq
        %v2436 = vshrl.u32 %v2435, 7
        %v2437 = vsub.s32 0, %v2436
        %v2438 = vrot.slane %v2334, %v2437
        %v2439 = vmul.f32 %v2434, %v2438
        %v2440 = vlaneseq
        %v2441 = vshrl.u32 %v2440, 7
        %v2442 = vsub.s32 1, %v2441
        %v2443 = vrot.slane %v2334, %v2442
        %v2444 = vadd.f32 %v2439, %v2443
        %s2445 = scalar_lea.vmem %s6, 32
        %v2446 = vld [vmem:[%s2445] sm:$0xff]
        %v2447 = vld [vmem:[%s2445 + $0x8] sm:$0xff]
        %v2448 = vld [vmem:[%s2445 + $0x10] sm:$0xff]
        %v2449 = vld [vmem:[%s2445 + $0x18] sm:$0xff]
        %s2450 = scalar_lea.vmem [#allocation8], 1
        %v2451 = vld [vmem:[%s2450] sm:$0x1]
        %v2453 = vlaneseq
        %v2454 = vshrl.u32 %v2453, 7
        %v2455 = vsub.s32 0, %v2454
        %v2456 = vrot.slane %v2451, %v2455
        %v2459 = vsel %vm478, %v2444, 0
        %2461 = vmatprep.subr.mxu0 0.0
        %2462 = vmatpush1.msra.mxu0 0.0
        %2463 = vmatprep.subr.mxu0 0.0
        %2464 = vmatpush1.msra.mxu0 0.0
        %2465 = vmatprep.subr.mxu0 0.0
        %2466 = vmatpush1.msra.mxu0 0.0
        %2467 = vmatprep.subr.mxu0 0.0
        %2468 = vmatpush1.msra.mxu0 0.0
        %2469 = vmatprep.subr.mxu0 0.0
        %2470 = vmatpush1.msra.mxu0 0.0
        %2471 = vmatprep.subr.mxu0 0.0
        %2472 = vmatpush1.msra.mxu0 0.0
        %2473 = vmatprep.subr.mxu0 0.0
        %2474 = vmatpush1.msra.mxu0 0.0
        %2475 = vmatprep.subr.mxu0 0.0
        %2476 = vmatpush1.msra.mxu0 0.0
        %2477 = vmatprep.subr.mxu0 0.0
        %2478 = vmatpush1.msra.mxu0 0.0
        %2479 = vmatprep.subr.mxu0 0.0
        %2480 = vmatpush1.msra.mxu0 0.0
        %2481 = vmatprep.subr.mxu0 0.0
        %2482 = vmatpush1.msra.mxu0 0.0
        %2483 = vmatprep.subr.mxu0 0.0
        %2484 = vmatpush1.msra.mxu0 0.0
        %2485 = vmatprep.subr.mxu0 0.0
        %2486 = vmatpush1.msra.mxu0 %v2449
        %2487 = vmatprep.subr.mxu0 0.0
        %2488 = vmatpush1.msra.mxu0 %v2448
        %2489 = vmatprep.subr.mxu0 0.0
        %2490 = vmatpush1.msra.mxu0 %v2447
        %2491 = vmatprep.subr.mxu0 0.0
        %2492 = vmatpush1.msra.mxu0 %v2446
        %2493 = vmatprep.subr.mxu0 0.0
        %2494 = vmatpush2.msra.mxu0 0.0
        %2495 = vmatprep.subr.mxu0 0.0
        %2496 = vmatpush2.msra.mxu0 0.0
        %2497 = vmatprep.subr.mxu0 0.0
        %2498 = vmatpush2.msra.mxu0 0.0
        %2499 = vmatprep.subr.mxu0 0.0
        %2500 = vmatpush2.msra.mxu0 0.0
        %2501 = vmatprep.subr.mxu0 0.0
        %2502 = vmatpush2.msra.mxu0 0.0
        %2503 = vmatprep.subr.mxu0 0.0
        %2504 = vmatpush2.msra.mxu0 0.0
        %2505 = vmatprep.subr.mxu0 0.0
        %2506 = vmatpush2.msra.mxu0 0.0
        %2507 = vmatprep.subr.mxu0 0.0
        %2508 = vmatpush2.msra.mxu0 0.0
        %2509 = vmatprep.subr.mxu0 0.0
        %2510 = vmatpush2.msra.mxu0 0.0
        %2511 = vmatprep.subr.mxu0 0.0
        %2512 = vmatpush2.msra.mxu0 0.0
        %2513 = vmatprep.subr.mxu0 0.0
        %2514 = vmatpush2.msra.mxu0 0.0
        %2515 = vmatprep.subr.mxu0 0.0
        %2516 = vmatpush2.msra.mxu0 0.0
        %2517 = vmatprep.subr.mxu0 0.0
        %2518 = vmatpush2.msra.mxu0 0.0
        %2519 = vmatprep.subr.mxu0 0.0
        %2520 = vmatpush2.msra.mxu0 0.0
        %2521 = vmatprep.subr.mxu0 0.0
        %2522 = vmatpush2.msra.mxu0 0.0
        %2523 = vmatprep.subr.mxu0 0.0
        %2524 = vmatpush2.msra.mxu0 0.0
        %2525 = vmatprep.mubr.f32.mxu0 0.0
        %2526 = vmatmul.mubr.f32.gmra.mxu0 %v2459
        %v2527 = vpop.f32.mrf.mxu0
        %v2528 = vadd.f32 %v2456, %v2527
        %v2529 = vpop.f32.mrf.mxu0
        %2530 = vdwg.mxu0
        %v2531 = vmul.f32 %v2528, 0.5
        %v2532 = vmul.f32 %v2528, 0.70710677
        %vm2533 = vcmp.ge.f32.partialorder %v2532, 0.0
        %v2534 = vsel %vm2533, 1.0, -1.0
        %v2535 = vand.u32 2147483647, %v2532
        %v2536 = vmul.f32 %v2535, 0.3275911
        %v2537 = vadd.f32 %v2536, 1.0
        %v2538 = vrcp.pop %v2537
        %v2539 = vmul.f32 1.0, %v2538
        %v2540 = vmul.f32 %v2539, 1.0614054
        %v2541 = vadd.f32 %v2540, -1.4531521
        %v2542 = vmul.f32 %v2541, %v2539
        %v2543 = vadd.f32 %v2542, 1.4214138
        %v2544 = vmul.f32 %v2543, %v2539
        %v2545 = vadd.f32 %v2544, -0.28449672
        %v2546 = vmul.f32 %v2545, %v2539
        %v2547 = vadd.f32 %v2546, 0.2548296
        %v2548 = vmul.f32 %v2547, %v2539
        %v2549 = vsub.f32 0.0, %v2535
        %v2550 = vmul.f32 %v2549, %v2535
        %v2551 = vmul.f32 %v2550, 1.442695
        %v2552 = vpow.pop %v2551
        %v2553 = vmul.f32 %v2548, %v2552
        %v2554 = vsub.f32 1.0, %v2553
        %v2555 = vmul.f32 %v2534, %v2554
        %v2556 = vadd.f32 %v2555, 1.0
        %v2557 = vmul.f32 %v2531, %v2556
        %s2558 = scalar_lea.vmem %s8, 64
        %v2559 = vld [vmem:[%s2558] sm:$0xff]
        %v2560 = vld [vmem:[%s2558 + $0x8] sm:$0xff]
        %v2561 = vld [vmem:[%s2558 + $0x10] sm:$0xff]
        %v2562 = vld [vmem:[%s2558 + $0x18] sm:$0xff]
        %v2563 = vld [vmem:[%s2558 + $0x20] sm:$0xff]
        %v2564 = vld [vmem:[%s2558 + $0x28] sm:$0xff]
        %v2565 = vld [vmem:[%s2558 + $0x30] sm:$0xff]
        %v2566 = vld [vmem:[%s2558 + $0x38] sm:$0xff]
        %s2567 = scalar_lea.vmem %s9, 1
        %v2568 = vld [vmem:[%s2567] sm:$0x1]
        %v2570 = vlaneseq
        %v2571 = vshrl.u32 %v2570, 7
        %v2572 = vsub.s32 0, %v2571
        %v2573 = vrot.slane %v2568, %v2572
        %v2576 = vsel %vm1473, %v2557, 0
        %2578 = vmatprep.subr.mxu0 0.0
        %2579 = vmatpush1.msra.mxu0 0.0
        %2580 = vmatprep.subr.mxu0 0.0
        %2581 = vmatpush1.msra.mxu0 0.0
        %2582 = vmatprep.subr.mxu0 0.0
        %2583 = vmatpush1.msra.mxu0 0.0
        %2584 = vmatprep.subr.mxu0 0.0
        %2585 = vmatpush1.msra.mxu0 0.0
        %2586 = vmatprep.subr.mxu0 0.0
        %2587 = vmatpush1.msra.mxu0 0.0
        %2588 = vmatprep.subr.mxu0 0.0
        %2589 = vmatpush1.msra.mxu0 0.0
        %2590 = vmatprep.subr.mxu0 0.0
        %2591 = vmatpush1.msra.mxu0 0.0
        %2592 = vmatprep.subr.mxu0 0.0
        %2593 = vmatpush1.msra.mxu0 0.0
        %2594 = vmatprep.subr.mxu0 0.0
        %2595 = vmatpush1.msra.mxu0 %v2566
        %2596 = vmatprep.subr.mxu0 0.0
        %2597 = vmatpush1.msra.mxu0 %v2565
        %2598 = vmatprep.subr.mxu0 0.0
        %2599 = vmatpush1.msra.mxu0 %v2564
        %2600 = vmatprep.subr.mxu0 0.0
        %2601 = vmatpush1.msra.mxu0 %v2563
        %2602 = vmatprep.subr.mxu0 0.0
        %2603 = vmatpush1.msra.mxu0 %v2562
        %2604 = vmatprep.subr.mxu0 0.0
        %2605 = vmatpush1.msra.mxu0 %v2561
        %2606 = vmatprep.subr.mxu0 0.0
        %2607 = vmatpush1.msra.mxu0 %v2560
        %2608 = vmatprep.subr.mxu0 0.0
        %2609 = vmatpush1.msra.mxu0 %v2559
        %2610 = vmatprep.subr.mxu0 0.0
        %2611 = vmatpush2.msra.mxu0 0.0
        %2612 = vmatprep.subr.mxu0 0.0
        %2613 = vmatpush2.msra.mxu0 0.0
        %2614 = vmatprep.subr.mxu0 0.0
        %2615 = vmatpush2.msra.mxu0 0.0
        %2616 = vmatprep.subr.mxu0 0.0
        %2617 = vmatpush2.msra.mxu0 0.0
        %2618 = vmatprep.subr.mxu0 0.0
        %2619 = vmatpush2.msra.mxu0 0.0
        %2620 = vmatprep.subr.mxu0 0.0
        %2621 = vmatpush2.msra.mxu0 0.0
        %2622 = vmatprep.subr.mxu0 0.0
        %2623 = vmatpush2.msra.mxu0 0.0
        %2624 = vmatprep.subr.mxu0 0.0
        %2625 = vmatpush2.msra.mxu0 0.0
        %2626 = vmatprep.subr.mxu0 0.0
        %2627 = vmatpush2.msra.mxu0 0.0
        %2628 = vmatprep.subr.mxu0 0.0
        %2629 = vmatpush2.msra.mxu0 0.0
        %2630 = vmatprep.subr.mxu0 0.0
        %2631 = vmatpush2.msra.mxu0 0.0
        %2632 = vmatprep.subr.mxu0 0.0
        %2633 = vmatpush2.msra.mxu0 0.0
        %2634 = vmatprep.subr.mxu0 0.0
        %2635 = vmatpush2.msra.mxu0 0.0
        %2636 = vmatprep.subr.mxu0 0.0
        %2637 = vmatpush2.msra.mxu0 0.0
        %2638 = vmatprep.subr.mxu0 0.0
        %2639 = vmatpush2.msra.mxu0 0.0
        %2640 = vmatprep.subr.mxu0 0.0
        %2641 = vmatpush2.msra.mxu0 0.0
        %2642 = vmatprep.mubr.f32.mxu0 0.0
        %2643 = vmatmul.mubr.f32.gmra.mxu0 %v2576
        %v2644 = vpop.f32.mrf.mxu0
        %v2645 = vadd.f32 %v2573, %v2644
        %v2646 = vpop.f32.mrf.mxu0
        %2647 = vdwg.mxu0
        %v2648 = vadd.f32 %v2645, %v2444
        %v2649 = vsel %vm478, %v2648, 0.0
        %2650 = vadd.xlane.f32.xlu0 %v2649
        %v2651 = vpop.xlane.xlu0 %2650
        %v2652 = vmul.f32 %v2651, %v1326
        %v2653 = vsub.f32 %v2648, %v2652
        %v2654 = vmul.f32 %v2653, %v2653
        %v2655 = vsel %vm478, %v2654, 0.0
        %2656 = vadd.xlane.f32.xlu0 %v2655
        %v2657 = vpop.xlane.xlu0 %2656
        %v2658 = vmul.f32 %v2657, %v1326
        %v2659 = vadd.f32 %v2658, 1e-12
        %v2660 = vrsqrt.pop %v2659
        %v2661 = vmul.f32 %v2653, %v2660
        %v2662 = vlaneseq
        %v2663 = vshrl.u32 %v2662, 7
        %v2664 = vsub.s32 2, %v2663
        %v2665 = vrot.slane %v2334, %v2664
        %v2666 = vmul.f32 %v2661, %v2665
        %v2667 = vlaneseq
        %v2668 = vshrl.u32 %v2667, 7
        %v2669 = vsub.s32 3, %v2668
        %v2670 = vrot.slane %v2334, %v2669
        %v2671 = vadd.f32 %v2666, %v2670
        %2672 = vst.msk [vmem:[%s464] sm:$0xff] %vm478, %v2671
        %s2673 = sand.u32 %s281, 1
        %s2674 = scalar_lea.sflag [#allocation4], %s2673
        %s2675 = sand.u32 %s281, 1
        %s2676 = smul.addr %s2675, 8
        %s2677 = scalar_lea.vmem [#allocation10], %s2676
        // Predicated region
        $region81: #{tpu_custom_call.1} parent=63 // pred_check
          %p2678 = pneg %p291
        $region82: #{tpu_custom_call.1} parent=63 // pred_check_branch
          %2680 = sbr.rel (%p2678) target = $region84
        $region83: #{tpu_custom_call.1} parent=63 // pred_region
          %s2682 = ssub.s32 128, 128
          %2683 = vsyncadd %s2674, %s2682
          %s2684 = smul.addr %s32, 128
          %s2685 = scalar_lea.hbm %s11, %s2684
          %s2687 = sshll.u32 %s2677, 4
          %s2688 = int_to_ptr.vmem [resolvable:$true] %s2687
          %2690 = dma.vmem_to_hbm [thread:$0]  %s2688, 128, %s2685, %s2674
        $region84: #{tpu_custom_call.1} parent=63 // pred_fallthru
          _
      $region64: #{tpu_custom_call.1} parent=5 // pred_fallthru
        _
      %p2691 = scmp.le.s32.totalorder 2, %s27
      // Predicated region
      $region85: #{tpu_custom_call.1} parent=5 // pred_check
        %p2692 = pneg %p2691
      $region86: #{tpu_custom_call.1} parent=5 // pred_check_branch
        %2694 = sbr.rel (%p2692) target = $region88
      $region87: #{tpu_custom_call.1} parent=5 // pred_region
        %s2695 = ssub.s32 %s27, 2
        // Predicated region
        $region89: #{tpu_custom_call.1} parent=87 // pred_check
          %p2696 = pneg %p297
        $region90: #{tpu_custom_call.1} parent=87 // pred_check_branch
          %2698 = sbr.rel (%p2696) target = $region92
        $region91: #{tpu_custom_call.1} parent=87 // pred_region
          %s2699 = sand.u32 %s282, 1
          %s2700 = scalar_lea.sflag [#allocation4], %s2699
          %s2701 = sand.u32 %s282, 1
          %s2702 = smul.addr %s2701, 8
          %s2703 = scalar_lea.vmem [#allocation10], %s2702
          %2704 = dma.done %s2700, 128
        $region92: #{tpu_custom_call.1} parent=87 // pred_fallthru
          _
      $region88: #{tpu_custom_call.1} parent=5 // pred_fallthru
        _
    $region6: #{tpu_custom_call.1} parent=1 // loop_footer
      %s31 = sadd.s32 1, %s27
    $region7: #{tpu_custom_call.1} parent=1 // loop_footer_branch
      %26 = sbr.rel target = $region3
    $region8: #{tpu_custom_call.1} parent=1 // loop_exit
      _
    %2705 = vsyncpa [#allocation3], 1
    %s2706 = scalar_lea.sflag [#allocation3], 1
    %2707 = vsyncpa %s2706, 1
    %2708 = vsyncpa [#allocation6], 1
    %s2709 = scalar_lea.sflag [#allocation6], 1
    %2710 = vsyncpa %s2709, 1
    %2711 = vsyncpa [#allocation9], 1
    %2712 = vsyncpa [#allocation4], 1
    %s2713 = scalar_lea.sflag [#allocation4], 1
    %2714 = vsyncpa %s2713, 1

</llo_original>
